<compile_context>
chip_gen: v6e
topology: v6e:2x2x1
jax: 0.10.0
libtpu: 0.0.40
codegen_flags: <defaults>
</compile_context>

<pallas_src>
import numpy as np
import jax
import jax.numpy as jnp
from jax.experimental import pallas as pl
from jax.experimental.pallas import tpu as pltpu

# ---------------- static configuration (small shapes consistent w/ module) ---
N       = 2                    # batch
NCHA    = 16                   # EEG channels (module arg `ncha`)
T       = 64                   # time samples
F       = 8                    # filters_per_branch
SCALES  = (64, 32, 16, 8)      # scales_samples (hard-coded in the module)
NB      = len(SCALES)
PAD_TOP = SCALES[0] // 2       # 32
PAD_BOT = SCALES[0] // 2 - 1   # 31
K1      = SCALES[0] * NCHA     # im2col width for block-1 temporal convs = 1024
CIN1    = NB * F * NCHA        # block-1 stage-1 output lanes = 512
T4      = T // 4               # 16
T8      = T // 8               # 8
C1      = NB * 2 * F           # block-1 concat channels = 64
C2      = NB * F               # block-2 concat channels = 32
KS0     = SCALES[0] // 4       # largest block-2 kernel = 16 taps
BN_EPS  = 1e-5


def _elu(v):
    return jnp.where(v > 0, v, jnp.exp(jnp.minimum(v, 0.0)) - 1.0)


# ------------------------------- kernel --------------------------------------
def eeg_kernel(x_ref, r_ref, b1b_ref, wg_ref, b2b_ref, p4_ref,
               w2c_ref, b3b_ref, p2_ref,
               o2_ref, o1_ref):
    # ---- block 1: two large matmuls --------------------------------------
    X = x_ref[0]                                               # (T, 1024) im2col slab
    # temporal convs (all scales) + BatchNorm1, then one ELU
    a1 = jnp.dot(X, r_ref[...], preferred_element_type=jnp.float32) + b1b_ref[...]
    a1 = _elu(a1)                                              # (T, 512) lanes=(scale,f,c)
    # grouped (1,ncha) conv + 1x1 conv + BatchNorm2 folded into one block-diag weight
    b1 = jnp.dot(a1, wg_ref[...], preferred_element_type=jnp.float32) + b2b_ref[...]
    b1 = _elu(b1)                                              # (T, 64) = concat of scales
    # AvgPool2d((4,1)) as matmul
    b1p = jnp.dot(p4_ref[...], b1, preferred_element_type=jnp.float32)   # (T4, 64)
    o1_ref[0] = b1p

    # ---- block 2: single 16-tap conv over all scales ----------------------
    # sublane-aligned zero padding (8 / 16 / 8 rows; last pad row is never read)
    zp = jnp.concatenate([jnp.zeros((KS0 // 2, C1), jnp.float32),
                          b1p,
                          jnp.zeros((KS0 // 2, C1), jnp.float32)], axis=0)  # (32, 64)
    acc = jnp.dot(zp[0:T4, :], w2c_ref[0], preferred_element_type=jnp.float32)
    for k in range(1, KS0):
        acc = acc + jnp.dot(zp[k:k + T4, :], w2c_ref[k],
                            preferred_element_type=jnp.float32)
    b2 = _elu(acc + b3b_ref[...])                              # (T4, 32)
    # AvgPool2d((2,1)) as matmul
    o2_ref[0] = jnp.dot(p2_ref[...], b2, preferred_element_type=jnp.float32)


# -------------------------- parameter construction ---------------------------
def make_params(key):
    keys = iter(jax.random.split(key, 128))

    def nrm(shape, scale=0.1):
        return np.asarray(jax.random.normal(next(keys), shape, jnp.float32)) * scale

    def bn(n):
        gamma = 1.0 + nrm((n,), 0.1)
        beta = nrm((n,), 0.1)
        mean = nrm((n,), 0.1)
        var = 0.5 + np.abs(nrm((n,), 1.0))
        scale = gamma / np.sqrt(var + BN_EPS)
        shift = beta - mean * scale
        return scale.astype(np.float32), shift.astype(np.float32)

    # ---- block 1 fused weights -------------------------------------------
    R = np.zeros((K1, CIN1), np.float32)        # im2col weight (taps*ncha, scales*F*ncha)
    bias1 = np.zeros((1, CIN1), np.float32)     # conv bias + BN1 shift
    Wg = np.zeros((CIN1, C1), np.float32)       # grouped conv * 1x1 conv * BN2 scale
    bias2 = np.zeros((1, C1), np.float32)

    eye = np.eye(NCHA, dtype=np.float32)
    for i, s in enumerate(SCALES):
        w1 = nrm((F, s))                        # Conv2d(1, F, (s, 1)).weight[:, 0, :, 0]
        cb1 = nrm((F,))                         # its bias
        sc1, sh1 = bn(F)                        # BatchNorm2d(F) folded scale/shift
        ofs = PAD_TOP - s // 2                  # tap offset into the 64-tap im2col slab
        col0 = i * F * NCHA
        for f in range(F):
            c0 = col0 + f * NCHA
            for k in range(s):
                r0 = (ofs + k) * NCHA
                R[r0:r0 + NCHA, c0:c0 + NCHA] = eye * (sc1[f] * w1[f, k])
            bias1[0, c0:c0 + NCHA] = sc1[f] * cb1[f] + sh1[f]

        wdw = nrm((2 * F, NCHA))                # Conv2d(F, 2F, (1,ncha), groups=F).weight
        bdw = nrm((2 * F,))
        wpw = nrm((2 * F, 2 * F))               # Conv2d(2F, 2F, (1,1)).weight (out, in)
        bpw = nrm((2 * F,))
        s2, h2 = bn(2 * F)
        # fused: y[o] = sum_{f,c} A[f,c] * s2[o]*(wdw[2f,c]wpw[o,2f]+wdw[2f+1,c]wpw[o,2f+1])
        #              + s2[o]*(sum_m bdw[m]wpw[o,m] + bpw[o]) + h2[o]
        for f in range(F):
            blk = (wdw[2 * f][:, None] * wpw[:, 2 * f][None, :]
                   + wdw[2 * f + 1][:, None] * wpw[:, 2 * f + 1][None, :])  # (NCHA, 2F)
            Wg[col0 + f * NCHA: col0 + (f + 1) * NCHA,
               i * 2 * F:(i + 1) * 2 * F] = blk * s2[None, :]
        bias2[0, i * 2 * F:(i + 1) * 2 * F] = (wpw @ bdw + bpw) * s2 + h2

    # ---- block 2 fused per-tap weights -------------------------------------
    W2C = np.zeros((KS0, C1, C2), np.float32)
    bias3 = np.zeros((1, C2), np.float32)
    for i, s in enumerate(SCALES):
        ks = s // 4
        ofs2 = KS0 // 2 - ks // 2
        w2 = nrm((F, C1, ks))                   # Conv2d(C1, F, (ks, 1)).weight[:, :, :, 0]
        cb2 = nrm((F,))
        s3, h3 = bn(F)
        for k in range(ks):
            W2C[ofs2 + k, :, i * F:(i + 1) * F] = w2[:, :, k].T * s3[None, :]
        bias3[0, i * F:(i + 1) * F] = s3 * cb2 + h3

    # ---- pooling matrices ---------------------------------------------------
    P4 = np.zeros((T4, T), np.float32)
    for t in range(T4):
        P4[t, 4 * t:4 * t + 4] = 0.25
    P2 = np.zeros((T8, T4), np.float32)
    for t in range(T8):
        P2[t, 2 * t:2 * t + 2] = 0.5

    flat = [R, bias1, Wg, bias2, P4, W2C, bias3, P2]
    return [jnp.asarray(p, jnp.float32) for p in flat]


def _const_spec(shape):
    nd = len(shape)
    return pl.BlockSpec(shape, lambda b, nd=nd: (0,) * nd)


# ------------------------------- wrapper --------------------------------------
@jax.jit
def eeg_feature_forward(x, params):
    # x: (N, 1, ncha, T) -- same NCHW convention the PyTorch module consumes.
    n = x.shape[0]
    xt = jnp.transpose(x[:, 0], (0, 2, 1)).astype(jnp.float32)          # (N, T, ncha)
    xp = jnp.pad(xt, ((0, 0), (PAD_TOP, PAD_BOT), (0, 0)))              # (N, T+63, ncha)
    # im2col slab: X[n, t, k*ncha + c] = xp[n, t+k, c]  (one slab serves all scales)
    idx = jnp.arange(T)[:, None] + jnp.arange(SCALES[0])[None, :]       # (T, 64)
    X = xp[:, idx, :].reshape(n, T, K1)                                 # (N, T, 1024)

    in_specs = [pl.BlockSpec((1, T, K1), lambda b: (b, 0, 0))]
    in_specs += [_const_spec(tuple(p.shape)) for p in params]
    out_specs = [pl.BlockSpec((1, T8, C2), lambda b: (b, 0, 0)),
                 pl.BlockSpec((1, T4, C1), lambda b: (b, 0, 0))]

    o2, o1 = pl.pallas_call(
        eeg_kernel,
        out_shape=(jax.ShapeDtypeStruct((n, T8, C2), jnp.float32),
                   jax.ShapeDtypeStruct((n, T4, C1), jnp.float32)),
        grid_spec=pltpu.PrefetchScalarGridSpec(
            num_scalar_prefetch=0,
            grid=(n,),
            in_specs=in_specs,
            out_specs=out_specs),
        compiler_params=pltpu.CompilerParams(
            dimension_semantics=("parallel",)),   # batch is independent (v7x 2 cores)
    )(X, *params)

    # back to PyTorch NCHW: (N, channels, time, 1)
    b2_out = jnp.transpose(o2, (0, 2, 1))[..., None]   # (N, 32, T//8, 1)
    b1_out = jnp.transpose(o1, (0, 2, 1))[..., None]   # (N, 64, T//4, 1)
    return b2_out, b1_out


if __name__ == "__main__":
    key = jax.random.PRNGKey(0)
    kx, kp = jax.random.split(key)
    params = make_params(kp)
    x = jax.random.normal(kx, (N, 1, NCHA, T), jnp.float32)   # (batch, 1, ncha, time)

    b2_out, b1_out = eeg_feature_forward(x, params)
    jax.block_until_ready((b2_out, b1_out))

    assert b2_out.shape == (N, C2, T8, 1), b2_out.shape
    assert b1_out.shape == (N, C1, T4, 1), b1_out.shape
    assert bool(jnp.all(jnp.isfinite(b2_out))) and bool(jnp.all(jnp.isfinite(b1_out)))
    print("KERNEL_OK")
</pallas_src>

<mosaic_0001>
module attributes {stable_mosaic.version = 11 : i64} {
  func.func @eeg_kernel(%arg0: i32, %arg1: memref<1x64x1024xf32, #tpu.memory_space<vmem>>, %arg2: memref<1024x512xf32, #tpu.memory_space<vmem>>, %arg3: memref<1x512xf32, #tpu.memory_space<vmem>>, %arg4: memref<512x64xf32, #tpu.memory_space<vmem>>, %arg5: memref<1x64xf32, #tpu.memory_space<vmem>>, %arg6: memref<16x64xf32, #tpu.memory_space<vmem>>, %arg7: memref<16x64x32xf32, #tpu.memory_space<vmem>>, %arg8: memref<1x32xf32, #tpu.memory_space<vmem>>, %arg9: memref<8x16xf32, #tpu.memory_space<vmem>>, %arg10: memref<1x8x32xf32, #tpu.memory_space<vmem>>, %arg11: memref<1x16x64xf32, #tpu.memory_space<vmem>>) attributes {dimension_semantics = [#tpu.dimension_semantics<parallel>], iteration_bounds = array<i64: 2>, scalar_prefetch = 0 : i64, scratch_operands = 0 : i64, tpu.core_type = #tpu.core_type<tc>, window_params = [{transform_indices = @transform_0, window_bounds = array<i64: 1, 64, 1024>}, {pipeline_mode = #tpu.pipeline_mode<synchronous>, transform_indices = @transform_1, window_bounds = array<i64: 1024, 512>}, {pipeline_mode = #tpu.pipeline_mode<synchronous>, transform_indices = @transform_2, window_bounds = array<i64: 1, 512>}, {pipeline_mode = #tpu.pipeline_mode<synchronous>, transform_indices = @transform_3, window_bounds = array<i64: 512, 64>}, {pipeline_mode = #tpu.pipeline_mode<synchronous>, transform_indices = @transform_4, window_bounds = array<i64: 1, 64>}, {pipeline_mode = #tpu.pipeline_mode<synchronous>, transform_indices = @transform_5, window_bounds = array<i64: 16, 64>}, {pipeline_mode = #tpu.pipeline_mode<synchronous>, transform_indices = @transform_6, window_bounds = array<i64: 16, 64, 32>}, {pipeline_mode = #tpu.pipeline_mode<synchronous>, transform_indices = @transform_7, window_bounds = array<i64: 1, 32>}, {pipeline_mode = #tpu.pipeline_mode<synchronous>, transform_indices = @transform_8, window_bounds = array<i64: 8, 16>}, {transform_indices = @transform_9, window_bounds = array<i64: 1, 8, 32>}, {transform_indices = @transform_10, window_bounds = array<i64: 1, 16, 64>}]} {
    %c0 = arith.constant 0 : index
    %c0_0 = arith.constant 0 : index
    %c0_1 = arith.constant 0 : index
    %0 = vector.load %arg1[%c0, %c0_0, %c0_1] : memref<1x64x1024xf32, #tpu.memory_space<vmem>>, vector<1x64x1024xf32>
    %1 = vector.shape_cast %0 : vector<1x64x1024xf32> to vector<64x1024xf32>
    %c0_2 = arith.constant 0 : index
    %c0_3 = arith.constant 0 : index
    %2 = vector.load %arg2[%c0_2, %c0_3] : memref<1024x512xf32, #tpu.memory_space<vmem>>, vector<1024x512xf32>
    %cst = arith.constant dense<0.000000e+00> : vector<64x512xf32>
    %3 = tpu.matmul %1, %2, %cst {dimension_numbers = #tpu.dot_dimension_numbers<[1], [0], [0], [1], [0, 0, 1, 1], [], []>} : vector<64x1024xf32>, vector<1024x512xf32>, vector<64x512xf32> -> vector<64x512xf32>
    %c0_4 = arith.constant 0 : index
    %c0_5 = arith.constant 0 : index
    %4 = vector.load %arg3[%c0_4, %c0_5] : memref<1x512xf32, #tpu.memory_space<vmem>>, vector<1x512xf32>
    %5 = vector.broadcast %4 : vector<1x512xf32> to vector<64x512xf32>
    %6 = arith.addf %3, %5 : vector<64x512xf32>
    %cst_6 = arith.constant 0.000000e+00 : f32
    %7 = vector.broadcast %cst_6 : f32 to vector<64x512xf32>
    %8 = arith.cmpf ogt, %6, %7 : vector<64x512xf32>
    %cst_7 = arith.constant 0.000000e+00 : f32
    %9 = vector.broadcast %cst_7 : f32 to vector<64x512xf32>
    %10 = arith.minimumf %6, %9 : vector<64x512xf32>
    %11 = math.exp %10 : vector<64x512xf32>
    %cst_8 = arith.constant 1.000000e+00 : f32
    %12 = vector.broadcast %cst_8 : f32 to vector<64x512xf32>
    %13 = arith.subf %11, %12 : vector<64x512xf32>
    %14 = arith.select %8, %6, %13 : vector<64x512xi1>, vector<64x512xf32>
    %c0_9 = arith.constant 0 : index
    %c0_10 = arith.constant 0 : index
    %15 = vector.load %arg4[%c0_9, %c0_10] : memref<512x64xf32, #tpu.memory_space<vmem>>, vector<512x64xf32>
    %cst_11 = arith.constant dense<0.000000e+00> : vector<64x64xf32>
    %16 = tpu.matmul %14, %15, %cst_11 {dimension_numbers = #tpu.dot_dimension_numbers<[1], [0], [0], [1], [0, 0, 1, 1], [], []>} : vector<64x512xf32>, vector<512x64xf32>, vector<64x64xf32> -> vector<64x64xf32>
    %c0_12 = arith.constant 0 : index
    %c0_13 = arith.constant 0 : index
    %17 = vector.load %arg5[%c0_12, %c0_13] : memref<1x64xf32, #tpu.memory_space<vmem>>, vector<1x64xf32>
    %18 = vector.broadcast %17 : vector<1x64xf32> to vector<64x64xf32>
    %19 = arith.addf %16, %18 : vector<64x64xf32>
    %cst_14 = arith.constant 0.000000e+00 : f32
    %20 = vector.broadcast %cst_14 : f32 to vector<64x64xf32>
    %21 = arith.cmpf ogt, %19, %20 : vector<64x64xf32>
    %cst_15 = arith.constant 0.000000e+00 : f32
    %22 = vector.broadcast %cst_15 : f32 to vector<64x64xf32>
    %23 = arith.minimumf %19, %22 : vector<64x64xf32>
    %24 = math.exp %23 : vector<64x64xf32>
    %cst_16 = arith.constant 1.000000e+00 : f32
    %25 = vector.broadcast %cst_16 : f32 to vector<64x64xf32>
    %26 = arith.subf %24, %25 : vector<64x64xf32>
    %27 = arith.select %21, %19, %26 : vector<64x64xi1>, vector<64x64xf32>
    %c0_17 = arith.constant 0 : index
    %c0_18 = arith.constant 0 : index
    %28 = vector.load %arg6[%c0_17, %c0_18] : memref<16x64xf32, #tpu.memory_space<vmem>>, vector<16x64xf32>
    %cst_19 = arith.constant dense<0.000000e+00> : vector<16x64xf32>
    %29 = tpu.matmul %28, %27, %cst_19 {dimension_numbers = #tpu.dot_dimension_numbers<[1], [0], [0], [1], [0, 0, 1, 1], [], []>} : vector<16x64xf32>, vector<64x64xf32>, vector<16x64xf32> -> vector<16x64xf32>
    %c0_20 = arith.constant 0 : index
    %c0_21 = arith.constant 0 : index
    %c0_22 = arith.constant 0 : index
    %30 = vector.load %arg11[%c0_20, %c0_21, %c0_22] : memref<1x16x64xf32, #tpu.memory_space<vmem>>, vector<1x16x64xf32>
    %31 = vector.shape_cast %30 : vector<1x16x64xf32> to vector<16x64xf32>
    %32 = vector.shape_cast %29 : vector<16x64xf32> to vector<1x16x64xf32>
    tpu.vector_store %arg11[%c0_20, %c0_21, %c0_22], %32 {strides = array<i32>} : memref<1x16x64xf32, #tpu.memory_space<vmem>>, vector<1x16x64xf32>,
    %cst_23 = arith.constant 0.000000e+00 : f32
    %33 = vector.broadcast %cst_23 : f32 to vector<8x64xf32>
    %cst_24 = arith.constant 0.000000e+00 : f32
    %34 = vector.broadcast %cst_24 : f32 to vector<8x64xf32>
    %35 = tpu.concatenate %33, %29, %34 in 0 : vector<8x64xf32>, vector<16x64xf32>, vector<8x64xf32> -> vector<32x64xf32>
    %36 = vector.extract_strided_slice %35 {offsets = [0, 0], sizes = [16, 64], strides = [1, 1]} : vector<32x64xf32> to vector<16x64xf32>
    %c0_25 = arith.constant 0 : index
    %c0_26 = arith.constant 0 : index
    %c0_27 = arith.constant 0 : index
    %37 = vector.load %arg7[%c0_25, %c0_26, %c0_27] : memref<16x64x32xf32, #tpu.memory_space<vmem>>, vector<1x64x32xf32>
    %38 = vector.shape_cast %37 : vector<1x64x32xf32> to vector<64x32xf32>
    %cst_28 = arith.constant dense<0.000000e+00> : vector<16x32xf32>
    %39 = tpu.matmul %36, %38, %cst_28 {dimension_numbers = #tpu.dot_dimension_numbers<[1], [0], [0], [1], [0, 0, 1, 1], [], []>} : vector<16x64xf32>, vector<64x32xf32>, vector<16x32xf32> -> vector<16x32xf32>
    %40 = vector.extract_strided_slice %35 {offsets = [1, 0], sizes = [16, 64], strides = [1, 1]} : vector<32x64xf32> to vector<16x64xf32>
    %c1 = arith.constant 1 : index
    %c0_29 = arith.constant 0 : index
    %c0_30 = arith.constant 0 : index
    %41 = vector.load %arg7[%c1, %c0_29, %c0_30] : memref<16x64x32xf32, #tpu.memory_space<vmem>>, vector<1x64x32xf32>
    %42 = vector.shape_cast %41 : vector<1x64x32xf32> to vector<64x32xf32>
    %cst_31 = arith.constant dense<0.000000e+00> : vector<16x32xf32>
    %43 = tpu.matmul %40, %42, %cst_31 {dimension_numbers = #tpu.dot_dimension_numbers<[1], [0], [0], [1], [0, 0, 1, 1], [], []>} : vector<16x64xf32>, vector<64x32xf32>, vector<16x32xf32> -> vector<16x32xf32>
    %44 = arith.addf %39, %43 : vector<16x32xf32>
    %45 = vector.extract_strided_slice %35 {offsets = [2, 0], sizes = [16, 64], strides = [1, 1]} : vector<32x64xf32> to vector<16x64xf32>
    %c2 = arith.constant 2 : index
    %c0_32 = arith.constant 0 : index
    %c0_33 = arith.constant 0 : index
    %46 = vector.load %arg7[%c2, %c0_32, %c0_33] : memref<16x64x32xf32, #tpu.memory_space<vmem>>, vector<1x64x32xf32>
    %47 = vector.shape_cast %46 : vector<1x64x32xf32> to vector<64x32xf32>
    %cst_34 = arith.constant dense<0.000000e+00> : vector<16x32xf32>
    %48 = tpu.matmul %45, %47, %cst_34 {dimension_numbers = #tpu.dot_dimension_numbers<[1], [0], [0], [1], [0, 0, 1, 1], [], []>} : vector<16x64xf32>, vector<64x32xf32>, vector<16x32xf32> -> vector<16x32xf32>
    %49 = arith.addf %44, %48 : vector<16x32xf32>
    %50 = vector.extract_strided_slice %35 {offsets = [3, 0], sizes = [16, 64], strides = [1, 1]} : vector<32x64xf32> to vector<16x64xf32>
    %c3 = arith.constant 3 : index
    %c0_35 = arith.constant 0 : index
    %c0_36 = arith.constant 0 : index
    %51 = vector.load %arg7[%c3, %c0_35, %c0_36] : memref<16x64x32xf32, #tpu.memory_space<vmem>>, vector<1x64x32xf32>
    %52 = vector.shape_cast %51 : vector<1x64x32xf32> to vector<64x32xf32>
    %cst_37 = arith.constant dense<0.000000e+00> : vector<16x32xf32>
    %53 = tpu.matmul %50, %52, %cst_37 {dimension_numbers = #tpu.dot_dimension_numbers<[1], [0], [0], [1], [0, 0, 1, 1], [], []>} : vector<16x64xf32>, vector<64x32xf32>, vector<16x32xf32> -> vector<16x32xf32>
    %54 = arith.addf %49, %53 : vector<16x32xf32>
    %55 = vector.extract_strided_slice %35 {offsets = [4, 0], sizes = [16, 64], strides = [1, 1]} : vector<32x64xf32> to vector<16x64xf32>
    %c4 = arith.constant 4 : index
    %c0_38 = arith.constant 0 : index
    %c0_39 = arith.constant 0 : index
    %56 = vector.load %arg7[%c4, %c0_38, %c0_39] : memref<16x64x32xf32, #tpu.memory_space<vmem>>, vector<1x64x32xf32>
    %57 = vector.shape_cast %56 : vector<1x64x32xf32> to vector<64x32xf32>
    %cst_40 = arith.constant dense<0.000000e+00> : vector<16x32xf32>
    %58 = tpu.matmul %55, %57, %cst_40 {dimension_numbers = #tpu.dot_dimension_numbers<[1], [0], [0], [1], [0, 0, 1, 1], [], []>} : vector<16x64xf32>, vector<64x32xf32>, vector<16x32xf32> -> vector<16x32xf32>
    %59 = arith.addf %54, %58 : vector<16x32xf32>
    %60 = vector.extract_strided_slice %35 {offsets = [5, 0], sizes = [16, 64], strides = [1, 1]} : vector<32x64xf32> to vector<16x64xf32>
    %c5 = arith.constant 5 : index
    %c0_41 = arith.constant 0 : index
    %c0_42 = arith.constant 0 : index
    %61 = vector.load %arg7[%c5, %c0_41, %c0_42] : memref<16x64x32xf32, #tpu.memory_space<vmem>>, vector<1x64x32xf32>
    %62 = vector.shape_cast %61 : vector<1x64x32xf32> to vector<64x32xf32>
    %cst_43 = arith.constant dense<0.000000e+00> : vector<16x32xf32>
    %63 = tpu.matmul %60, %62, %cst_43 {dimension_numbers = #tpu.dot_dimension_numbers<[1], [0], [0], [1], [0, 0, 1, 1], [], []>} : vector<16x64xf32>, vector<64x32xf32>, vector<16x32xf32> -> vector<16x32xf32>
    %64 = arith.addf %59, %63 : vector<16x32xf32>
    %65 = vector.extract_strided_slice %35 {offsets = [6, 0], sizes = [16, 64], strides = [1, 1]} : vector<32x64xf32> to vector<16x64xf32>
    %c6 = arith.constant 6 : index
    %c0_44 = arith.constant 0 : index
    %c0_45 = arith.constant 0 : index
    %66 = vector.load %arg7[%c6, %c0_44, %c0_45] : memref<16x64x32xf32, #tpu.memory_space<vmem>>, vector<1x64x32xf32>
    %67 = vector.shape_cast %66 : vector<1x64x32xf32> to vector<64x32xf32>
    %cst_46 = arith.constant dense<0.000000e+00> : vector<16x32xf32>
    %68 = tpu.matmul %65, %67, %cst_46 {dimension_numbers = #tpu.dot_dimension_numbers<[1], [0], [0], [1], [0, 0, 1, 1], [], []>} : vector<16x64xf32>, vector<64x32xf32>, vector<16x32xf32> -> vector<16x32xf32>
    %69 = arith.addf %64, %68 : vector<16x32xf32>
    %70 = vector.extract_strided_slice %35 {offsets = [7, 0], sizes = [16, 64], strides = [1, 1]} : vector<32x64xf32> to vector<16x64xf32>
    %c7 = arith.constant 7 : index
    %c0_47 = arith.constant 0 : index
    %c0_48 = arith.constant 0 : index
    %71 = vector.load %arg7[%c7, %c0_47, %c0_48] : memref<16x64x32xf32, #tpu.memory_space<vmem>>, vector<1x64x32xf32>
    %72 = vector.shape_cast %71 : vector<1x64x32xf32> to vector<64x32xf32>
    %cst_49 = arith.constant dense<0.000000e+00> : vector<16x32xf32>
    %73 = tpu.matmul %70, %72, %cst_49 {dimension_numbers = #tpu.dot_dimension_numbers<[1], [0], [0], [1], [0, 0, 1, 1], [], []>} : vector<16x64xf32>, vector<64x32xf32>, vector<16x32xf32> -> vector<16x32xf32>
    %74 = arith.addf %69, %73 : vector<16x32xf32>
    %75 = vector.extract_strided_slice %35 {offsets = [8, 0], sizes = [16, 64], strides = [1, 1]} : vector<32x64xf32> to vector<16x64xf32>
    %c8 = arith.constant 8 : index
    %c0_50 = arith.constant 0 : index
    %c0_51 = arith.constant 0 : index
    %76 = vector.load %arg7[%c8, %c0_50, %c0_51] : memref<16x64x32xf32, #tpu.memory_space<vmem>>, vector<1x64x32xf32>
    %77 = vector.shape_cast %76 : vector<1x64x32xf32> to vector<64x32xf32>
    %cst_52 = arith.constant dense<0.000000e+00> : vector<16x32xf32>
    %78 = tpu.matmul %75, %77, %cst_52 {dimension_numbers = #tpu.dot_dimension_numbers<[1], [0], [0], [1], [0, 0, 1, 1], [], []>} : vector<16x64xf32>, vector<64x32xf32>, vector<16x32xf32> -> vector<16x32xf32>
    %79 = arith.addf %74, %78 : vector<16x32xf32>
    %80 = vector.extract_strided_slice %35 {offsets = [9, 0], sizes = [16, 64], strides = [1, 1]} : vector<32x64xf32> to vector<16x64xf32>
    %c9 = arith.constant 9 : index
    %c0_53 = arith.constant 0 : index
    %c0_54 = arith.constant 0 : index
    %81 = vector.load %arg7[%c9, %c0_53, %c0_54] : memref<16x64x32xf32, #tpu.memory_space<vmem>>, vector<1x64x32xf32>
    %82 = vector.shape_cast %81 : vector<1x64x32xf32> to vector<64x32xf32>
    %cst_55 = arith.constant dense<0.000000e+00> : vector<16x32xf32>
    %83 = tpu.matmul %80, %82, %cst_55 {dimension_numbers = #tpu.dot_dimension_numbers<[1], [0], [0], [1], [0, 0, 1, 1], [], []>} : vector<16x64xf32>, vector<64x32xf32>, vector<16x32xf32> -> vector<16x32xf32>
    %84 = arith.addf %79, %83 : vector<16x32xf32>
    %85 = vector.extract_strided_slice %35 {offsets = [10, 0], sizes = [16, 64], strides = [1, 1]} : vector<32x64xf32> to vector<16x64xf32>
    %c10 = arith.constant 10 : index
    %c0_56 = arith.constant 0 : index
    %c0_57 = arith.constant 0 : index
    %86 = vector.load %arg7[%c10, %c0_56, %c0_57] : memref<16x64x32xf32, #tpu.memory_space<vmem>>, vector<1x64x32xf32>
    %87 = vector.shape_cast %86 : vector<1x64x32xf32> to vector<64x32xf32>
    %cst_58 = arith.constant dense<0.000000e+00> : vector<16x32xf32>
    %88 = tpu.matmul %85, %87, %cst_58 {dimension_numbers = #tpu.dot_dimension_numbers<[1], [0], [0], [1], [0, 0, 1, 1], [], []>} : vector<16x64xf32>, vector<64x32xf32>, vector<16x32xf32> -> vector<16x32xf32>
    %89 = arith.addf %84, %88 : vector<16x32xf32>
    %90 = vector.extract_strided_slice %35 {offsets = [11, 0], sizes = [16, 64], strides = [1, 1]} : vector<32x64xf32> to vector<16x64xf32>
    %c11 = arith.constant 11 : index
    %c0_59 = arith.constant 0 : index
    %c0_60 = arith.constant 0 : index
    %91 = vector.load %arg7[%c11, %c0_59, %c0_60] : memref<16x64x32xf32, #tpu.memory_space<vmem>>, vector<1x64x32xf32>
    %92 = vector.shape_cast %91 : vector<1x64x32xf32> to vector<64x32xf32>
    %cst_61 = arith.constant dense<0.000000e+00> : vector<16x32xf32>
    %93 = tpu.matmul %90, %92, %cst_61 {dimension_numbers = #tpu.dot_dimension_numbers<[1], [0], [0], [1], [0, 0, 1, 1], [], []>} : vector<16x64xf32>, vector<64x32xf32>, vector<16x32xf32> -> vector<16x32xf32>
    %94 = arith.addf %89, %93 : vector<16x32xf32>
    %95 = vector.extract_strided_slice %35 {offsets = [12, 0], sizes = [16, 64], strides = [1, 1]} : vector<32x64xf32> to vector<16x64xf32>
    %c12 = arith.constant 12 : index
    %c0_62 = arith.constant 0 : index
    %c0_63 = arith.constant 0 : index
    %96 = vector.load %arg7[%c12, %c0_62, %c0_63] : memref<16x64x32xf32, #tpu.memory_space<vmem>>, vector<1x64x32xf32>
    %97 = vector.shape_cast %96 : vector<1x64x32xf32> to vector<64x32xf32>
    %cst_64 = arith.constant dense<0.000000e+00> : vector<16x32xf32>
    %98 = tpu.matmul %95, %97, %cst_64 {dimension_numbers = #tpu.dot_dimension_numbers<[1], [0], [0], [1], [0, 0, 1, 1], [], []>} : vector<16x64xf32>, vector<64x32xf32>, vector<16x32xf32> -> vector<16x32xf32>
    %99 = arith.addf %94, %98 : vector<16x32xf32>
    %100 = vector.extract_strided_slice %35 {offsets = [13, 0], sizes = [16, 64], strides = [1, 1]} : vector<32x64xf32> to vector<16x64xf32>
    %c13 = arith.constant 13 : index
    %c0_65 = arith.constant 0 : index
    %c0_66 = arith.constant 0 : index
    %101 = vector.load %arg7[%c13, %c0_65, %c0_66] : memref<16x64x32xf32, #tpu.memory_space<vmem>>, vector<1x64x32xf32>
    %102 = vector.shape_cast %101 : vector<1x64x32xf32> to vector<64x32xf32>
    %cst_67 = arith.constant dense<0.000000e+00> : vector<16x32xf32>
    %103 = tpu.matmul %100, %102, %cst_67 {dimension_numbers = #tpu.dot_dimension_numbers<[1], [0], [0], [1], [0, 0, 1, 1], [], []>} : vector<16x64xf32>, vector<64x32xf32>, vector<16x32xf32> -> vector<16x32xf32>
    %104 = arith.addf %99, %103 : vector<16x32xf32>
    %105 = vector.extract_strided_slice %35 {offsets = [14, 0], sizes = [16, 64], strides = [1, 1]} : vector<32x64xf32> to vector<16x64xf32>
    %c14 = arith.constant 14 : index
    %c0_68 = arith.constant 0 : index
    %c0_69 = arith.constant 0 : index
    %106 = vector.load %arg7[%c14, %c0_68, %c0_69] : memref<16x64x32xf32, #tpu.memory_space<vmem>>, vector<1x64x32xf32>
    %107 = vector.shape_cast %106 : vector<1x64x32xf32> to vector<64x32xf32>
    %cst_70 = arith.constant dense<0.000000e+00> : vector<16x32xf32>
    %108 = tpu.matmul %105, %107, %cst_70 {dimension_numbers = #tpu.dot_dimension_numbers<[1], [0], [0], [1], [0, 0, 1, 1], [], []>} : vector<16x64xf32>, vector<64x32xf32>, vector<16x32xf32> -> vector<16x32xf32>
    %109 = arith.addf %104, %108 : vector<16x32xf32>
    %110 = vector.extract_strided_slice %35 {offsets = [15, 0], sizes = [16, 64], strides = [1, 1]} : vector<32x64xf32> to vector<16x64xf32>
    %c15 = arith.constant 15 : index
    %c0_71 = arith.constant 0 : index
    %c0_72 = arith.constant 0 : index
    %111 = vector.load %arg7[%c15, %c0_71, %c0_72] : memref<16x64x32xf32, #tpu.memory_space<vmem>>, vector<1x64x32xf32>
    %112 = vector.shape_cast %111 : vector<1x64x32xf32> to vector<64x32xf32>
    %cst_73 = arith.constant dense<0.000000e+00> : vector<16x32xf32>
    %113 = tpu.matmul %110, %112, %cst_73 {dimension_numbers = #tpu.dot_dimension_numbers<[1], [0], [0], [1], [0, 0, 1, 1], [], []>} : vector<16x64xf32>, vector<64x32xf32>, vector<16x32xf32> -> vector<16x32xf32>
    %114 = arith.addf %109, %113 : vector<16x32xf32>
    %c0_74 = arith.constant 0 : index
    %c0_75 = arith.constant 0 : index
    %115 = vector.load %arg8[%c0_74, %c0_75] : memref<1x32xf32, #tpu.memory_space<vmem>>, vector<1x32xf32>
    %116 = vector.broadcast %115 : vector<1x32xf32> to vector<16x32xf32>
    %117 = arith.addf %114, %116 : vector<16x32xf32>
    %cst_76 = arith.constant 0.000000e+00 : f32
    %118 = vector.broadcast %cst_76 : f32 to vector<16x32xf32>
    %119 = arith.cmpf ogt, %117, %118 : vector<16x32xf32>
    %cst_77 = arith.constant 0.000000e+00 : f32
    %120 = vector.broadcast %cst_77 : f32 to vector<16x32xf32>
    %121 = arith.minimumf %117, %120 : vector<16x32xf32>
    %122 = math.exp %121 : vector<16x32xf32>
    %cst_78 = arith.constant 1.000000e+00 : f32
    %123 = vector.broadcast %cst_78 : f32 to vector<16x32xf32>
    %124 = arith.subf %122, %123 : vector<16x32xf32>
    %125 = arith.select %119, %117, %124 : vector<16x32xi1>, vector<16x32xf32>
    %c0_79 = arith.constant 0 : index
    %c0_80 = arith.constant 0 : index
    %126 = vector.load %arg9[%c0_79, %c0_80] : memref<8x16xf32, #tpu.memory_space<vmem>>, vector<8x16xf32>
    %cst_81 = arith.constant dense<0.000000e+00> : vector<8x32xf32>
    %127 = tpu.matmul %126, %125, %cst_81 {dimension_numbers = #tpu.dot_dimension_numbers<[1], [0], [0], [1], [0, 0, 1, 1], [], []>} : vector<8x16xf32>, vector<16x32xf32>, vector<8x32xf32> -> vector<8x32xf32>
    %c0_82 = arith.constant 0 : index
    %c0_83 = arith.constant 0 : index
    %c0_84 = arith.constant 0 : index
    %128 = vector.load %arg10[%c0_82, %c0_83, %c0_84] : memref<1x8x32xf32, #tpu.memory_space<vmem>>, vector<1x8x32xf32>
    %129 = vector.shape_cast %128 : vector<1x8x32xf32> to vector<8x32xf32>
    %130 = vector.shape_cast %127 : vector<8x32xf32> to vector<1x8x32xf32>
    tpu.vector_store %arg10[%c0_82, %c0_83, %c0_84], %130 {strides = array<i32>} : memref<1x8x32xf32, #tpu.memory_space<vmem>>, vector<1x8x32xf32>,
    return
  }
  func.func @transform_0(%arg0: i32) -> (i32, i32, i32) {
    %c0_i32 = arith.constant 0 : i32
    %c0_i32_0 = arith.constant 0 : i32
    %c0_i32_1 = arith.constant 0 : i32
    return %arg0, %c0_i32, %c0_i32_0 : i32, i32, i32
  }
  func.func @transform_1(%arg0: i32) -> (i32, i32) {
    %c0_i32 = arith.constant 0 : i32
    %c0_i32_0 = arith.constant 0 : i32
    %c0_i32_1 = arith.constant 0 : i32
    return %c0_i32, %c0_i32_0 : i32, i32
  }
  func.func @transform_2(%arg0: i32) -> (i32, i32) {
    %c0_i32 = arith.constant 0 : i32
    %c0_i32_0 = arith.constant 0 : i32
    %c0_i32_1 = arith.constant 0 : i32
    return %c0_i32, %c0_i32_0 : i32, i32
  }
  func.func @transform_3(%arg0: i32) -> (i32, i32) {
    %c0_i32 = arith.constant 0 : i32
    %c0_i32_0 = arith.constant 0 : i32
    %c0_i32_1 = arith.constant 0 : i32
    return %c0_i32, %c0_i32_0 : i32, i32
  }
  func.func @transform_4(%arg0: i32) -> (i32, i32) {
    %c0_i32 = arith.constant 0 : i32
    %c0_i32_0 = arith.constant 0 : i32
    %c0_i32_1 = arith.constant 0 : i32
    return %c0_i32, %c0_i32_0 : i32, i32
  }
  func.func @transform_5(%arg0: i32) -> (i32, i32) {
    %c0_i32 = arith.constant 0 : i32
    %c0_i32_0 = arith.constant 0 : i32
    %c0_i32_1 = arith.constant 0 : i32
    return %c0_i32, %c0_i32_0 : i32, i32
  }
  func.func @transform_6(%arg0: i32) -> (i32, i32, i32) {
    %c0_i32 = arith.constant 0 : i32
    %c0_i32_0 = arith.constant 0 : i32
    %c0_i32_1 = arith.constant 0 : i32
    %c0_i32_2 = arith.constant 0 : i32
    return %c0_i32, %c0_i32_0, %c0_i32_1 : i32, i32, i32
  }
  func.func @transform_7(%arg0: i32) -> (i32, i32) {
    %c0_i32 = arith.constant 0 : i32
    %c0_i32_0 = arith.constant 0 : i32
    %c0_i32_1 = arith.constant 0 : i32
    return %c0_i32, %c0_i32_0 : i32, i32
  }
  func.func @transform_8(%arg0: i32) -> (i32, i32) {
    %c0_i32 = arith.constant 0 : i32
    %c0_i32_0 = arith.constant 0 : i32
    %c0_i32_1 = arith.constant 0 : i32
    return %c0_i32, %c0_i32_0 : i32, i32
  }
  func.func @transform_9(%arg0: i32) -> (i32, i32, i32) {
    %c0_i32 = arith.constant 0 : i32
    %c0_i32_0 = arith.constant 0 : i32
    %c0_i32_1 = arith.constant 0 : i32
    return %arg0, %c0_i32, %c0_i32_0 : i32, i32, i32
  }
  func.func @transform_10(%arg0: i32) -> (i32, i32, i32) {
    %c0_i32 = arith.constant 0 : i32
    %c0_i32_0 = arith.constant 0 : i32
    %c0_i32_1 = arith.constant 0 : i32
    return %arg0, %c0_i32, %c0_i32_0 : i32, i32, i32
  }
}

</mosaic_0001>

<llo_original>
// kernel: eeg_feature_forward.1
$region0: #{eeg_feature_forward.1}
  #allocation0 [shape = 'u32[]', space=smem, size = 0x4, offset = 0x4, fixed_abs, tag = 'smem constant byte address 0x4 - core index']
  #allocation1 [shape = 'u32[144,128]{1,0:T(1,128)}', space=vmem, size = 0x12000, scoped, tag = 'internal scratch']
  %s0 = inlined_call_operand.vmem [shape: f32[2,64,1024], index: 0, kind: input, shape index: {}]
  %s1 = inlined_call_operand.vmem [shape: f32[1024,512], index: 1, kind: input, shape index: {}]
  %s2 = inlined_call_operand.vmem [shape: f32[1,512], index: 2, kind: input, shape index: {}]
  %s3 = inlined_call_operand.vmem [shape: f32[512,64], index: 3, kind: input, shape index: {}]
  %s4 = inlined_call_operand.vmem [shape: f32[1,64], index: 4, kind: input, shape index: {}]
  %s5 = inlined_call_operand.vmem [shape: f32[16,64], index: 5, kind: input, shape index: {}]
  %s6 = inlined_call_operand.vmem [shape: f32[16,64,32], index: 6, kind: input, shape index: {}]
  %s7 = inlined_call_operand.vmem [shape: f32[1,32], index: 7, kind: input, shape index: {}]
  %s8 = inlined_call_operand.vmem [shape: f32[8,16], index: 8, kind: input, shape index: {}]
  %s9 = inlined_call_operand.hbm [shape: f32[2,8,32], index: 9, kind: output, shape index: {0}]
  %s10 = inlined_call_operand.hbm [shape: f32[2,16,64], index: 10, kind: output, shape index: {1}]
  %11 = xla_tuple %s9, %s10
  %s12 = sld [smem:[#allocation0]]
  $region77: #{eeg_feature_forward.1} parent=0
    _
  %s14 = ssub.s32 1, %s12
  %s15 = scalar_select 0, %s14, %s12
  $region1: #{eeg_feature_forward.1} parent=0
    #allocation2 [shape = 'u8[8192]{0}', space=vmem, size = 0x2000, scoped, tag = 'output window, operand 0']
    #allocation3 [shape = 's32[2]{0}', space=sflag, size = 0x8, scoped, tag = 'scoped memory for eeg_feature_forward.1']
    #allocation4 [shape = 'u8[16384]{0}', space=vmem, size = 0x4000, scoped, tag = 'output window, operand 1']
    #allocation5 [shape = 's32[2]{0}', space=sflag, size = 0x8, scoped, tag = 'scoped memory for eeg_feature_forward.1']
    %16 = vsyncpa [#allocation3], 0
    %s17 = scalar_lea.sflag [#allocation3], 1
    %18 = vsyncpa %s17, 0
    %19 = vsyncpa [#allocation5], 0
    %s20 = scalar_lea.sflag [#allocation5], 1
    %21 = vsyncpa %s20, 0
    loop: start=0, step=1, limit=4
    $region2: #{eeg_feature_forward.1} parent=1 // loop_pre_header
      _
    $region3: #{eeg_feature_forward.1} parent=1 // loop_header
      %s23 = sphi 0, %s27
      %p24 = scmp.ge.s32.totalorder %s23, 4
      %s33 = sphi 0, %s35
      %s36 = sphi 0, %s33
      %s37 = sphi 0, %s36
      %s53 = sphi 0, %s37
      %s57 = sphi 0, %s57
      %s59 = sphi 0, %s57
      %s60 = sphi 0, %s59
      %s74 = sphi 0, %s60
      %s78 = sphi 0, %s78
      %s80 = sphi 0, %s78
      %s81 = sphi 0, %s80
      %s95 = sphi 0, %s81
      %s99 = sphi 0, %s99
      %s101 = sphi 0, %s99
      %s102 = sphi 0, %s101
      %s116 = sphi 0, %s102
      %s120 = sphi 0, %s120
      %s122 = sphi 0, %s120
      %s123 = sphi 0, %s122
      %s137 = sphi 0, %s123
      %s141 = sphi 0, %s141
      %s143 = sphi 0, %s141
      %s144 = sphi 0, %s143
      %s158 = sphi 0, %s144
      %s162 = sphi 0, %s162
      %s164 = sphi 0, %s162
      %s165 = sphi 0, %s164
      %s179 = sphi 0, %s165
      %s183 = sphi 0, %s183
      %s185 = sphi 0, %s183
      %s186 = sphi 0, %s185
      %s200 = sphi 0, %s186
      %s204 = sphi 0, %s204
      %s206 = sphi 0, %s204
      %s207 = sphi 0, %s206
      %s221 = sphi 0, %s207
      %s227 = sphi 0, %s229
      %s230 = sphi 0, %s227
      %s231 = sphi 0, %s230
      %s247 = sphi 0, %s231
      %s253 = sphi 0, %s255
      %s256 = sphi 0, %s253
      %s257 = sphi 0, %s256
      %s273 = sphi 0, %s257
    $region4: #{eeg_feature_forward.1} parent=1 // loop_header_branch
      %26 = sbr.rel (%p24) target = $region8
    $region5: #{eeg_feature_forward.1} parent=1 // loop_body
      %s28 = ssub.s32 %s23, 1
      %s29 = ssub.s32 %s23, 2
      %s30 = sadd.s32 %s23, 1
      %s31 = ssub.s32 %s23, %s30
      %p32 = scmp.eq.s32.totalorder %s31, 0
      %s34 = sadd.s32 %s33, 1
      %s35 = scalar_select %p32, %s33, %s34
      %p38 = pneg %p32
      %p39 = scmp.eq.s32.totalorder %s23, 1
      %p40 = por %p38, %p39
      %p41 = scmp.ne.s32.totalorder %s33, %s36
      %p42 = scmp.eq.s32.totalorder %s23, 0
      %p43 = por %p41, %p42
      %p44 = scmp.ne.s32.totalorder %s33, %s36
      %p45 = scmp.eq.s32.totalorder %s28, 1
      %p46 = por %p44, %p45
      %p47 = scmp.ne.s32.totalorder %s36, %s37
      %p48 = scmp.eq.s32.totalorder %s28, 0
      %p49 = por %p47, %p48
      %p50 = scmp.ne.s32.totalorder %s36, %s37
      %p51 = scmp.eq.s32.totalorder %s29, 1
      %p52 = por %p50, %p51
      %p54 = scmp.ne.s32.totalorder %s37, %s53
      %p55 = scmp.eq.s32.totalorder %s29, 0
      %p56 = por %p54, %p55
      %s58 = sadd.s32 %s57, 1
      %p61 = scmp.eq.s32.totalorder %s23, 1
      %p62 = scmp.ne.s32.totalorder %s57, %s59
      %p63 = scmp.eq.s32.totalorder %s23, 0
      %p64 = por %p62, %p63
      %p65 = scmp.ne.s32.totalorder %s57, %s59
      %p66 = scmp.eq.s32.totalorder %s28, 1
      %p67 = por %p65, %p66
      %p68 = scmp.ne.s32.totalorder %s59, %s60
      %p69 = scmp.eq.s32.totalorder %s28, 0
      %p70 = por %p68, %p69
      %p71 = scmp.ne.s32.totalorder %s59, %s60
      %p72 = scmp.eq.s32.totalorder %s29, 1
      %p73 = por %p71, %p72
      %p75 = scmp.ne.s32.totalorder %s60, %s74
      %p76 = scmp.eq.s32.totalorder %s29, 0
      %p77 = por %p75, %p76
      %s79 = sadd.s32 %s78, 1
      %p82 = scmp.eq.s32.totalorder %s23, 1
      %p83 = scmp.ne.s32.totalorder %s78, %s80
      %p84 = scmp.eq.s32.totalorder %s23, 0
      %p85 = por %p83, %p84
      %p86 = scmp.ne.s32.totalorder %s78, %s80
      %p87 = scmp.eq.s32.totalorder %s28, 1
      %p88 = por %p86, %p87
      %p89 = scmp.ne.s32.totalorder %s80, %s81
      %p90 = scmp.eq.s32.totalorder %s28, 0
      %p91 = por %p89, %p90
      %p92 = scmp.ne.s32.totalorder %s80, %s81
      %p93 = scmp.eq.s32.totalorder %s29, 1
      %p94 = por %p92, %p93
      %p96 = scmp.ne.s32.totalorder %s81, %s95
      %p97 = scmp.eq.s32.totalorder %s29, 0
      %p98 = por %p96, %p97
      %s100 = sadd.s32 %s99, 1
      %p103 = scmp.eq.s32.totalorder %s23, 1
      %p104 = scmp.ne.s32.totalorder %s99, %s101
      %p105 = scmp.eq.s32.totalorder %s23, 0
      %p106 = por %p104, %p105
      %p107 = scmp.ne.s32.totalorder %s99, %s101
      %p108 = scmp.eq.s32.totalorder %s28, 1
      %p109 = por %p107, %p108
      %p110 = scmp.ne.s32.totalorder %s101, %s102
      %p111 = scmp.eq.s32.totalorder %s28, 0
      %p112 = por %p110, %p111
      %p113 = scmp.ne.s32.totalorder %s101, %s102
      %p114 = scmp.eq.s32.totalorder %s29, 1
      %p115 = por %p113, %p114
      %p117 = scmp.ne.s32.totalorder %s102, %s116
      %p118 = scmp.eq.s32.totalorder %s29, 0
      %p119 = por %p117, %p118
      %s121 = sadd.s32 %s120, 1
      %p124 = scmp.eq.s32.totalorder %s23, 1
      %p125 = scmp.ne.s32.totalorder %s120, %s122
      %p126 = scmp.eq.s32.totalorder %s23, 0
      %p127 = por %p125, %p126
      %p128 = scmp.ne.s32.totalorder %s120, %s122
      %p129 = scmp.eq.s32.totalorder %s28, 1
      %p130 = por %p128, %p129
      %p131 = scmp.ne.s32.totalorder %s122, %s123
      %p132 = scmp.eq.s32.totalorder %s28, 0
      %p133 = por %p131, %p132
      %p134 = scmp.ne.s32.totalorder %s122, %s123
      %p135 = scmp.eq.s32.totalorder %s29, 1
      %p136 = por %p134, %p135
      %p138 = scmp.ne.s32.totalorder %s123, %s137
      %p139 = scmp.eq.s32.totalorder %s29, 0
      %p140 = por %p138, %p139
      %s142 = sadd.s32 %s141, 1
      %p145 = scmp.eq.s32.totalorder %s23, 1
      %p146 = scmp.ne.s32.totalorder %s141, %s143
      %p147 = scmp.eq.s32.totalorder %s23, 0
      %p148 = por %p146, %p147
      %p149 = scmp.ne.s32.totalorder %s141, %s143
      %p150 = scmp.eq.s32.totalorder %s28, 1
      %p151 = por %p149, %p150
      %p152 = scmp.ne.s32.totalorder %s143, %s144
      %p153 = scmp.eq.s32.totalorder %s28, 0
      %p154 = por %p152, %p153
      %p155 = scmp.ne.s32.totalorder %s143, %s144
      %p156 = scmp.eq.s32.totalorder %s29, 1
      %p157 = por %p155, %p156
      %p159 = scmp.ne.s32.totalorder %s144, %s158
      %p160 = scmp.eq.s32.totalorder %s29, 0
      %p161 = por %p159, %p160
      %s163 = sadd.s32 %s162, 1
      %p166 = scmp.eq.s32.totalorder %s23, 1
      %p167 = scmp.ne.s32.totalorder %s162, %s164
      %p168 = scmp.eq.s32.totalorder %s23, 0
      %p169 = por %p167, %p168
      %p170 = scmp.ne.s32.totalorder %s162, %s164
      %p171 = scmp.eq.s32.totalorder %s28, 1
      %p172 = por %p170, %p171
      %p173 = scmp.ne.s32.totalorder %s164, %s165
      %p174 = scmp.eq.s32.totalorder %s28, 0
      %p175 = por %p173, %p174
      %p176 = scmp.ne.s32.totalorder %s164, %s165
      %p177 = scmp.eq.s32.totalorder %s29, 1
      %p178 = por %p176, %p177
      %p180 = scmp.ne.s32.totalorder %s165, %s179
      %p181 = scmp.eq.s32.totalorder %s29, 0
      %p182 = por %p180, %p181
      %s184 = sadd.s32 %s183, 1
      %p187 = scmp.eq.s32.totalorder %s23, 1
      %p188 = scmp.ne.s32.totalorder %s183, %s185
      %p189 = scmp.eq.s32.totalorder %s23, 0
      %p190 = por %p188, %p189
      %p191 = scmp.ne.s32.totalorder %s183, %s185
      %p192 = scmp.eq.s32.totalorder %s28, 1
      %p193 = por %p191, %p192
      %p194 = scmp.ne.s32.totalorder %s185, %s186
      %p195 = scmp.eq.s32.totalorder %s28, 0
      %p196 = por %p194, %p195
      %p197 = scmp.ne.s32.totalorder %s185, %s186
      %p198 = scmp.eq.s32.totalorder %s29, 1
      %p199 = por %p197, %p198
      %p201 = scmp.ne.s32.totalorder %s186, %s200
      %p202 = scmp.eq.s32.totalorder %s29, 0
      %p203 = por %p201, %p202
      %s205 = sadd.s32 %s204, 1
      %p208 = scmp.eq.s32.totalorder %s23, 1
      %p209 = scmp.ne.s32.totalorder %s204, %s206
      %p210 = scmp.eq.s32.totalorder %s23, 0
      %p211 = por %p209, %p210
      %p212 = scmp.ne.s32.totalorder %s204, %s206
      %p213 = scmp.eq.s32.totalorder %s28, 1
      %p214 = por %p212, %p213
      %p215 = scmp.ne.s32.totalorder %s206, %s207
      %p216 = scmp.eq.s32.totalorder %s28, 0
      %p217 = por %p215, %p216
      %p218 = scmp.ne.s32.totalorder %s206, %s207
      %p219 = scmp.eq.s32.totalorder %s29, 1
      %p220 = por %p218, %p219
      %p222 = scmp.ne.s32.totalorder %s207, %s221
      %p223 = scmp.eq.s32.totalorder %s29, 0
      %p224 = por %p222, %p223
      %s225 = ssub.s32 %s23, %s30
      %p226 = scmp.eq.s32.totalorder %s225, 0
      %s228 = sadd.s32 %s227, 1
      %s229 = scalar_select %p226, %s227, %s228
      %p232 = pneg %p226
      %p233 = scmp.eq.s32.totalorder %s23, 1
      %p234 = por %p232, %p233
      %p235 = scmp.ne.s32.totalorder %s227, %s230
      %p236 = scmp.eq.s32.totalorder %s23, 0
      %p237 = por %p235, %p236
      %p238 = scmp.ne.s32.totalorder %s227, %s230
      %p239 = scmp.eq.s32.totalorder %s28, 1
      %p240 = por %p238, %p239
      %p241 = scmp.ne.s32.totalorder %s230, %s231
      %p242 = scmp.eq.s32.totalorder %s28, 0
      %p243 = por %p241, %p242
      %p244 = scmp.ne.s32.totalorder %s230, %s231
      %p245 = scmp.eq.s32.totalorder %s29, 1
      %p246 = por %p244, %p245
      %p248 = scmp.ne.s32.totalorder %s231, %s247
      %p249 = scmp.eq.s32.totalorder %s29, 0
      %p250 = por %p248, %p249
      %s251 = ssub.s32 %s23, %s30
      %p252 = scmp.eq.s32.totalorder %s251, 0
      %s254 = sadd.s32 %s253, 1
      %s255 = scalar_select %p252, %s253, %s254
      %p258 = pneg %p252
      %p259 = scmp.eq.s32.totalorder %s23, 1
      %p260 = por %p258, %p259
      %p261 = scmp.ne.s32.totalorder %s253, %s256
      %p262 = scmp.eq.s32.totalorder %s23, 0
      %p263 = por %p261, %p262
      %p264 = scmp.ne.s32.totalorder %s253, %s256
      %p265 = scmp.eq.s32.totalorder %s28, 1
      %p266 = por %p264, %p265
      %p267 = scmp.ne.s32.totalorder %s256, %s257
      %p268 = scmp.eq.s32.totalorder %s28, 0
      %p269 = por %p267, %p268
      %p270 = scmp.ne.s32.totalorder %s256, %s257
      %p271 = scmp.eq.s32.totalorder %s29, 1
      %p272 = por %p270, %p271
      %p274 = scmp.ne.s32.totalorder %s257, %s273
      %p275 = scmp.eq.s32.totalorder %s29, 0
      %p276 = por %p274, %p275
      %p277 = scmp.le.s32.totalorder 1, %s23
      %p278 = scmp.lt.s32.totalorder %s23, 3
      %p279 = pnand %p277, %p278
      %p280 = pneg %p279
      // Predicated region
      $region9: #{eeg_feature_forward.1} parent=5 // pred_check
        _
      $region10: #{eeg_feature_forward.1} parent=5 // pred_check_branch
        %282 = sbr.rel (%p279) target = $region12
      $region11: #{eeg_feature_forward.1} parent=5 // pred_region
        %s283 = ssub.s32 %s23, 1
        // Predicated region
        $region13: #{eeg_feature_forward.1} parent=11 // pred_check
          %p284 = pneg %p70
        $region14: #{eeg_feature_forward.1} parent=11 // pred_check_branch
          %286 = sbr.rel (%p284) target = $region16
        $region15: #{eeg_feature_forward.1} parent=11 // pred_region
          _
        $region16: #{eeg_feature_forward.1} parent=11 // pred_fallthru
          _
        // Predicated region
        $region17: #{eeg_feature_forward.1} parent=11 // pred_check
          %p287 = pneg %p91
        $region18: #{eeg_feature_forward.1} parent=11 // pred_check_branch
          %289 = sbr.rel (%p287) target = $region20
        $region19: #{eeg_feature_forward.1} parent=11 // pred_region
          _
        $region20: #{eeg_feature_forward.1} parent=11 // pred_fallthru
          _
        // Predicated region
        $region21: #{eeg_feature_forward.1} parent=11 // pred_check
          %p290 = pneg %p112
        $region22: #{eeg_feature_forward.1} parent=11 // pred_check_branch
          %292 = sbr.rel (%p290) target = $region24
        $region23: #{eeg_feature_forward.1} parent=11 // pred_region
          _
        $region24: #{eeg_feature_forward.1} parent=11 // pred_fallthru
          _
        // Predicated region
        $region25: #{eeg_feature_forward.1} parent=11 // pred_check
          %p293 = pneg %p133
        $region26: #{eeg_feature_forward.1} parent=11 // pred_check_branch
          %295 = sbr.rel (%p293) target = $region28
        $region27: #{eeg_feature_forward.1} parent=11 // pred_region
          _
        $region28: #{eeg_feature_forward.1} parent=11 // pred_fallthru
          _
        // Predicated region
        $region29: #{eeg_feature_forward.1} parent=11 // pred_check
          %p296 = pneg %p154
        $region30: #{eeg_feature_forward.1} parent=11 // pred_check_branch
          %298 = sbr.rel (%p296) target = $region32
        $region31: #{eeg_feature_forward.1} parent=11 // pred_region
          _
        $region32: #{eeg_feature_forward.1} parent=11 // pred_fallthru
          _
        // Predicated region
        $region33: #{eeg_feature_forward.1} parent=11 // pred_check
          %p299 = pneg %p175
        $region34: #{eeg_feature_forward.1} parent=11 // pred_check_branch
          %301 = sbr.rel (%p299) target = $region36
        $region35: #{eeg_feature_forward.1} parent=11 // pred_region
          _
        $region36: #{eeg_feature_forward.1} parent=11 // pred_fallthru
          _
        // Predicated region
        $region37: #{eeg_feature_forward.1} parent=11 // pred_check
          %p302 = pneg %p196
        $region38: #{eeg_feature_forward.1} parent=11 // pred_check_branch
          %304 = sbr.rel (%p302) target = $region40
        $region39: #{eeg_feature_forward.1} parent=11 // pred_region
          _
        $region40: #{eeg_feature_forward.1} parent=11 // pred_fallthru
          _
        // Predicated region
        $region41: #{eeg_feature_forward.1} parent=11 // pred_check
          %p305 = pneg %p217
        $region42: #{eeg_feature_forward.1} parent=11 // pred_check_branch
          %307 = sbr.rel (%p305) target = $region44
        $region43: #{eeg_feature_forward.1} parent=11 // pred_region
          _
        $region44: #{eeg_feature_forward.1} parent=11 // pred_fallthru
          _
      $region12: #{eeg_feature_forward.1} parent=5 // pred_fallthru
        _
      %p308 = scmp.lt.s32.totalorder %s23, 2
      // Predicated region
      $region45: #{eeg_feature_forward.1} parent=5 // pred_check
        %p309 = pneg %p308
      $region46: #{eeg_feature_forward.1} parent=5 // pred_check_branch
        %311 = sbr.rel (%p309) target = $region48
      $region47: #{eeg_feature_forward.1} parent=5 // pred_region
        // Predicated region
        $region49: #{eeg_feature_forward.1} parent=47 // pred_check
          %p312 = pneg %p43
        $region50: #{eeg_feature_forward.1} parent=47 // pred_check_branch
          %314 = sbr.rel (%p312) target = $region52
        $region51: #{eeg_feature_forward.1} parent=47 // pred_region
          %p315 = scmp.lt.s32.totalorder %s23, 1
          %s316 = scalar_select %p315, %s23, 1
          %s317 = smul.addr %s316, 64
          %s318 = smul.addr %s317, 8
          %s319 = scalar_lea.vmem %s0, %s318
        $region52: #{eeg_feature_forward.1} parent=47 // pred_fallthru
          _
      $region48: #{eeg_feature_forward.1} parent=5 // pred_fallthru
        _
      %p320 = scmp.le.s32.totalorder 1, %s23
      %p321 = scmp.lt.s32.totalorder %s23, 3
      %p322 = pnand %p320, %p321
      %p323 = pneg %p322
      // Predicated region
      $region53: #{eeg_feature_forward.1} parent=5 // pred_check
        _
      $region54: #{eeg_feature_forward.1} parent=5 // pred_check_branch
        %325 = sbr.rel (%p322) target = $region56
      $region55: #{eeg_feature_forward.1} parent=5 // pred_region
        %s326 = ssub.s32 %s23, 1
        %p327 = scmp.lt.s32.totalorder %s28, 1
        %s328 = scalar_select %p327, %s28, 1
        %s329 = smul.addr %s328, 64
        %s330 = smul.addr %s329, 8
        %s331 = scalar_lea.vmem %s0, %s330
        %p332 = pneg %p49
        %p333 = pneg %p46
        %p334 = pneg %p70
        %p335 = pneg %p67
        %p336 = pneg %p91
        %p337 = pneg %p88
        %p338 = pneg %p112
        %p339 = pneg %p109
        %p340 = pneg %p133
        %p341 = pneg %p130
        %p342 = pneg %p154
        %p343 = pneg %p151
        %p344 = pneg %p175
        %p345 = pneg %p172
        %p346 = pneg %p196
        %p347 = pneg %p193
        %p348 = pneg %p217
        %p349 = pneg %p214
        %p350 = pneg %p243
        %p351 = pneg %p240
        %s352 = sand.u32 %s230, 1
        %s353 = scalar_lea.sflag [#allocation3], %s352
        %s354 = sand.u32 %s230, 1
        %s355 = smul.addr %s354, 8
        %s356 = scalar_lea.vmem [#allocation2], %s355
        %p357 = pneg %p269
        %p358 = pneg %p266
        %s359 = sand.u32 %s256, 1
        %s360 = scalar_lea.sflag [#allocation5], %s359
        %s361 = sand.u32 %s256, 1
        %s362 = smul.addr %s361, 16
        %s363 = scalar_lea.vmem [#allocation4], %s362
        %p364 = scmp.lt.s32.totalorder %s28, 1
        %s365 = scalar_select %p364, %s28, 1
        %s366 = smul.addr %s365, 64
        %s367 = smul.addr %s366, 8
        %s368 = scalar_lea.vmem %s0, %s367
        %v369 = vld [vmem:[%s368] sm:$0xff]
        %v370 = vld [vmem:[%s368 + $0x8] sm:$0xff]
        %v371 = vld [vmem:[%s368 + $0x10] sm:$0xff]
        %v372 = vld [vmem:[%s368 + $0x18] sm:$0xff]
        %v373 = vld [vmem:[%s368 + $0x20] sm:$0xff]
        %v374 = vld [vmem:[%s368 + $0x28] sm:$0xff]
        %v375 = vld [vmem:[%s368 + $0x30] sm:$0xff]
        %v376 = vld [vmem:[%s368 + $0x38] sm:$0xff]
        %v377 = vld [vmem:[%s368 + $0x40] sm:$0xff]
        %v378 = vld [vmem:[%s368 + $0x48] sm:$0xff]
        %v379 = vld [vmem:[%s368 + $0x50] sm:$0xff]
        %v380 = vld [vmem:[%s368 + $0x58] sm:$0xff]
        %v381 = vld [vmem:[%s368 + $0x60] sm:$0xff]
        %v382 = vld [vmem:[%s368 + $0x68] sm:$0xff]
        %v383 = vld [vmem:[%s368 + $0x70] sm:$0xff]
        %v384 = vld [vmem:[%s368 + $0x78] sm:$0xff]
        %v385 = vld [vmem:[%s368 + $0x80] sm:$0xff]
        %v386 = vld [vmem:[%s368 + $0x88] sm:$0xff]
        %v387 = vld [vmem:[%s368 + $0x90] sm:$0xff]
        %v388 = vld [vmem:[%s368 + $0x98] sm:$0xff]
        %v389 = vld [vmem:[%s368 + $0xa0] sm:$0xff]
        %v390 = vld [vmem:[%s368 + $0xa8] sm:$0xff]
        %v391 = vld [vmem:[%s368 + $0xb0] sm:$0xff]
        %v392 = vld [vmem:[%s368 + $0xb8] sm:$0xff]
        %v393 = vld [vmem:[%s368 + $0xc0] sm:$0xff]
        %v394 = vld [vmem:[%s368 + $0xc8] sm:$0xff]
        %v395 = vld [vmem:[%s368 + $0xd0] sm:$0xff]
        %v396 = vld [vmem:[%s368 + $0xd8] sm:$0xff]
        %v397 = vld [vmem:[%s368 + $0xe0] sm:$0xff]
        %v398 = vld [vmem:[%s368 + $0xe8] sm:$0xff]
        %v399 = vld [vmem:[%s368 + $0xf0] sm:$0xff]
        %v400 = vld [vmem:[%s368 + $0xf8] sm:$0xff]
        %v401 = vld [vmem:[%s368 + $0x100] sm:$0xff]
        %v402 = vld [vmem:[%s368 + $0x108] sm:$0xff]
        %v403 = vld [vmem:[%s368 + $0x110] sm:$0xff]
        %v404 = vld [vmem:[%s368 + $0x118] sm:$0xff]
        %v405 = vld [vmem:[%s368 + $0x120] sm:$0xff]
        %v406 = vld [vmem:[%s368 + $0x128] sm:$0xff]
        %v407 = vld [vmem:[%s368 + $0x130] sm:$0xff]
        %v408 = vld [vmem:[%s368 + $0x138] sm:$0xff]
        %v409 = vld [vmem:[%s368 + $0x140] sm:$0xff]
        %v410 = vld [vmem:[%s368 + $0x148] sm:$0xff]
        %v411 = vld [vmem:[%s368 + $0x150] sm:$0xff]
        %v412 = vld [vmem:[%s368 + $0x158] sm:$0xff]
        %v413 = vld [vmem:[%s368 + $0x160] sm:$0xff]
        %v414 = vld [vmem:[%s368 + $0x168] sm:$0xff]
        %v415 = vld [vmem:[%s368 + $0x170] sm:$0xff]
        %v416 = vld [vmem:[%s368 + $0x178] sm:$0xff]
        %v417 = vld [vmem:[%s368 + $0x180] sm:$0xff]
        %v418 = vld [vmem:[%s368 + $0x188] sm:$0xff]
        %v419 = vld [vmem:[%s368 + $0x190] sm:$0xff]
        %v420 = vld [vmem:[%s368 + $0x198] sm:$0xff]
        %v421 = vld [vmem:[%s368 + $0x1a0] sm:$0xff]
        %v422 = vld [vmem:[%s368 + $0x1a8] sm:$0xff]
        %v423 = vld [vmem:[%s368 + $0x1b0] sm:$0xff]
        %v424 = vld [vmem:[%s368 + $0x1b8] sm:$0xff]
        %v425 = vld [vmem:[%s368 + $0x1c0] sm:$0xff]
        %v426 = vld [vmem:[%s368 + $0x1c8] sm:$0xff]
        %v427 = vld [vmem:[%s368 + $0x1d0] sm:$0xff]
        %v428 = vld [vmem:[%s368 + $0x1d8] sm:$0xff]
        %v429 = vld [vmem:[%s368 + $0x1e0] sm:$0xff]
        %v430 = vld [vmem:[%s368 + $0x1e8] sm:$0xff]
        %v431 = vld [vmem:[%s368 + $0x1f0] sm:$0xff]
        %v432 = vld [vmem:[%s368 + $0x1f8] sm:$0xff]
        %v433 = vld [vmem:[%s1] sm:$0xff]
        %v434 = vld [vmem:[%s1 + $0x8] sm:$0xff]
        %v435 = vld [vmem:[%s1 + $0x10] sm:$0xff]
        %v436 = vld [vmem:[%s1 + $0x18] sm:$0xff]
        %v437 = vld [vmem:[%s1 + $0x20] sm:$0xff]
        %v438 = vld [vmem:[%s1 + $0x28] sm:$0xff]
        %v439 = vld [vmem:[%s1 + $0x30] sm:$0xff]
        %v440 = vld [vmem:[%s1 + $0x38] sm:$0xff]
        %v441 = vld [vmem:[%s1 + $0x40] sm:$0xff]
        %v442 = vld [vmem:[%s1 + $0x48] sm:$0xff]
        %v443 = vld [vmem:[%s1 + $0x50] sm:$0xff]
        %v444 = vld [vmem:[%s1 + $0x58] sm:$0xff]
        %v445 = vld [vmem:[%s1 + $0x60] sm:$0xff]
        %v446 = vld [vmem:[%s1 + $0x68] sm:$0xff]
        %v447 = vld [vmem:[%s1 + $0x70] sm:$0xff]
        %v448 = vld [vmem:[%s1 + $0x78] sm:$0xff]
        %v449 = vld [vmem:[%s1 + $0x80] sm:$0xff]
        %v450 = vld [vmem:[%s1 + $0x88] sm:$0xff]
        %v451 = vld [vmem:[%s1 + $0x90] sm:$0xff]
        %v452 = vld [vmem:[%s1 + $0x98] sm:$0xff]
        %v453 = vld [vmem:[%s1 + $0xa0] sm:$0xff]
        %v454 = vld [vmem:[%s1 + $0xa8] sm:$0xff]
        %v455 = vld [vmem:[%s1 + $0xb0] sm:$0xff]
        %v456 = vld [vmem:[%s1 + $0xb8] sm:$0xff]
        %v457 = vld [vmem:[%s1 + $0xc0] sm:$0xff]
        %v458 = vld [vmem:[%s1 + $0xc8] sm:$0xff]
        %v459 = vld [vmem:[%s1 + $0xd0] sm:$0xff]
        %v460 = vld [vmem:[%s1 + $0xd8] sm:$0xff]
        %v461 = vld [vmem:[%s1 + $0xe0] sm:$0xff]
        %v462 = vld [vmem:[%s1 + $0xe8] sm:$0xff]
        %v463 = vld [vmem:[%s1 + $0xf0] sm:$0xff]
        %v464 = vld [vmem:[%s1 + $0xf8] sm:$0xff]
        %v465 = vld [vmem:[%s1 + $0x100] sm:$0xff]
        %v466 = vld [vmem:[%s1 + $0x108] sm:$0xff]
        %v467 = vld [vmem:[%s1 + $0x110] sm:$0xff]
        %v468 = vld [vmem:[%s1 + $0x118] sm:$0xff]
        %v469 = vld [vmem:[%s1 + $0x120] sm:$0xff]
        %v470 = vld [vmem:[%s1 + $0x128] sm:$0xff]
        %v471 = vld [vmem:[%s1 + $0x130] sm:$0xff]
        %v472 = vld [vmem:[%s1 + $0x138] sm:$0xff]
        %v473 = vld [vmem:[%s1 + $0x140] sm:$0xff]
        %v474 = vld [vmem:[%s1 + $0x148] sm:$0xff]
        %v475 = vld [vmem:[%s1 + $0x150] sm:$0xff]
        %v476 = vld [vmem:[%s1 + $0x158] sm:$0xff]
        %v477 = vld [vmem:[%s1 + $0x160] sm:$0xff]
        %v478 = vld [vmem:[%s1 + $0x168] sm:$0xff]
        %v479 = vld [vmem:[%s1 + $0x170] sm:$0xff]
        %v480 = vld [vmem:[%s1 + $0x178] sm:$0xff]
        %v481 = vld [vmem:[%s1 + $0x180] sm:$0xff]
        %v482 = vld [vmem:[%s1 + $0x188] sm:$0xff]
        %v483 = vld [vmem:[%s1 + $0x190] sm:$0xff]
        %v484 = vld [vmem:[%s1 + $0x198] sm:$0xff]
        %v485 = vld [vmem:[%s1 + $0x1a0] sm:$0xff]
        %v486 = vld [vmem:[%s1 + $0x1a8] sm:$0xff]
        %v487 = vld [vmem:[%s1 + $0x1b0] sm:$0xff]
        %v488 = vld [vmem:[%s1 + $0x1b8] sm:$0xff]
        %v489 = vld [vmem:[%s1 + $0x1c0] sm:$0xff]
        %v490 = vld [vmem:[%s1 + $0x1c8] sm:$0xff]
        %v491 = vld [vmem:[%s1 + $0x1d0] sm:$0xff]
        %v492 = vld [vmem:[%s1 + $0x1d8] sm:$0xff]
        %v493 = vld [vmem:[%s1 + $0x1e0] sm:$0xff]
        %v494 = vld [vmem:[%s1 + $0x1e8] sm:$0xff]
        %v495 = vld [vmem:[%s1 + $0x1f0] sm:$0xff]
        %v496 = vld [vmem:[%s1 + $0x1f8] sm:$0xff]
        %v497 = vld [vmem:[%s1 + $0x200] sm:$0xff]
        %v498 = vld [vmem:[%s1 + $0x208] sm:$0xff]
        %v499 = vld [vmem:[%s1 + $0x210] sm:$0xff]
        %v500 = vld [vmem:[%s1 + $0x218] sm:$0xff]
        %v501 = vld [vmem:[%s1 + $0x220] sm:$0xff]
        %v502 = vld [vmem:[%s1 + $0x228] sm:$0xff]
        %v503 = vld [vmem:[%s1 + $0x230] sm:$0xff]
        %v504 = vld [vmem:[%s1 + $0x238] sm:$0xff]
        %v505 = vld [vmem:[%s1 + $0x240] sm:$0xff]
        %v506 = vld [vmem:[%s1 + $0x248] sm:$0xff]
        %v507 = vld [vmem:[%s1 + $0x250] sm:$0xff]
        %v508 = vld [vmem:[%s1 + $0x258] sm:$0xff]
        %v509 = vld [vmem:[%s1 + $0x260] sm:$0xff]
        %v510 = vld [vmem:[%s1 + $0x268] sm:$0xff]
        %v511 = vld [vmem:[%s1 + $0x270] sm:$0xff]
        %v512 = vld [vmem:[%s1 + $0x278] sm:$0xff]
        %v513 = vld [vmem:[%s1 + $0x280] sm:$0xff]
        %v514 = vld [vmem:[%s1 + $0x288] sm:$0xff]
        %v515 = vld [vmem:[%s1 + $0x290] sm:$0xff]
        %v516 = vld [vmem:[%s1 + $0x298] sm:$0xff]
        %v517 = vld [vmem:[%s1 + $0x2a0] sm:$0xff]
        %v518 = vld [vmem:[%s1 + $0x2a8] sm:$0xff]
        %v519 = vld [vmem:[%s1 + $0x2b0] sm:$0xff]
        %v520 = vld [vmem:[%s1 + $0x2b8] sm:$0xff]
        %v521 = vld [vmem:[%s1 + $0x2c0] sm:$0xff]
        %v522 = vld [vmem:[%s1 + $0x2c8] sm:$0xff]
        %v523 = vld [vmem:[%s1 + $0x2d0] sm:$0xff]
        %v524 = vld [vmem:[%s1 + $0x2d8] sm:$0xff]
        %v525 = vld [vmem:[%s1 + $0x2e0] sm:$0xff]
        %v526 = vld [vmem:[%s1 + $0x2e8] sm:$0xff]
        %v527 = vld [vmem:[%s1 + $0x2f0] sm:$0xff]
        %v528 = vld [vmem:[%s1 + $0x2f8] sm:$0xff]
        %v529 = vld [vmem:[%s1 + $0x300] sm:$0xff]
        %v530 = vld [vmem:[%s1 + $0x308] sm:$0xff]
        %v531 = vld [vmem:[%s1 + $0x310] sm:$0xff]
        %v532 = vld [vmem:[%s1 + $0x318] sm:$0xff]
        %v533 = vld [vmem:[%s1 + $0x320] sm:$0xff]
        %v534 = vld [vmem:[%s1 + $0x328] sm:$0xff]
        %v535 = vld [vmem:[%s1 + $0x330] sm:$0xff]
        %v536 = vld [vmem:[%s1 + $0x338] sm:$0xff]
        %v537 = vld [vmem:[%s1 + $0x340] sm:$0xff]
        %v538 = vld [vmem:[%s1 + $0x348] sm:$0xff]
        %v539 = vld [vmem:[%s1 + $0x350] sm:$0xff]
        %v540 = vld [vmem:[%s1 + $0x358] sm:$0xff]
        %v541 = vld [vmem:[%s1 + $0x360] sm:$0xff]
        %v542 = vld [vmem:[%s1 + $0x368] sm:$0xff]
        %v543 = vld [vmem:[%s1 + $0x370] sm:$0xff]
        %v544 = vld [vmem:[%s1 + $0x378] sm:$0xff]
        %v545 = vld [vmem:[%s1 + $0x380] sm:$0xff]
        %v546 = vld [vmem:[%s1 + $0x388] sm:$0xff]
        %v547 = vld [vmem:[%s1 + $0x390] sm:$0xff]
        %v548 = vld [vmem:[%s1 + $0x398] sm:$0xff]
        %v549 = vld [vmem:[%s1 + $0x3a0] sm:$0xff]
        %v550 = vld [vmem:[%s1 + $0x3a8] sm:$0xff]
        %v551 = vld [vmem:[%s1 + $0x3b0] sm:$0xff]
        %v552 = vld [vmem:[%s1 + $0x3b8] sm:$0xff]
        %v553 = vld [vmem:[%s1 + $0x3c0] sm:$0xff]
        %v554 = vld [vmem:[%s1 + $0x3c8] sm:$0xff]
        %v555 = vld [vmem:[%s1 + $0x3d0] sm:$0xff]
        %v556 = vld [vmem:[%s1 + $0x3d8] sm:$0xff]
        %v557 = vld [vmem:[%s1 + $0x3e0] sm:$0xff]
        %v558 = vld [vmem:[%s1 + $0x3e8] sm:$0xff]
        %v559 = vld [vmem:[%s1 + $0x3f0] sm:$0xff]
        %v560 = vld [vmem:[%s1 + $0x3f8] sm:$0xff]
        %v561 = vld [vmem:[%s1 + $0x400] sm:$0xff]
        %v562 = vld [vmem:[%s1 + $0x408] sm:$0xff]
        %v563 = vld [vmem:[%s1 + $0x410] sm:$0xff]
        %v564 = vld [vmem:[%s1 + $0x418] sm:$0xff]
        %v565 = vld [vmem:[%s1 + $0x420] sm:$0xff]
        %v566 = vld [vmem:[%s1 + $0x428] sm:$0xff]
        %v567 = vld [vmem:[%s1 + $0x430] sm:$0xff]
        %v568 = vld [vmem:[%s1 + $0x438] sm:$0xff]
        %v569 = vld [vmem:[%s1 + $0x440] sm:$0xff]
        %v570 = vld [vmem:[%s1 + $0x448] sm:$0xff]
        %v571 = vld [vmem:[%s1 + $0x450] sm:$0xff]
        %v572 = vld [vmem:[%s1 + $0x458] sm:$0xff]
        %v573 = vld [vmem:[%s1 + $0x460] sm:$0xff]
        %v574 = vld [vmem:[%s1 + $0x468] sm:$0xff]
        %v575 = vld [vmem:[%s1 + $0x470] sm:$0xff]
        %v576 = vld [vmem:[%s1 + $0x478] sm:$0xff]
        %v577 = vld [vmem:[%s1 + $0x480] sm:$0xff]
        %v578 = vld [vmem:[%s1 + $0x488] sm:$0xff]
        %v579 = vld [vmem:[%s1 + $0x490] sm:$0xff]
        %v580 = vld [vmem:[%s1 + $0x498] sm:$0xff]
        %v581 = vld [vmem:[%s1 + $0x4a0] sm:$0xff]
        %v582 = vld [vmem:[%s1 + $0x4a8] sm:$0xff]
        %v583 = vld [vmem:[%s1 + $0x4b0] sm:$0xff]
        %v584 = vld [vmem:[%s1 + $0x4b8] sm:$0xff]
        %v585 = vld [vmem:[%s1 + $0x4c0] sm:$0xff]
        %v586 = vld [vmem:[%s1 + $0x4c8] sm:$0xff]
        %v587 = vld [vmem:[%s1 + $0x4d0] sm:$0xff]
        %v588 = vld [vmem:[%s1 + $0x4d8] sm:$0xff]
        %v589 = vld [vmem:[%s1 + $0x4e0] sm:$0xff]
        %v590 = vld [vmem:[%s1 + $0x4e8] sm:$0xff]
        %v591 = vld [vmem:[%s1 + $0x4f0] sm:$0xff]
        %v592 = vld [vmem:[%s1 + $0x4f8] sm:$0xff]
        %v593 = vld [vmem:[%s1 + $0x500] sm:$0xff]
        %v594 = vld [vmem:[%s1 + $0x508] sm:$0xff]
        %v595 = vld [vmem:[%s1 + $0x510] sm:$0xff]
        %v596 = vld [vmem:[%s1 + $0x518] sm:$0xff]
        %v597 = vld [vmem:[%s1 + $0x520] sm:$0xff]
        %v598 = vld [vmem:[%s1 + $0x528] sm:$0xff]
        %v599 = vld [vmem:[%s1 + $0x530] sm:$0xff]
        %v600 = vld [vmem:[%s1 + $0x538] sm:$0xff]
        %v601 = vld [vmem:[%s1 + $0x540] sm:$0xff]
        %v602 = vld [vmem:[%s1 + $0x548] sm:$0xff]
        %v603 = vld [vmem:[%s1 + $0x550] sm:$0xff]
        %v604 = vld [vmem:[%s1 + $0x558] sm:$0xff]
        %v605 = vld [vmem:[%s1 + $0x560] sm:$0xff]
        %v606 = vld [vmem:[%s1 + $0x568] sm:$0xff]
        %v607 = vld [vmem:[%s1 + $0x570] sm:$0xff]
        %v608 = vld [vmem:[%s1 + $0x578] sm:$0xff]
        %v609 = vld [vmem:[%s1 + $0x580] sm:$0xff]
        %v610 = vld [vmem:[%s1 + $0x588] sm:$0xff]
        %v611 = vld [vmem:[%s1 + $0x590] sm:$0xff]
        %v612 = vld [vmem:[%s1 + $0x598] sm:$0xff]
        %v613 = vld [vmem:[%s1 + $0x5a0] sm:$0xff]
        %v614 = vld [vmem:[%s1 + $0x5a8] sm:$0xff]
        %v615 = vld [vmem:[%s1 + $0x5b0] sm:$0xff]
        %v616 = vld [vmem:[%s1 + $0x5b8] sm:$0xff]
        %v617 = vld [vmem:[%s1 + $0x5c0] sm:$0xff]
        %v618 = vld [vmem:[%s1 + $0x5c8] sm:$0xff]
        %v619 = vld [vmem:[%s1 + $0x5d0] sm:$0xff]
        %v620 = vld [vmem:[%s1 + $0x5d8] sm:$0xff]
        %v621 = vld [vmem:[%s1 + $0x5e0] sm:$0xff]
        %v622 = vld [vmem:[%s1 + $0x5e8] sm:$0xff]
        %v623 = vld [vmem:[%s1 + $0x5f0] sm:$0xff]
        %v624 = vld [vmem:[%s1 + $0x5f8] sm:$0xff]
        %v625 = vld [vmem:[%s1 + $0x600] sm:$0xff]
        %v626 = vld [vmem:[%s1 + $0x608] sm:$0xff]
        %v627 = vld [vmem:[%s1 + $0x610] sm:$0xff]
        %v628 = vld [vmem:[%s1 + $0x618] sm:$0xff]
        %v629 = vld [vmem:[%s1 + $0x620] sm:$0xff]
        %v630 = vld [vmem:[%s1 + $0x628] sm:$0xff]
        %v631 = vld [vmem:[%s1 + $0x630] sm:$0xff]
        %v632 = vld [vmem:[%s1 + $0x638] sm:$0xff]
        %v633 = vld [vmem:[%s1 + $0x640] sm:$0xff]
        %v634 = vld [vmem:[%s1 + $0x648] sm:$0xff]
        %v635 = vld [vmem:[%s1 + $0x650] sm:$0xff]
        %v636 = vld [vmem:[%s1 + $0x658] sm:$0xff]
        %v637 = vld [vmem:[%s1 + $0x660] sm:$0xff]
        %v638 = vld [vmem:[%s1 + $0x668] sm:$0xff]
        %v639 = vld [vmem:[%s1 + $0x670] sm:$0xff]
        %v640 = vld [vmem:[%s1 + $0x678] sm:$0xff]
        %v641 = vld [vmem:[%s1 + $0x680] sm:$0xff]
        %v642 = vld [vmem:[%s1 + $0x688] sm:$0xff]
        %v643 = vld [vmem:[%s1 + $0x690] sm:$0xff]
        %v644 = vld [vmem:[%s1 + $0x698] sm:$0xff]
        %v645 = vld [vmem:[%s1 + $0x6a0] sm:$0xff]
        %v646 = vld [vmem:[%s1 + $0x6a8] sm:$0xff]
        %v647 = vld [vmem:[%s1 + $0x6b0] sm:$0xff]
        %v648 = vld [vmem:[%s1 + $0x6b8] sm:$0xff]
        %v649 = vld [vmem:[%s1 + $0x6c0] sm:$0xff]
        %v650 = vld [vmem:[%s1 + $0x6c8] sm:$0xff]
        %v651 = vld [vmem:[%s1 + $0x6d0] sm:$0xff]
        %v652 = vld [vmem:[%s1 + $0x6d8] sm:$0xff]
        %v653 = vld [vmem:[%s1 + $0x6e0] sm:$0xff]
        %v654 = vld [vmem:[%s1 + $0x6e8] sm:$0xff]
        %v655 = vld [vmem:[%s1 + $0x6f0] sm:$0xff]
        %v656 = vld [vmem:[%s1 + $0x6f8] sm:$0xff]
        %v657 = vld [vmem:[%s1 + $0x700] sm:$0xff]
        %v658 = vld [vmem:[%s1 + $0x708] sm:$0xff]
        %v659 = vld [vmem:[%s1 + $0x710] sm:$0xff]
        %v660 = vld [vmem:[%s1 + $0x718] sm:$0xff]
        %v661 = vld [vmem:[%s1 + $0x720] sm:$0xff]
        %v662 = vld [vmem:[%s1 + $0x728] sm:$0xff]
        %v663 = vld [vmem:[%s1 + $0x730] sm:$0xff]
        %v664 = vld [vmem:[%s1 + $0x738] sm:$0xff]
        %v665 = vld [vmem:[%s1 + $0x740] sm:$0xff]
        %v666 = vld [vmem:[%s1 + $0x748] sm:$0xff]
        %v667 = vld [vmem:[%s1 + $0x750] sm:$0xff]
        %v668 = vld [vmem:[%s1 + $0x758] sm:$0xff]
        %v669 = vld [vmem:[%s1 + $0x760] sm:$0xff]
        %v670 = vld [vmem:[%s1 + $0x768] sm:$0xff]
        %v671 = vld [vmem:[%s1 + $0x770] sm:$0xff]
        %v672 = vld [vmem:[%s1 + $0x778] sm:$0xff]
        %v673 = vld [vmem:[%s1 + $0x780] sm:$0xff]
        %v674 = vld [vmem:[%s1 + $0x788] sm:$0xff]
        %v675 = vld [vmem:[%s1 + $0x790] sm:$0xff]
        %v676 = vld [vmem:[%s1 + $0x798] sm:$0xff]
        %v677 = vld [vmem:[%s1 + $0x7a0] sm:$0xff]
        %v678 = vld [vmem:[%s1 + $0x7a8] sm:$0xff]
        %v679 = vld [vmem:[%s1 + $0x7b0] sm:$0xff]
        %v680 = vld [vmem:[%s1 + $0x7b8] sm:$0xff]
        %v681 = vld [vmem:[%s1 + $0x7c0] sm:$0xff]
        %v682 = vld [vmem:[%s1 + $0x7c8] sm:$0xff]
        %v683 = vld [vmem:[%s1 + $0x7d0] sm:$0xff]
        %v684 = vld [vmem:[%s1 + $0x7d8] sm:$0xff]
        %v685 = vld [vmem:[%s1 + $0x7e0] sm:$0xff]
        %v686 = vld [vmem:[%s1 + $0x7e8] sm:$0xff]
        %v687 = vld [vmem:[%s1 + $0x7f0] sm:$0xff]
        %v688 = vld [vmem:[%s1 + $0x7f8] sm:$0xff]
        %v689 = vld [vmem:[%s1 + $0x800] sm:$0xff]
        %v690 = vld [vmem:[%s1 + $0x808] sm:$0xff]
        %v691 = vld [vmem:[%s1 + $0x810] sm:$0xff]
        %v692 = vld [vmem:[%s1 + $0x818] sm:$0xff]
        %v693 = vld [vmem:[%s1 + $0x820] sm:$0xff]
        %v694 = vld [vmem:[%s1 + $0x828] sm:$0xff]
        %v695 = vld [vmem:[%s1 + $0x830] sm:$0xff]
        %v696 = vld [vmem:[%s1 + $0x838] sm:$0xff]
        %v697 = vld [vmem:[%s1 + $0x840] sm:$0xff]
        %v698 = vld [vmem:[%s1 + $0x848] sm:$0xff]
        %v699 = vld [vmem:[%s1 + $0x850] sm:$0xff]
        %v700 = vld [vmem:[%s1 + $0x858] sm:$0xff]
        %v701 = vld [vmem:[%s1 + $0x860] sm:$0xff]
        %v702 = vld [vmem:[%s1 + $0x868] sm:$0xff]
        %v703 = vld [vmem:[%s1 + $0x870] sm:$0xff]
        %v704 = vld [vmem:[%s1 + $0x878] sm:$0xff]
        %v705 = vld [vmem:[%s1 + $0x880] sm:$0xff]
        %v706 = vld [vmem:[%s1 + $0x888] sm:$0xff]
        %v707 = vld [vmem:[%s1 + $0x890] sm:$0xff]
        %v708 = vld [vmem:[%s1 + $0x898] sm:$0xff]
        %v709 = vld [vmem:[%s1 + $0x8a0] sm:$0xff]
        %v710 = vld [vmem:[%s1 + $0x8a8] sm:$0xff]
        %v711 = vld [vmem:[%s1 + $0x8b0] sm:$0xff]
        %v712 = vld [vmem:[%s1 + $0x8b8] sm:$0xff]
        %v713 = vld [vmem:[%s1 + $0x8c0] sm:$0xff]
        %v714 = vld [vmem:[%s1 + $0x8c8] sm:$0xff]
        %v715 = vld [vmem:[%s1 + $0x8d0] sm:$0xff]
        %v716 = vld [vmem:[%s1 + $0x8d8] sm:$0xff]
        %v717 = vld [vmem:[%s1 + $0x8e0] sm:$0xff]
        %v718 = vld [vmem:[%s1 + $0x8e8] sm:$0xff]
        %v719 = vld [vmem:[%s1 + $0x8f0] sm:$0xff]
        %v720 = vld [vmem:[%s1 + $0x8f8] sm:$0xff]
        %v721 = vld [vmem:[%s1 + $0x900] sm:$0xff]
        %v722 = vld [vmem:[%s1 + $0x908] sm:$0xff]
        %v723 = vld [vmem:[%s1 + $0x910] sm:$0xff]
        %v724 = vld [vmem:[%s1 + $0x918] sm:$0xff]
        %v725 = vld [vmem:[%s1 + $0x920] sm:$0xff]
        %v726 = vld [vmem:[%s1 + $0x928] sm:$0xff]
        %v727 = vld [vmem:[%s1 + $0x930] sm:$0xff]
        %v728 = vld [vmem:[%s1 + $0x938] sm:$0xff]
        %v729 = vld [vmem:[%s1 + $0x940] sm:$0xff]
        %v730 = vld [vmem:[%s1 + $0x948] sm:$0xff]
        %v731 = vld [vmem:[%s1 + $0x950] sm:$0xff]
        %v732 = vld [vmem:[%s1 + $0x958] sm:$0xff]
        %v733 = vld [vmem:[%s1 + $0x960] sm:$0xff]
        %v734 = vld [vmem:[%s1 + $0x968] sm:$0xff]
        %v735 = vld [vmem:[%s1 + $0x970] sm:$0xff]
        %v736 = vld [vmem:[%s1 + $0x978] sm:$0xff]
        %v737 = vld [vmem:[%s1 + $0x980] sm:$0xff]
        %v738 = vld [vmem:[%s1 + $0x988] sm:$0xff]
        %v739 = vld [vmem:[%s1 + $0x990] sm:$0xff]
        %v740 = vld [vmem:[%s1 + $0x998] sm:$0xff]
        %v741 = vld [vmem:[%s1 + $0x9a0] sm:$0xff]
        %v742 = vld [vmem:[%s1 + $0x9a8] sm:$0xff]
        %v743 = vld [vmem:[%s1 + $0x9b0] sm:$0xff]
        %v744 = vld [vmem:[%s1 + $0x9b8] sm:$0xff]
        %v745 = vld [vmem:[%s1 + $0x9c0] sm:$0xff]
        %v746 = vld [vmem:[%s1 + $0x9c8] sm:$0xff]
        %v747 = vld [vmem:[%s1 + $0x9d0] sm:$0xff]
        %v748 = vld [vmem:[%s1 + $0x9d8] sm:$0xff]
        %v749 = vld [vmem:[%s1 + $0x9e0] sm:$0xff]
        %v750 = vld [vmem:[%s1 + $0x9e8] sm:$0xff]
        %v751 = vld [vmem:[%s1 + $0x9f0] sm:$0xff]
        %v752 = vld [vmem:[%s1 + $0x9f8] sm:$0xff]
        %v753 = vld [vmem:[%s1 + $0xa00] sm:$0xff]
        %v754 = vld [vmem:[%s1 + $0xa08] sm:$0xff]
        %v755 = vld [vmem:[%s1 + $0xa10] sm:$0xff]
        %v756 = vld [vmem:[%s1 + $0xa18] sm:$0xff]
        %v757 = vld [vmem:[%s1 + $0xa20] sm:$0xff]
        %v758 = vld [vmem:[%s1 + $0xa28] sm:$0xff]
        %v759 = vld [vmem:[%s1 + $0xa30] sm:$0xff]
        %v760 = vld [vmem:[%s1 + $0xa38] sm:$0xff]
        %v761 = vld [vmem:[%s1 + $0xa40] sm:$0xff]
        %v762 = vld [vmem:[%s1 + $0xa48] sm:$0xff]
        %v763 = vld [vmem:[%s1 + $0xa50] sm:$0xff]
        %v764 = vld [vmem:[%s1 + $0xa58] sm:$0xff]
        %v765 = vld [vmem:[%s1 + $0xa60] sm:$0xff]
        %v766 = vld [vmem:[%s1 + $0xa68] sm:$0xff]
        %v767 = vld [vmem:[%s1 + $0xa70] sm:$0xff]
        %v768 = vld [vmem:[%s1 + $0xa78] sm:$0xff]
        %v769 = vld [vmem:[%s1 + $0xa80] sm:$0xff]
        %v770 = vld [vmem:[%s1 + $0xa88] sm:$0xff]
        %v771 = vld [vmem:[%s1 + $0xa90] sm:$0xff]
        %v772 = vld [vmem:[%s1 + $0xa98] sm:$0xff]
        %v773 = vld [vmem:[%s1 + $0xaa0] sm:$0xff]
        %v774 = vld [vmem:[%s1 + $0xaa8] sm:$0xff]
        %v775 = vld [vmem:[%s1 + $0xab0] sm:$0xff]
        %v776 = vld [vmem:[%s1 + $0xab8] sm:$0xff]
        %v777 = vld [vmem:[%s1 + $0xac0] sm:$0xff]
        %v778 = vld [vmem:[%s1 + $0xac8] sm:$0xff]
        %v779 = vld [vmem:[%s1 + $0xad0] sm:$0xff]
        %v780 = vld [vmem:[%s1 + $0xad8] sm:$0xff]
        %v781 = vld [vmem:[%s1 + $0xae0] sm:$0xff]
        %v782 = vld [vmem:[%s1 + $0xae8] sm:$0xff]
        %v783 = vld [vmem:[%s1 + $0xaf0] sm:$0xff]
        %v784 = vld [vmem:[%s1 + $0xaf8] sm:$0xff]
        %v785 = vld [vmem:[%s1 + $0xb00] sm:$0xff]
        %v786 = vld [vmem:[%s1 + $0xb08] sm:$0xff]
        %v787 = vld [vmem:[%s1 + $0xb10] sm:$0xff]
        %v788 = vld [vmem:[%s1 + $0xb18] sm:$0xff]
        %v789 = vld [vmem:[%s1 + $0xb20] sm:$0xff]
        %v790 = vld [vmem:[%s1 + $0xb28] sm:$0xff]
        %v791 = vld [vmem:[%s1 + $0xb30] sm:$0xff]
        %v792 = vld [vmem:[%s1 + $0xb38] sm:$0xff]
        %v793 = vld [vmem:[%s1 + $0xb40] sm:$0xff]
        %v794 = vld [vmem:[%s1 + $0xb48] sm:$0xff]
        %v795 = vld [vmem:[%s1 + $0xb50] sm:$0xff]
        %v796 = vld [vmem:[%s1 + $0xb58] sm:$0xff]
        %v797 = vld [vmem:[%s1 + $0xb60] sm:$0xff]
        %v798 = vld [vmem:[%s1 + $0xb68] sm:$0xff]
        %v799 = vld [vmem:[%s1 + $0xb70] sm:$0xff]
        %v800 = vld [vmem:[%s1 + $0xb78] sm:$0xff]
        %v801 = vld [vmem:[%s1 + $0xb80] sm:$0xff]
        %v802 = vld [vmem:[%s1 + $0xb88] sm:$0xff]
        %v803 = vld [vmem:[%s1 + $0xb90] sm:$0xff]
        %v804 = vld [vmem:[%s1 + $0xb98] sm:$0xff]
        %v805 = vld [vmem:[%s1 + $0xba0] sm:$0xff]
        %v806 = vld [vmem:[%s1 + $0xba8] sm:$0xff]
        %v807 = vld [vmem:[%s1 + $0xbb0] sm:$0xff]
        %v808 = vld [vmem:[%s1 + $0xbb8] sm:$0xff]
        %v809 = vld [vmem:[%s1 + $0xbc0] sm:$0xff]
        %v810 = vld [vmem:[%s1 + $0xbc8] sm:$0xff]
        %v811 = vld [vmem:[%s1 + $0xbd0] sm:$0xff]
        %v812 = vld [vmem:[%s1 + $0xbd8] sm:$0xff]
        %v813 = vld [vmem:[%s1 + $0xbe0] sm:$0xff]
        %v814 = vld [vmem:[%s1 + $0xbe8] sm:$0xff]
        %v815 = vld [vmem:[%s1 + $0xbf0] sm:$0xff]
        %v816 = vld [vmem:[%s1 + $0xbf8] sm:$0xff]
        %v817 = vld [vmem:[%s1 + $0xc00] sm:$0xff]
        %v818 = vld [vmem:[%s1 + $0xc08] sm:$0xff]
        %v819 = vld [vmem:[%s1 + $0xc10] sm:$0xff]
        %v820 = vld [vmem:[%s1 + $0xc18] sm:$0xff]
        %v821 = vld [vmem:[%s1 + $0xc20] sm:$0xff]
        %v822 = vld [vmem:[%s1 + $0xc28] sm:$0xff]
        %v823 = vld [vmem:[%s1 + $0xc30] sm:$0xff]
        %v824 = vld [vmem:[%s1 + $0xc38] sm:$0xff]
        %v825 = vld [vmem:[%s1 + $0xc40] sm:$0xff]
        %v826 = vld [vmem:[%s1 + $0xc48] sm:$0xff]
        %v827 = vld [vmem:[%s1 + $0xc50] sm:$0xff]
        %v828 = vld [vmem:[%s1 + $0xc58] sm:$0xff]
        %v829 = vld [vmem:[%s1 + $0xc60] sm:$0xff]
        %v830 = vld [vmem:[%s1 + $0xc68] sm:$0xff]
        %v831 = vld [vmem:[%s1 + $0xc70] sm:$0xff]
        %v832 = vld [vmem:[%s1 + $0xc78] sm:$0xff]
        %v833 = vld [vmem:[%s1 + $0xc80] sm:$0xff]
        %v834 = vld [vmem:[%s1 + $0xc88] sm:$0xff]
        %v835 = vld [vmem:[%s1 + $0xc90] sm:$0xff]
        %v836 = vld [vmem:[%s1 + $0xc98] sm:$0xff]
        %v837 = vld [vmem:[%s1 + $0xca0] sm:$0xff]
        %v838 = vld [vmem:[%s1 + $0xca8] sm:$0xff]
        %v839 = vld [vmem:[%s1 + $0xcb0] sm:$0xff]
        %v840 = vld [vmem:[%s1 + $0xcb8] sm:$0xff]
        %v841 = vld [vmem:[%s1 + $0xcc0] sm:$0xff]
        %v842 = vld [vmem:[%s1 + $0xcc8] sm:$0xff]
        %v843 = vld [vmem:[%s1 + $0xcd0] sm:$0xff]
        %v844 = vld [vmem:[%s1 + $0xcd8] sm:$0xff]
        %v845 = vld [vmem:[%s1 + $0xce0] sm:$0xff]
        %v846 = vld [vmem:[%s1 + $0xce8] sm:$0xff]
        %v847 = vld [vmem:[%s1 + $0xcf0] sm:$0xff]
        %v848 = vld [vmem:[%s1 + $0xcf8] sm:$0xff]
        %v849 = vld [vmem:[%s1 + $0xd00] sm:$0xff]
        %v850 = vld [vmem:[%s1 + $0xd08] sm:$0xff]
        %v851 = vld [vmem:[%s1 + $0xd10] sm:$0xff]
        %v852 = vld [vmem:[%s1 + $0xd18] sm:$0xff]
        %v853 = vld [vmem:[%s1 + $0xd20] sm:$0xff]
        %v854 = vld [vmem:[%s1 + $0xd28] sm:$0xff]
        %v855 = vld [vmem:[%s1 + $0xd30] sm:$0xff]
        %v856 = vld [vmem:[%s1 + $0xd38] sm:$0xff]
        %v857 = vld [vmem:[%s1 + $0xd40] sm:$0xff]
        %v858 = vld [vmem:[%s1 + $0xd48] sm:$0xff]
        %v859 = vld [vmem:[%s1 + $0xd50] sm:$0xff]
        %v860 = vld [vmem:[%s1 + $0xd58] sm:$0xff]
        %v861 = vld [vmem:[%s1 + $0xd60] sm:$0xff]
        %v862 = vld [vmem:[%s1 + $0xd68] sm:$0xff]
        %v863 = vld [vmem:[%s1 + $0xd70] sm:$0xff]
        %v864 = vld [vmem:[%s1 + $0xd78] sm:$0xff]
        %v865 = vld [vmem:[%s1 + $0xd80] sm:$0xff]
        %v866 = vld [vmem:[%s1 + $0xd88] sm:$0xff]
        %v867 = vld [vmem:[%s1 + $0xd90] sm:$0xff]
        %v868 = vld [vmem:[%s1 + $0xd98] sm:$0xff]
        %v869 = vld [vmem:[%s1 + $0xda0] sm:$0xff]
        %v870 = vld [vmem:[%s1 + $0xda8] sm:$0xff]
        %v871 = vld [vmem:[%s1 + $0xdb0] sm:$0xff]
        %v872 = vld [vmem:[%s1 + $0xdb8] sm:$0xff]
        %v873 = vld [vmem:[%s1 + $0xdc0] sm:$0xff]
        %v874 = vld [vmem:[%s1 + $0xdc8] sm:$0xff]
        %v875 = vld [vmem:[%s1 + $0xdd0] sm:$0xff]
        %v876 = vld [vmem:[%s1 + $0xdd8] sm:$0xff]
        %v877 = vld [vmem:[%s1 + $0xde0] sm:$0xff]
        %v878 = vld [vmem:[%s1 + $0xde8] sm:$0xff]
        %v879 = vld [vmem:[%s1 + $0xdf0] sm:$0xff]
        %v880 = vld [vmem:[%s1 + $0xdf8] sm:$0xff]
        %v881 = vld [vmem:[%s1 + $0xe00] sm:$0xff]
        %v882 = vld [vmem:[%s1 + $0xe08] sm:$0xff]
        %v883 = vld [vmem:[%s1 + $0xe10] sm:$0xff]
        %v884 = vld [vmem:[%s1 + $0xe18] sm:$0xff]
        %v885 = vld [vmem:[%s1 + $0xe20] sm:$0xff]
        %v886 = vld [vmem:[%s1 + $0xe28] sm:$0xff]
        %v887 = vld [vmem:[%s1 + $0xe30] sm:$0xff]
        %v888 = vld [vmem:[%s1 + $0xe38] sm:$0xff]
        %v889 = vld [vmem:[%s1 + $0xe40] sm:$0xff]
        %v890 = vld [vmem:[%s1 + $0xe48] sm:$0xff]
        %v891 = vld [vmem:[%s1 + $0xe50] sm:$0xff]
        %v892 = vld [vmem:[%s1 + $0xe58] sm:$0xff]
        %v893 = vld [vmem:[%s1 + $0xe60] sm:$0xff]
        %v894 = vld [vmem:[%s1 + $0xe68] sm:$0xff]
        %v895 = vld [vmem:[%s1 + $0xe70] sm:$0xff]
        %v896 = vld [vmem:[%s1 + $0xe78] sm:$0xff]
        %v897 = vld [vmem:[%s1 + $0xe80] sm:$0xff]
        %v898 = vld [vmem:[%s1 + $0xe88] sm:$0xff]
        %v899 = vld [vmem:[%s1 + $0xe90] sm:$0xff]
        %v900 = vld [vmem:[%s1 + $0xe98] sm:$0xff]
        %v901 = vld [vmem:[%s1 + $0xea0] sm:$0xff]
        %v902 = vld [vmem:[%s1 + $0xea8] sm:$0xff]
        %v903 = vld [vmem:[%s1 + $0xeb0] sm:$0xff]
        %v904 = vld [vmem:[%s1 + $0xeb8] sm:$0xff]
        %v905 = vld [vmem:[%s1 + $0xec0] sm:$0xff]
        %v906 = vld [vmem:[%s1 + $0xec8] sm:$0xff]
        %v907 = vld [vmem:[%s1 + $0xed0] sm:$0xff]
        %v908 = vld [vmem:[%s1 + $0xed8] sm:$0xff]
        %v909 = vld [vmem:[%s1 + $0xee0] sm:$0xff]
        %v910 = vld [vmem:[%s1 + $0xee8] sm:$0xff]
        %v911 = vld [vmem:[%s1 + $0xef0] sm:$0xff]
        %v912 = vld [vmem:[%s1 + $0xef8] sm:$0xff]
        %v913 = vld [vmem:[%s1 + $0xf00] sm:$0xff]
        %v914 = vld [vmem:[%s1 + $0xf08] sm:$0xff]
        %v915 = vld [vmem:[%s1 + $0xf10] sm:$0xff]
        %v916 = vld [vmem:[%s1 + $0xf18] sm:$0xff]
        %v917 = vld [vmem:[%s1 + $0xf20] sm:$0xff]
        %v918 = vld [vmem:[%s1 + $0xf28] sm:$0xff]
        %v919 = vld [vmem:[%s1 + $0xf30] sm:$0xff]
        %v920 = vld [vmem:[%s1 + $0xf38] sm:$0xff]
        %v921 = vld [vmem:[%s1 + $0xf40] sm:$0xff]
        %v922 = vld [vmem:[%s1 + $0xf48] sm:$0xff]
        %v923 = vld [vmem:[%s1 + $0xf50] sm:$0xff]
        %v924 = vld [vmem:[%s1 + $0xf58] sm:$0xff]
        %v925 = vld [vmem:[%s1 + $0xf60] sm:$0xff]
        %v926 = vld [vmem:[%s1 + $0xf68] sm:$0xff]
        %v927 = vld [vmem:[%s1 + $0xf70] sm:$0xff]
        %v928 = vld [vmem:[%s1 + $0xf78] sm:$0xff]
        %v929 = vld [vmem:[%s1 + $0xf80] sm:$0xff]
        %v930 = vld [vmem:[%s1 + $0xf88] sm:$0xff]
        %v931 = vld [vmem:[%s1 + $0xf90] sm:$0xff]
        %v932 = vld [vmem:[%s1 + $0xf98] sm:$0xff]
        %v933 = vld [vmem:[%s1 + $0xfa0] sm:$0xff]
        %v934 = vld [vmem:[%s1 + $0xfa8] sm:$0xff]
        %v935 = vld [vmem:[%s1 + $0xfb0] sm:$0xff]
        %v936 = vld [vmem:[%s1 + $0xfb8] sm:$0xff]
        %v937 = vld [vmem:[%s1 + $0xfc0] sm:$0xff]
        %v938 = vld [vmem:[%s1 + $0xfc8] sm:$0xff]
        %v939 = vld [vmem:[%s1 + $0xfd0] sm:$0xff]
        %v940 = vld [vmem:[%s1 + $0xfd8] sm:$0xff]
        %v941 = vld [vmem:[%s1 + $0xfe0] sm:$0xff]
        %v942 = vld [vmem:[%s1 + $0xfe8] sm:$0xff]
        %v943 = vld [vmem:[%s1 + $0xff0] sm:$0xff]
        %v944 = vld [vmem:[%s1 + $0xff8] sm:$0xff]
        %v945 = vld [vmem:[%s2] sm:$0xf]
        %v947 = vlaneseq
        %v948 = vshrl.u32 %v947, 7
        %v949 = vsub.s32 0, %v948
        %v950 = vrot.slane %v945, %v949
        %v951 = vlaneseq
        %v952 = vshrl.u32 %v951, 7
        %v953 = vsub.s32 1, %v952
        %v954 = vrot.slane %v945, %v953
        %v955 = vlaneseq
        %v956 = vshrl.u32 %v955, 7
        %v957 = vsub.s32 2, %v956
        %v958 = vrot.slane %v945, %v957
        %v959 = vlaneseq
        %v960 = vshrl.u32 %v959, 7
        %v961 = vsub.s32 3, %v960
        %v962 = vrot.slane %v945, %v961
        %967 = vmatprep.subr.mxu0 %v494
        %968 = vmatpush1.msra.mxu0 %v493
        %969 = vmatprep.subr.mxu0 %v490
        %970 = vmatpush1.msra.mxu0 %v489
        %971 = vmatprep.subr.mxu0 %v486
        %972 = vmatpush1.msra.mxu0 %v485
        %973 = vmatprep.subr.mxu0 %v482
        %974 = vmatpush1.msra.mxu0 %v481
        %975 = vmatprep.subr.mxu0 %v478
        %976 = vmatpush1.msra.mxu0 %v477
        %977 = vmatprep.subr.mxu0 %v474
        %978 = vmatpush1.msra.mxu0 %v473
        %979 = vmatprep.subr.mxu0 %v470
        %980 = vmatpush1.msra.mxu0 %v469
        %981 = vmatprep.subr.mxu0 %v466
        %982 = vmatpush1.msra.mxu0 %v465
        %983 = vmatprep.subr.mxu0 %v462
        %984 = vmatpush1.msra.mxu0 %v461
        %985 = vmatprep.subr.mxu0 %v458
        %986 = vmatpush1.msra.mxu0 %v457
        %987 = vmatprep.subr.mxu0 %v454
        %988 = vmatpush1.msra.mxu0 %v453
        %989 = vmatprep.subr.mxu0 %v450
        %990 = vmatpush1.msra.mxu0 %v449
        %991 = vmatprep.subr.mxu0 %v446
        %992 = vmatpush1.msra.mxu0 %v445
        %993 = vmatprep.subr.mxu0 %v442
        %994 = vmatpush1.msra.mxu0 %v441
        %995 = vmatprep.subr.mxu0 %v438
        %996 = vmatpush1.msra.mxu0 %v437
        %997 = vmatprep.subr.mxu0 %v434
        %998 = vmatpush1.msra.mxu0 %v433
        %999 = vmatprep.subr.mxu0 %v558
        %1000 = vmatpush2.msra.mxu0 %v557
        %1001 = vmatprep.subr.mxu0 %v554
        %1002 = vmatpush2.msra.mxu0 %v553
        %1003 = vmatprep.subr.mxu0 %v550
        %1004 = vmatpush2.msra.mxu0 %v549
        %1005 = vmatprep.subr.mxu0 %v546
        %1006 = vmatpush2.msra.mxu0 %v545
        %1007 = vmatprep.subr.mxu0 %v542
        %1008 = vmatpush2.msra.mxu0 %v541
        %1009 = vmatprep.subr.mxu0 %v538
        %1010 = vmatpush2.msra.mxu0 %v537
        %1011 = vmatprep.subr.mxu0 %v534
        %1012 = vmatpush2.msra.mxu0 %v533
        %1013 = vmatprep.subr.mxu0 %v530
        %1014 = vmatpush2.msra.mxu0 %v529
        %1015 = vmatprep.subr.mxu0 %v526
        %1016 = vmatpush2.msra.mxu0 %v525
        %1017 = vmatprep.subr.mxu0 %v522
        %1018 = vmatpush2.msra.mxu0 %v521
        %1019 = vmatprep.subr.mxu0 %v518
        %1020 = vmatpush2.msra.mxu0 %v517
        %1021 = vmatprep.subr.mxu0 %v514
        %1022 = vmatpush2.msra.mxu0 %v513
        %1023 = vmatprep.subr.mxu0 %v510
        %1024 = vmatpush2.msra.mxu0 %v509
        %1025 = vmatprep.subr.mxu0 %v506
        %1026 = vmatpush2.msra.mxu0 %v505
        %1027 = vmatprep.subr.mxu0 %v502
        %1028 = vmatpush2.msra.mxu0 %v501
        %1029 = vmatprep.subr.mxu0 %v498
        %1030 = vmatpush2.msra.mxu0 %v497
        %1031 = vmatprep.mubr.f32.mxu0 %v370
        %1032 = vmatmul.mubr.f32.gmra.mxu0 %v369
        %v1033 = vpop.f32.mrf.mxu0
        %v1034 = vadd.f32 %v950, %v1033
        %v1035 = vpop.f32.mrf.mxu0
        %v1036 = vadd.f32 %v954, %v1035
        %1037 = vmatprep.mubr.f32.mxu0 %v378
        %1038 = vmatmul.mubr.f32.gmra.mxu0 %v377
        %v1039 = vpop.f32.mrf.mxu0
        %v1040 = vadd.f32 %v950, %v1039
        %v1041 = vpop.f32.mrf.mxu0
        %v1042 = vadd.f32 %v954, %v1041
        %1043 = vmatprep.mubr.f32.mxu0 %v386
        %1044 = vmatmul.mubr.f32.gmra.mxu0 %v385
        %v1045 = vpop.f32.mrf.mxu0
        %v1046 = vadd.f32 %v950, %v1045
        %v1047 = vpop.f32.mrf.mxu0
        %v1048 = vadd.f32 %v954, %v1047
        %1049 = vmatprep.mubr.f32.mxu0 %v394
        %1050 = vmatmul.mubr.f32.gmra.mxu0 %v393
        %v1051 = vpop.f32.mrf.mxu0
        %v1052 = vadd.f32 %v950, %v1051
        %v1053 = vpop.f32.mrf.mxu0
        %v1054 = vadd.f32 %v954, %v1053
        %1055 = vmatprep.mubr.f32.mxu0 %v402
        %1056 = vmatmul.mubr.f32.gmra.mxu0 %v401
        %v1057 = vpop.f32.mrf.mxu0
        %v1058 = vadd.f32 %v950, %v1057
        %v1059 = vpop.f32.mrf.mxu0
        %v1060 = vadd.f32 %v954, %v1059
        %1061 = vmatprep.mubr.f32.mxu0 %v410
        %1062 = vmatmul.mubr.f32.gmra.mxu0 %v409
        %v1063 = vpop.f32.mrf.mxu0
        %v1064 = vadd.f32 %v950, %v1063
        %v1065 = vpop.f32.mrf.mxu0
        %v1066 = vadd.f32 %v954, %v1065
        %1067 = vmatprep.mubr.f32.mxu0 %v418
        %1068 = vmatmul.mubr.f32.gmra.mxu0 %v417
        %v1069 = vpop.f32.mrf.mxu0
        %v1070 = vadd.f32 %v950, %v1069
        %v1071 = vpop.f32.mrf.mxu0
        %v1072 = vadd.f32 %v954, %v1071
        %1073 = vmatprep.mubr.f32.mxu0 %v426
        %1074 = vmatmul.mubr.f32.gmra.mxu0 %v425
        %v1075 = vpop.f32.mrf.mxu0
        %v1076 = vadd.f32 %v950, %v1075
        %v1077 = vpop.f32.mrf.mxu0
        %v1078 = vadd.f32 %v954, %v1077
        %1079 = vdwg.mxu0
        %1080 = vmatprep.subr.mxu0 %v622
        %1081 = vmatpush1.msra.mxu0 %v621
        %1082 = vmatprep.subr.mxu0 %v618
        %1083 = vmatpush1.msra.mxu0 %v617
        %1084 = vmatprep.subr.mxu0 %v614
        %1085 = vmatpush1.msra.mxu0 %v613
        %1086 = vmatprep.subr.mxu0 %v610
        %1087 = vmatpush1.msra.mxu0 %v609
        %1088 = vmatprep.subr.mxu0 %v606
        %1089 = vmatpush1.msra.mxu0 %v605
        %1090 = vmatprep.subr.mxu0 %v602
        %1091 = vmatpush1.msra.mxu0 %v601
        %1092 = vmatprep.subr.mxu0 %v598
        %1093 = vmatpush1.msra.mxu0 %v597
        %1094 = vmatprep.subr.mxu0 %v594
        %1095 = vmatpush1.msra.mxu0 %v593
        %1096 = vmatprep.subr.mxu0 %v590
        %1097 = vmatpush1.msra.mxu0 %v589
        %1098 = vmatprep.subr.mxu0 %v586
        %1099 = vmatpush1.msra.mxu0 %v585
        %1100 = vmatprep.subr.mxu0 %v582
        %1101 = vmatpush1.msra.mxu0 %v581
        %1102 = vmatprep.subr.mxu0 %v578
        %1103 = vmatpush1.msra.mxu0 %v577
        %1104 = vmatprep.subr.mxu0 %v574
        %1105 = vmatpush1.msra.mxu0 %v573
        %1106 = vmatprep.subr.mxu0 %v570
        %1107 = vmatpush1.msra.mxu0 %v569
        %1108 = vmatprep.subr.mxu0 %v566
        %1109 = vmatpush1.msra.mxu0 %v565
        %1110 = vmatprep.subr.mxu0 %v562
        %1111 = vmatpush1.msra.mxu0 %v561
        %1112 = vmatprep.subr.mxu0 %v686
        %1113 = vmatpush2.msra.mxu0 %v685
        %1114 = vmatprep.subr.mxu0 %v682
        %1115 = vmatpush2.msra.mxu0 %v681
        %1116 = vmatprep.subr.mxu0 %v678
        %1117 = vmatpush2.msra.mxu0 %v677
        %1118 = vmatprep.subr.mxu0 %v674
        %1119 = vmatpush2.msra.mxu0 %v673
        %1120 = vmatprep.subr.mxu0 %v670
        %1121 = vmatpush2.msra.mxu0 %v669
        %1122 = vmatprep.subr.mxu0 %v666
        %1123 = vmatpush2.msra.mxu0 %v665
        %1124 = vmatprep.subr.mxu0 %v662
        %1125 = vmatpush2.msra.mxu0 %v661
        %1126 = vmatprep.subr.mxu0 %v658
        %1127 = vmatpush2.msra.mxu0 %v657
        %1128 = vmatprep.subr.mxu0 %v654
        %1129 = vmatpush2.msra.mxu0 %v653
        %1130 = vmatprep.subr.mxu0 %v650
        %1131 = vmatpush2.msra.mxu0 %v649
        %1132 = vmatprep.subr.mxu0 %v646
        %1133 = vmatpush2.msra.mxu0 %v645
        %1134 = vmatprep.subr.mxu0 %v642
        %1135 = vmatpush2.msra.mxu0 %v641
        %1136 = vmatprep.subr.mxu0 %v638
        %1137 = vmatpush2.msra.mxu0 %v637
        %1138 = vmatprep.subr.mxu0 %v634
        %1139 = vmatpush2.msra.mxu0 %v633
        %1140 = vmatprep.subr.mxu0 %v630
        %1141 = vmatpush2.msra.mxu0 %v629
        %1142 = vmatprep.subr.mxu0 %v626
        %1143 = vmatpush2.msra.mxu0 %v625
        %1144 = vmatprep.mubr.f32.mxu0 %v372
        %1145 = vmatmul.mubr.f32.gmra.mxu0 %v371
        %v1146 = vpop.f32.mrf.mxu0
        %v1147 = vadd.f32 %v1034, %v1146
        %v1148 = vpop.f32.mrf.mxu0
        %v1149 = vadd.f32 %v1036, %v1148
        %1150 = vmatprep.mubr.f32.mxu0 %v380
        %1151 = vmatmul.mubr.f32.gmra.mxu0 %v379
        %v1152 = vpop.f32.mrf.mxu0
        %v1153 = vadd.f32 %v1040, %v1152
        %v1154 = vpop.f32.mrf.mxu0
        %v1155 = vadd.f32 %v1042, %v1154
        %1156 = vmatprep.mubr.f32.mxu0 %v388
        %1157 = vmatmul.mubr.f32.gmra.mxu0 %v387
        %v1158 = vpop.f32.mrf.mxu0
        %v1159 = vadd.f32 %v1046, %v1158
        %v1160 = vpop.f32.mrf.mxu0
        %v1161 = vadd.f32 %v1048, %v1160
        %1162 = vmatprep.mubr.f32.mxu0 %v396
        %1163 = vmatmul.mubr.f32.gmra.mxu0 %v395
        %v1164 = vpop.f32.mrf.mxu0
        %v1165 = vadd.f32 %v1052, %v1164
        %v1166 = vpop.f32.mrf.mxu0
        %v1167 = vadd.f32 %v1054, %v1166
        %1168 = vmatprep.mubr.f32.mxu0 %v404
        %1169 = vmatmul.mubr.f32.gmra.mxu0 %v403
        %v1170 = vpop.f32.mrf.mxu0
        %v1171 = vadd.f32 %v1058, %v1170
        %v1172 = vpop.f32.mrf.mxu0
        %v1173 = vadd.f32 %v1060, %v1172
        %1174 = vmatprep.mubr.f32.mxu0 %v412
        %1175 = vmatmul.mubr.f32.gmra.mxu0 %v411
        %v1176 = vpop.f32.mrf.mxu0
        %v1177 = vadd.f32 %v1064, %v1176
        %v1178 = vpop.f32.mrf.mxu0
        %v1179 = vadd.f32 %v1066, %v1178
        %1180 = vmatprep.mubr.f32.mxu0 %v420
        %1181 = vmatmul.mubr.f32.gmra.mxu0 %v419
        %v1182 = vpop.f32.mrf.mxu0
        %v1183 = vadd.f32 %v1070, %v1182
        %v1184 = vpop.f32.mrf.mxu0
        %v1185 = vadd.f32 %v1072, %v1184
        %1186 = vmatprep.mubr.f32.mxu0 %v428
        %1187 = vmatmul.mubr.f32.gmra.mxu0 %v427
        %v1188 = vpop.f32.mrf.mxu0
        %v1189 = vadd.f32 %v1076, %v1188
        %v1190 = vpop.f32.mrf.mxu0
        %v1191 = vadd.f32 %v1078, %v1190
        %1192 = vdwg.mxu0
        %1193 = vmatprep.subr.mxu0 %v750
        %1194 = vmatpush1.msra.mxu0 %v749
        %1195 = vmatprep.subr.mxu0 %v746
        %1196 = vmatpush1.msra.mxu0 %v745
        %1197 = vmatprep.subr.mxu0 %v742
        %1198 = vmatpush1.msra.mxu0 %v741
        %1199 = vmatprep.subr.mxu0 %v738
        %1200 = vmatpush1.msra.mxu0 %v737
        %1201 = vmatprep.subr.mxu0 %v734
        %1202 = vmatpush1.msra.mxu0 %v733
        %1203 = vmatprep.subr.mxu0 %v730
        %1204 = vmatpush1.msra.mxu0 %v729
        %1205 = vmatprep.subr.mxu0 %v726
        %1206 = vmatpush1.msra.mxu0 %v725
        %1207 = vmatprep.subr.mxu0 %v722
        %1208 = vmatpush1.msra.mxu0 %v721
        %1209 = vmatprep.subr.mxu0 %v718
        %1210 = vmatpush1.msra.mxu0 %v717
        %1211 = vmatprep.subr.mxu0 %v714
        %1212 = vmatpush1.msra.mxu0 %v713
        %1213 = vmatprep.subr.mxu0 %v710
        %1214 = vmatpush1.msra.mxu0 %v709
        %1215 = vmatprep.subr.mxu0 %v706
        %1216 = vmatpush1.msra.mxu0 %v705
        %1217 = vmatprep.subr.mxu0 %v702
        %1218 = vmatpush1.msra.mxu0 %v701
        %1219 = vmatprep.subr.mxu0 %v698
        %1220 = vmatpush1.msra.mxu0 %v697
        %1221 = vmatprep.subr.mxu0 %v694
        %1222 = vmatpush1.msra.mxu0 %v693
        %1223 = vmatprep.subr.mxu0 %v690
        %1224 = vmatpush1.msra.mxu0 %v689
        %1225 = vmatprep.subr.mxu0 %v814
        %1226 = vmatpush2.msra.mxu0 %v813
        %1227 = vmatprep.subr.mxu0 %v810
        %1228 = vmatpush2.msra.mxu0 %v809
        %1229 = vmatprep.subr.mxu0 %v806
        %1230 = vmatpush2.msra.mxu0 %v805
        %1231 = vmatprep.subr.mxu0 %v802
        %1232 = vmatpush2.msra.mxu0 %v801
        %1233 = vmatprep.subr.mxu0 %v798
        %1234 = vmatpush2.msra.mxu0 %v797
        %1235 = vmatprep.subr.mxu0 %v794
        %1236 = vmatpush2.msra.mxu0 %v793
        %1237 = vmatprep.subr.mxu0 %v790
        %1238 = vmatpush2.msra.mxu0 %v789
        %1239 = vmatprep.subr.mxu0 %v786
        %1240 = vmatpush2.msra.mxu0 %v785
        %1241 = vmatprep.subr.mxu0 %v782
        %1242 = vmatpush2.msra.mxu0 %v781
        %1243 = vmatprep.subr.mxu0 %v778
        %1244 = vmatpush2.msra.mxu0 %v777
        %1245 = vmatprep.subr.mxu0 %v774
        %1246 = vmatpush2.msra.mxu0 %v773
        %1247 = vmatprep.subr.mxu0 %v770
        %1248 = vmatpush2.msra.mxu0 %v769
        %1249 = vmatprep.subr.mxu0 %v766
        %1250 = vmatpush2.msra.mxu0 %v765
        %1251 = vmatprep.subr.mxu0 %v762
        %1252 = vmatpush2.msra.mxu0 %v761
        %1253 = vmatprep.subr.mxu0 %v758
        %1254 = vmatpush2.msra.mxu0 %v757
        %1255 = vmatprep.subr.mxu0 %v754
        %1256 = vmatpush2.msra.mxu0 %v753
        %1257 = vmatprep.mubr.f32.mxu0 %v374
        %1258 = vmatmul.mubr.f32.gmra.mxu0 %v373
        %v1259 = vpop.f32.mrf.mxu0
        %v1260 = vadd.f32 %v1147, %v1259
        %v1261 = vpop.f32.mrf.mxu0
        %v1262 = vadd.f32 %v1149, %v1261
        %1263 = vmatprep.mubr.f32.mxu0 %v382
        %1264 = vmatmul.mubr.f32.gmra.mxu0 %v381
        %v1265 = vpop.f32.mrf.mxu0
        %v1266 = vadd.f32 %v1153, %v1265
        %v1267 = vpop.f32.mrf.mxu0
        %v1268 = vadd.f32 %v1155, %v1267
        %1269 = vmatprep.mubr.f32.mxu0 %v390
        %1270 = vmatmul.mubr.f32.gmra.mxu0 %v389
        %v1271 = vpop.f32.mrf.mxu0
        %v1272 = vadd.f32 %v1159, %v1271
        %v1273 = vpop.f32.mrf.mxu0
        %v1274 = vadd.f32 %v1161, %v1273
        %1275 = vmatprep.mubr.f32.mxu0 %v398
        %1276 = vmatmul.mubr.f32.gmra.mxu0 %v397
        %v1277 = vpop.f32.mrf.mxu0
        %v1278 = vadd.f32 %v1165, %v1277
        %v1279 = vpop.f32.mrf.mxu0
        %v1280 = vadd.f32 %v1167, %v1279
        %1281 = vmatprep.mubr.f32.mxu0 %v406
        %1282 = vmatmul.mubr.f32.gmra.mxu0 %v405
        %v1283 = vpop.f32.mrf.mxu0
        %v1284 = vadd.f32 %v1171, %v1283
        %v1285 = vpop.f32.mrf.mxu0
        %v1286 = vadd.f32 %v1173, %v1285
        %1287 = vmatprep.mubr.f32.mxu0 %v414
        %1288 = vmatmul.mubr.f32.gmra.mxu0 %v413
        %v1289 = vpop.f32.mrf.mxu0
        %v1290 = vadd.f32 %v1177, %v1289
        %v1291 = vpop.f32.mrf.mxu0
        %v1292 = vadd.f32 %v1179, %v1291
        %1293 = vmatprep.mubr.f32.mxu0 %v422
        %1294 = vmatmul.mubr.f32.gmra.mxu0 %v421
        %v1295 = vpop.f32.mrf.mxu0
        %v1296 = vadd.f32 %v1183, %v1295
        %v1297 = vpop.f32.mrf.mxu0
        %v1298 = vadd.f32 %v1185, %v1297
        %1299 = vmatprep.mubr.f32.mxu0 %v430
        %1300 = vmatmul.mubr.f32.gmra.mxu0 %v429
        %v1301 = vpop.f32.mrf.mxu0
        %v1302 = vadd.f32 %v1189, %v1301
        %v1303 = vpop.f32.mrf.mxu0
        %v1304 = vadd.f32 %v1191, %v1303
        %1305 = vdwg.mxu0
        %1306 = vmatprep.subr.mxu0 %v878
        %1307 = vmatpush1.msra.mxu0 %v877
        %1308 = vmatprep.subr.mxu0 %v874
        %1309 = vmatpush1.msra.mxu0 %v873
        %1310 = vmatprep.subr.mxu0 %v870
        %1311 = vmatpush1.msra.mxu0 %v869
        %1312 = vmatprep.subr.mxu0 %v866
        %1313 = vmatpush1.msra.mxu0 %v865
        %1314 = vmatprep.subr.mxu0 %v862
        %1315 = vmatpush1.msra.mxu0 %v861
        %1316 = vmatprep.subr.mxu0 %v858
        %1317 = vmatpush1.msra.mxu0 %v857
        %1318 = vmatprep.subr.mxu0 %v854
        %1319 = vmatpush1.msra.mxu0 %v853
        %1320 = vmatprep.subr.mxu0 %v850
        %1321 = vmatpush1.msra.mxu0 %v849
        %1322 = vmatprep.subr.mxu0 %v846
        %1323 = vmatpush1.msra.mxu0 %v845
        %1324 = vmatprep.subr.mxu0 %v842
        %1325 = vmatpush1.msra.mxu0 %v841
        %1326 = vmatprep.subr.mxu0 %v838
        %1327 = vmatpush1.msra.mxu0 %v837
        %1328 = vmatprep.subr.mxu0 %v834
        %1329 = vmatpush1.msra.mxu0 %v833
        %1330 = vmatprep.subr.mxu0 %v830
        %1331 = vmatpush1.msra.mxu0 %v829
        %1332 = vmatprep.subr.mxu0 %v826
        %1333 = vmatpush1.msra.mxu0 %v825
        %1334 = vmatprep.subr.mxu0 %v822
        %1335 = vmatpush1.msra.mxu0 %v821
        %1336 = vmatprep.subr.mxu0 %v818
        %1337 = vmatpush1.msra.mxu0 %v817
        %1338 = vmatprep.subr.mxu0 %v942
        %1339 = vmatpush2.msra.mxu0 %v941
        %1340 = vmatprep.subr.mxu0 %v938
        %1341 = vmatpush2.msra.mxu0 %v937
        %1342 = vmatprep.subr.mxu0 %v934
        %1343 = vmatpush2.msra.mxu0 %v933
        %1344 = vmatprep.subr.mxu0 %v930
        %1345 = vmatpush2.msra.mxu0 %v929
        %1346 = vmatprep.subr.mxu0 %v926
        %1347 = vmatpush2.msra.mxu0 %v925
        %1348 = vmatprep.subr.mxu0 %v922
        %1349 = vmatpush2.msra.mxu0 %v921
        %1350 = vmatprep.subr.mxu0 %v918
        %1351 = vmatpush2.msra.mxu0 %v917
        %1352 = vmatprep.subr.mxu0 %v914
        %1353 = vmatpush2.msra.mxu0 %v913
        %1354 = vmatprep.subr.mxu0 %v910
        %1355 = vmatpush2.msra.mxu0 %v909
        %1356 = vmatprep.subr.mxu0 %v906
        %1357 = vmatpush2.msra.mxu0 %v905
        %1358 = vmatprep.subr.mxu0 %v902
        %1359 = vmatpush2.msra.mxu0 %v901
        %1360 = vmatprep.subr.mxu0 %v898
        %1361 = vmatpush2.msra.mxu0 %v897
        %1362 = vmatprep.subr.mxu0 %v894
        %1363 = vmatpush2.msra.mxu0 %v893
        %1364 = vmatprep.subr.mxu0 %v890
        %1365 = vmatpush2.msra.mxu0 %v889
        %1366 = vmatprep.subr.mxu0 %v886
        %1367 = vmatpush2.msra.mxu0 %v885
        %1368 = vmatprep.subr.mxu0 %v882
        %1369 = vmatpush2.msra.mxu0 %v881
        %1370 = vmatprep.mubr.f32.mxu0 %v376
        %1371 = vmatmul.mubr.f32.gmra.mxu0 %v375
        %v1372 = vpop.f32.mrf.mxu0
        %v1373 = vadd.f32 %v1260, %v1372
        %v1374 = vpop.f32.mrf.mxu0
        %v1375 = vadd.f32 %v1262, %v1374
        %1376 = vmatprep.mubr.f32.mxu0 %v384
        %1377 = vmatmul.mubr.f32.gmra.mxu0 %v383
        %v1378 = vpop.f32.mrf.mxu0
        %v1379 = vadd.f32 %v1266, %v1378
        %v1380 = vpop.f32.mrf.mxu0
        %v1381 = vadd.f32 %v1268, %v1380
        %1382 = vmatprep.mubr.f32.mxu0 %v392
        %1383 = vmatmul.mubr.f32.gmra.mxu0 %v391
        %v1384 = vpop.f32.mrf.mxu0
        %v1385 = vadd.f32 %v1272, %v1384
        %v1386 = vpop.f32.mrf.mxu0
        %v1387 = vadd.f32 %v1274, %v1386
        %1388 = vmatprep.mubr.f32.mxu0 %v400
        %1389 = vmatmul.mubr.f32.gmra.mxu0 %v399
        %v1390 = vpop.f32.mrf.mxu0
        %v1391 = vadd.f32 %v1278, %v1390
        %v1392 = vpop.f32.mrf.mxu0
        %v1393 = vadd.f32 %v1280, %v1392
        %1394 = vmatprep.mubr.f32.mxu0 %v408
        %1395 = vmatmul.mubr.f32.gmra.mxu0 %v407
        %v1396 = vpop.f32.mrf.mxu0
        %v1397 = vadd.f32 %v1284, %v1396
        %v1398 = vpop.f32.mrf.mxu0
        %v1399 = vadd.f32 %v1286, %v1398
        %1400 = vmatprep.mubr.f32.mxu0 %v416
        %1401 = vmatmul.mubr.f32.gmra.mxu0 %v415
        %v1402 = vpop.f32.mrf.mxu0
        %v1403 = vadd.f32 %v1290, %v1402
        %v1404 = vpop.f32.mrf.mxu0
        %v1405 = vadd.f32 %v1292, %v1404
        %1406 = vmatprep.mubr.f32.mxu0 %v424
        %1407 = vmatmul.mubr.f32.gmra.mxu0 %v423
        %v1408 = vpop.f32.mrf.mxu0
        %v1409 = vadd.f32 %v1296, %v1408
        %v1410 = vpop.f32.mrf.mxu0
        %v1411 = vadd.f32 %v1298, %v1410
        %1412 = vmatprep.mubr.f32.mxu0 %v432
        %1413 = vmatmul.mubr.f32.gmra.mxu0 %v431
        %v1414 = vpop.f32.mrf.mxu0
        %v1415 = vadd.f32 %v1302, %v1414
        %v1416 = vpop.f32.mrf.mxu0
        %v1417 = vadd.f32 %v1304, %v1416
        %1418 = vdwg.mxu0
        %1419 = vmatprep.subr.mxu0 %v496
        %1420 = vmatpush1.msra.mxu0 %v495
        %1421 = vmatprep.subr.mxu0 %v492
        %1422 = vmatpush1.msra.mxu0 %v491
        %1423 = vmatprep.subr.mxu0 %v488
        %1424 = vmatpush1.msra.mxu0 %v487
        %1425 = vmatprep.subr.mxu0 %v484
        %1426 = vmatpush1.msra.mxu0 %v483
        %1427 = vmatprep.subr.mxu0 %v480
        %1428 = vmatpush1.msra.mxu0 %v479
        %1429 = vmatprep.subr.mxu0 %v476
        %1430 = vmatpush1.msra.mxu0 %v475
        %1431 = vmatprep.subr.mxu0 %v472
        %1432 = vmatpush1.msra.mxu0 %v471
        %1433 = vmatprep.subr.mxu0 %v468
        %1434 = vmatpush1.msra.mxu0 %v467
        %1435 = vmatprep.subr.mxu0 %v464
        %1436 = vmatpush1.msra.mxu0 %v463
        %1437 = vmatprep.subr.mxu0 %v460
        %1438 = vmatpush1.msra.mxu0 %v459
        %1439 = vmatprep.subr.mxu0 %v456
        %1440 = vmatpush1.msra.mxu0 %v455
        %1441 = vmatprep.subr.mxu0 %v452
        %1442 = vmatpush1.msra.mxu0 %v451
        %1443 = vmatprep.subr.mxu0 %v448
        %1444 = vmatpush1.msra.mxu0 %v447
        %1445 = vmatprep.subr.mxu0 %v444
        %1446 = vmatpush1.msra.mxu0 %v443
        %1447 = vmatprep.subr.mxu0 %v440
        %1448 = vmatpush1.msra.mxu0 %v439
        %1449 = vmatprep.subr.mxu0 %v436
        %1450 = vmatpush1.msra.mxu0 %v435
        %1451 = vmatprep.subr.mxu0 %v560
        %1452 = vmatpush2.msra.mxu0 %v559
        %1453 = vmatprep.subr.mxu0 %v556
        %1454 = vmatpush2.msra.mxu0 %v555
        %1455 = vmatprep.subr.mxu0 %v552
        %1456 = vmatpush2.msra.mxu0 %v551
        %1457 = vmatprep.subr.mxu0 %v548
        %1458 = vmatpush2.msra.mxu0 %v547
        %1459 = vmatprep.subr.mxu0 %v544
        %1460 = vmatpush2.msra.mxu0 %v543
        %1461 = vmatprep.subr.mxu0 %v540
        %1462 = vmatpush2.msra.mxu0 %v539
        %1463 = vmatprep.subr.mxu0 %v536
        %1464 = vmatpush2.msra.mxu0 %v535
        %1465 = vmatprep.subr.mxu0 %v532
        %1466 = vmatpush2.msra.mxu0 %v531
        %1467 = vmatprep.subr.mxu0 %v528
        %1468 = vmatpush2.msra.mxu0 %v527
        %1469 = vmatprep.subr.mxu0 %v524
        %1470 = vmatpush2.msra.mxu0 %v523
        %1471 = vmatprep.subr.mxu0 %v520
        %1472 = vmatpush2.msra.mxu0 %v519
        %1473 = vmatprep.subr.mxu0 %v516
        %1474 = vmatpush2.msra.mxu0 %v515
        %1475 = vmatprep.subr.mxu0 %v512
        %1476 = vmatpush2.msra.mxu0 %v511
        %1477 = vmatprep.subr.mxu0 %v508
        %1478 = vmatpush2.msra.mxu0 %v507
        %1479 = vmatprep.subr.mxu0 %v504
        %1480 = vmatpush2.msra.mxu0 %v503
        %1481 = vmatprep.subr.mxu0 %v500
        %1482 = vmatpush2.msra.mxu0 %v499
        %1483 = vmatprep.mubr.f32.mxu0 %v370
        %1484 = vmatmul.mubr.f32.gmra.mxu0 %v369
        %v1485 = vpop.f32.mrf.mxu0
        %v1486 = vadd.f32 %v958, %v1485
        %v1487 = vpop.f32.mrf.mxu0
        %v1488 = vadd.f32 %v962, %v1487
        %1489 = vmatprep.mubr.f32.mxu0 %v378
        %1490 = vmatmul.mubr.f32.gmra.mxu0 %v377
        %v1491 = vpop.f32.mrf.mxu0
        %v1492 = vadd.f32 %v958, %v1491
        %v1493 = vpop.f32.mrf.mxu0
        %v1494 = vadd.f32 %v962, %v1493
        %1495 = vmatprep.mubr.f32.mxu0 %v386
        %1496 = vmatmul.mubr.f32.gmra.mxu0 %v385
        %v1497 = vpop.f32.mrf.mxu0
        %v1498 = vadd.f32 %v958, %v1497
        %v1499 = vpop.f32.mrf.mxu0
        %v1500 = vadd.f32 %v962, %v1499
        %1501 = vmatprep.mubr.f32.mxu0 %v394
        %1502 = vmatmul.mubr.f32.gmra.mxu0 %v393
        %v1503 = vpop.f32.mrf.mxu0
        %v1504 = vadd.f32 %v958, %v1503
        %v1505 = vpop.f32.mrf.mxu0
        %v1506 = vadd.f32 %v962, %v1505
        %1507 = vmatprep.mubr.f32.mxu0 %v402
        %1508 = vmatmul.mubr.f32.gmra.mxu0 %v401
        %v1509 = vpop.f32.mrf.mxu0
        %v1510 = vadd.f32 %v958, %v1509
        %v1511 = vpop.f32.mrf.mxu0
        %v1512 = vadd.f32 %v962, %v1511
        %1513 = vmatprep.mubr.f32.mxu0 %v410
        %1514 = vmatmul.mubr.f32.gmra.mxu0 %v409
        %v1515 = vpop.f32.mrf.mxu0
        %v1516 = vadd.f32 %v958, %v1515
        %v1517 = vpop.f32.mrf.mxu0
        %v1518 = vadd.f32 %v962, %v1517
        %1519 = vmatprep.mubr.f32.mxu0 %v418
        %1520 = vmatmul.mubr.f32.gmra.mxu0 %v417
        %v1521 = vpop.f32.mrf.mxu0
        %v1522 = vadd.f32 %v958, %v1521
        %v1523 = vpop.f32.mrf.mxu0
        %v1524 = vadd.f32 %v962, %v1523
        %1525 = vmatprep.mubr.f32.mxu0 %v426
        %1526 = vmatmul.mubr.f32.gmra.mxu0 %v425
        %v1527 = vpop.f32.mrf.mxu0
        %v1528 = vadd.f32 %v958, %v1527
        %v1529 = vpop.f32.mrf.mxu0
        %v1530 = vadd.f32 %v962, %v1529
        %1531 = vdwg.mxu0
        %1532 = vmatprep.subr.mxu0 %v624
        %1533 = vmatpush1.msra.mxu0 %v623
        %1534 = vmatprep.subr.mxu0 %v620
        %1535 = vmatpush1.msra.mxu0 %v619
        %1536 = vmatprep.subr.mxu0 %v616
        %1537 = vmatpush1.msra.mxu0 %v615
        %1538 = vmatprep.subr.mxu0 %v612
        %1539 = vmatpush1.msra.mxu0 %v611
        %1540 = vmatprep.subr.mxu0 %v608
        %1541 = vmatpush1.msra.mxu0 %v607
        %1542 = vmatprep.subr.mxu0 %v604
        %1543 = vmatpush1.msra.mxu0 %v603
        %1544 = vmatprep.subr.mxu0 %v600
        %1545 = vmatpush1.msra.mxu0 %v599
        %1546 = vmatprep.subr.mxu0 %v596
        %1547 = vmatpush1.msra.mxu0 %v595
        %1548 = vmatprep.subr.mxu0 %v592
        %1549 = vmatpush1.msra.mxu0 %v591
        %1550 = vmatprep.subr.mxu0 %v588
        %1551 = vmatpush1.msra.mxu0 %v587
        %1552 = vmatprep.subr.mxu0 %v584
        %1553 = vmatpush1.msra.mxu0 %v583
        %1554 = vmatprep.subr.mxu0 %v580
        %1555 = vmatpush1.msra.mxu0 %v579
        %1556 = vmatprep.subr.mxu0 %v576
        %1557 = vmatpush1.msra.mxu0 %v575
        %1558 = vmatprep.subr.mxu0 %v572
        %1559 = vmatpush1.msra.mxu0 %v571
        %1560 = vmatprep.subr.mxu0 %v568
        %1561 = vmatpush1.msra.mxu0 %v567
        %1562 = vmatprep.subr.mxu0 %v564
        %1563 = vmatpush1.msra.mxu0 %v563
        %1564 = vmatprep.subr.mxu0 %v688
        %1565 = vmatpush2.msra.mxu0 %v687
        %1566 = vmatprep.subr.mxu0 %v684
        %1567 = vmatpush2.msra.mxu0 %v683
        %1568 = vmatprep.subr.mxu0 %v680
        %1569 = vmatpush2.msra.mxu0 %v679
        %1570 = vmatprep.subr.mxu0 %v676
        %1571 = vmatpush2.msra.mxu0 %v675
        %1572 = vmatprep.subr.mxu0 %v672
        %1573 = vmatpush2.msra.mxu0 %v671
        %1574 = vmatprep.subr.mxu0 %v668
        %1575 = vmatpush2.msra.mxu0 %v667
        %1576 = vmatprep.subr.mxu0 %v664
        %1577 = vmatpush2.msra.mxu0 %v663
        %1578 = vmatprep.subr.mxu0 %v660
        %1579 = vmatpush2.msra.mxu0 %v659
        %1580 = vmatprep.subr.mxu0 %v656
        %1581 = vmatpush2.msra.mxu0 %v655
        %1582 = vmatprep.subr.mxu0 %v652
        %1583 = vmatpush2.msra.mxu0 %v651
        %1584 = vmatprep.subr.mxu0 %v648
        %1585 = vmatpush2.msra.mxu0 %v647
        %1586 = vmatprep.subr.mxu0 %v644
        %1587 = vmatpush2.msra.mxu0 %v643
        %1588 = vmatprep.subr.mxu0 %v640
        %1589 = vmatpush2.msra.mxu0 %v639
        %1590 = vmatprep.subr.mxu0 %v636
        %1591 = vmatpush2.msra.mxu0 %v635
        %1592 = vmatprep.subr.mxu0 %v632
        %1593 = vmatpush2.msra.mxu0 %v631
        %1594 = vmatprep.subr.mxu0 %v628
        %1595 = vmatpush2.msra.mxu0 %v627
        %1596 = vmatprep.mubr.f32.mxu0 %v372
        %1597 = vmatmul.mubr.f32.gmra.mxu0 %v371
        %v1598 = vpop.f32.mrf.mxu0
        %v1599 = vadd.f32 %v1486, %v1598
        %v1600 = vpop.f32.mrf.mxu0
        %v1601 = vadd.f32 %v1488, %v1600
        %1602 = vmatprep.mubr.f32.mxu0 %v380
        %1603 = vmatmul.mubr.f32.gmra.mxu0 %v379
        %v1604 = vpop.f32.mrf.mxu0
        %v1605 = vadd.f32 %v1492, %v1604
        %v1606 = vpop.f32.mrf.mxu0
        %v1607 = vadd.f32 %v1494, %v1606
        %1608 = vmatprep.mubr.f32.mxu0 %v388
        %1609 = vmatmul.mubr.f32.gmra.mxu0 %v387
        %v1610 = vpop.f32.mrf.mxu0
        %v1611 = vadd.f32 %v1498, %v1610
        %v1612 = vpop.f32.mrf.mxu0
        %v1613 = vadd.f32 %v1500, %v1612
        %1614 = vmatprep.mubr.f32.mxu0 %v396
        %1615 = vmatmul.mubr.f32.gmra.mxu0 %v395
        %v1616 = vpop.f32.mrf.mxu0
        %v1617 = vadd.f32 %v1504, %v1616
        %v1618 = vpop.f32.mrf.mxu0
        %v1619 = vadd.f32 %v1506, %v1618
        %1620 = vmatprep.mubr.f32.mxu0 %v404
        %1621 = vmatmul.mubr.f32.gmra.mxu0 %v403
        %v1622 = vpop.f32.mrf.mxu0
        %v1623 = vadd.f32 %v1510, %v1622
        %v1624 = vpop.f32.mrf.mxu0
        %v1625 = vadd.f32 %v1512, %v1624
        %1626 = vmatprep.mubr.f32.mxu0 %v412
        %1627 = vmatmul.mubr.f32.gmra.mxu0 %v411
        %v1628 = vpop.f32.mrf.mxu0
        %v1629 = vadd.f32 %v1516, %v1628
        %v1630 = vpop.f32.mrf.mxu0
        %v1631 = vadd.f32 %v1518, %v1630
        %1632 = vmatprep.mubr.f32.mxu0 %v420
        %1633 = vmatmul.mubr.f32.gmra.mxu0 %v419
        %v1634 = vpop.f32.mrf.mxu0
        %v1635 = vadd.f32 %v1522, %v1634
        %v1636 = vpop.f32.mrf.mxu0
        %v1637 = vadd.f32 %v1524, %v1636
        %1638 = vmatprep.mubr.f32.mxu0 %v428
        %1639 = vmatmul.mubr.f32.gmra.mxu0 %v427
        %v1640 = vpop.f32.mrf.mxu0
        %v1641 = vadd.f32 %v1528, %v1640
        %v1642 = vpop.f32.mrf.mxu0
        %v1643 = vadd.f32 %v1530, %v1642
        %1644 = vdwg.mxu0
        %1645 = vmatprep.subr.mxu0 %v752
        %1646 = vmatpush1.msra.mxu0 %v751
        %1647 = vmatprep.subr.mxu0 %v748
        %1648 = vmatpush1.msra.mxu0 %v747
        %1649 = vmatprep.subr.mxu0 %v744
        %1650 = vmatpush1.msra.mxu0 %v743
        %1651 = vmatprep.subr.mxu0 %v740
        %1652 = vmatpush1.msra.mxu0 %v739
        %1653 = vmatprep.subr.mxu0 %v736
        %1654 = vmatpush1.msra.mxu0 %v735
        %1655 = vmatprep.subr.mxu0 %v732
        %1656 = vmatpush1.msra.mxu0 %v731
        %1657 = vmatprep.subr.mxu0 %v728
        %1658 = vmatpush1.msra.mxu0 %v727
        %1659 = vmatprep.subr.mxu0 %v724
        %1660 = vmatpush1.msra.mxu0 %v723
        %1661 = vmatprep.subr.mxu0 %v720
        %1662 = vmatpush1.msra.mxu0 %v719
        %1663 = vmatprep.subr.mxu0 %v716
        %1664 = vmatpush1.msra.mxu0 %v715
        %1665 = vmatprep.subr.mxu0 %v712
        %1666 = vmatpush1.msra.mxu0 %v711
        %1667 = vmatprep.subr.mxu0 %v708
        %1668 = vmatpush1.msra.mxu0 %v707
        %1669 = vmatprep.subr.mxu0 %v704
        %1670 = vmatpush1.msra.mxu0 %v703
        %1671 = vmatprep.subr.mxu0 %v700
        %1672 = vmatpush1.msra.mxu0 %v699
        %1673 = vmatprep.subr.mxu0 %v696
        %1674 = vmatpush1.msra.mxu0 %v695
        %1675 = vmatprep.subr.mxu0 %v692
        %1676 = vmatpush1.msra.mxu0 %v691
        %1677 = vmatprep.subr.mxu0 %v816
        %1678 = vmatpush2.msra.mxu0 %v815
        %1679 = vmatprep.subr.mxu0 %v812
        %1680 = vmatpush2.msra.mxu0 %v811
        %1681 = vmatprep.subr.mxu0 %v808
        %1682 = vmatpush2.msra.mxu0 %v807
        %1683 = vmatprep.subr.mxu0 %v804
        %1684 = vmatpush2.msra.mxu0 %v803
        %1685 = vmatprep.subr.mxu0 %v800
        %1686 = vmatpush2.msra.mxu0 %v799
        %1687 = vmatprep.subr.mxu0 %v796
        %1688 = vmatpush2.msra.mxu0 %v795
        %1689 = vmatprep.subr.mxu0 %v792
        %1690 = vmatpush2.msra.mxu0 %v791
        %1691 = vmatprep.subr.mxu0 %v788
        %1692 = vmatpush2.msra.mxu0 %v787
        %1693 = vmatprep.subr.mxu0 %v784
        %1694 = vmatpush2.msra.mxu0 %v783
        %1695 = vmatprep.subr.mxu0 %v780
        %1696 = vmatpush2.msra.mxu0 %v779
        %1697 = vmatprep.subr.mxu0 %v776
        %1698 = vmatpush2.msra.mxu0 %v775
        %1699 = vmatprep.subr.mxu0 %v772
        %1700 = vmatpush2.msra.mxu0 %v771
        %1701 = vmatprep.subr.mxu0 %v768
        %1702 = vmatpush2.msra.mxu0 %v767
        %1703 = vmatprep.subr.mxu0 %v764
        %1704 = vmatpush2.msra.mxu0 %v763
        %1705 = vmatprep.subr.mxu0 %v760
        %1706 = vmatpush2.msra.mxu0 %v759
        %1707 = vmatprep.subr.mxu0 %v756
        %1708 = vmatpush2.msra.mxu0 %v755
        %1709 = vmatprep.mubr.f32.mxu0 %v374
        %1710 = vmatmul.mubr.f32.gmra.mxu0 %v373
        %v1711 = vpop.f32.mrf.mxu0
        %v1712 = vadd.f32 %v1599, %v1711
        %v1713 = vpop.f32.mrf.mxu0
        %v1714 = vadd.f32 %v1601, %v1713
        %1715 = vmatprep.mubr.f32.mxu0 %v382
        %1716 = vmatmul.mubr.f32.gmra.mxu0 %v381
        %v1717 = vpop.f32.mrf.mxu0
        %v1718 = vadd.f32 %v1605, %v1717
        %v1719 = vpop.f32.mrf.mxu0
        %v1720 = vadd.f32 %v1607, %v1719
        %1721 = vmatprep.mubr.f32.mxu0 %v390
        %1722 = vmatmul.mubr.f32.gmra.mxu0 %v389
        %v1723 = vpop.f32.mrf.mxu0
        %v1724 = vadd.f32 %v1611, %v1723
        %v1725 = vpop.f32.mrf.mxu0
        %v1726 = vadd.f32 %v1613, %v1725
        %1727 = vmatprep.mubr.f32.mxu0 %v398
        %1728 = vmatmul.mubr.f32.gmra.mxu0 %v397
        %v1729 = vpop.f32.mrf.mxu0
        %v1730 = vadd.f32 %v1617, %v1729
        %v1731 = vpop.f32.mrf.mxu0
        %v1732 = vadd.f32 %v1619, %v1731
        %1733 = vmatprep.mubr.f32.mxu0 %v406
        %1734 = vmatmul.mubr.f32.gmra.mxu0 %v405
        %v1735 = vpop.f32.mrf.mxu0
        %v1736 = vadd.f32 %v1623, %v1735
        %v1737 = vpop.f32.mrf.mxu0
        %v1738 = vadd.f32 %v1625, %v1737
        %1739 = vmatprep.mubr.f32.mxu0 %v414
        %1740 = vmatmul.mubr.f32.gmra.mxu0 %v413
        %v1741 = vpop.f32.mrf.mxu0
        %v1742 = vadd.f32 %v1629, %v1741
        %v1743 = vpop.f32.mrf.mxu0
        %v1744 = vadd.f32 %v1631, %v1743
        %1745 = vmatprep.mubr.f32.mxu0 %v422
        %1746 = vmatmul.mubr.f32.gmra.mxu0 %v421
        %v1747 = vpop.f32.mrf.mxu0
        %v1748 = vadd.f32 %v1635, %v1747
        %v1749 = vpop.f32.mrf.mxu0
        %v1750 = vadd.f32 %v1637, %v1749
        %1751 = vmatprep.mubr.f32.mxu0 %v430
        %1752 = vmatmul.mubr.f32.gmra.mxu0 %v429
        %v1753 = vpop.f32.mrf.mxu0
        %v1754 = vadd.f32 %v1641, %v1753
        %v1755 = vpop.f32.mrf.mxu0
        %v1756 = vadd.f32 %v1643, %v1755
        %1757 = vdwg.mxu0
        %1758 = vmatprep.subr.mxu0 %v880
        %1759 = vmatpush1.msra.mxu0 %v879
        %1760 = vmatprep.subr.mxu0 %v876
        %1761 = vmatpush1.msra.mxu0 %v875
        %1762 = vmatprep.subr.mxu0 %v872
        %1763 = vmatpush1.msra.mxu0 %v871
        %1764 = vmatprep.subr.mxu0 %v868
        %1765 = vmatpush1.msra.mxu0 %v867
        %1766 = vmatprep.subr.mxu0 %v864
        %1767 = vmatpush1.msra.mxu0 %v863
        %1768 = vmatprep.subr.mxu0 %v860
        %1769 = vmatpush1.msra.mxu0 %v859
        %1770 = vmatprep.subr.mxu0 %v856
        %1771 = vmatpush1.msra.mxu0 %v855
        %1772 = vmatprep.subr.mxu0 %v852
        %1773 = vmatpush1.msra.mxu0 %v851
        %1774 = vmatprep.subr.mxu0 %v848
        %1775 = vmatpush1.msra.mxu0 %v847
        %1776 = vmatprep.subr.mxu0 %v844
        %1777 = vmatpush1.msra.mxu0 %v843
        %1778 = vmatprep.subr.mxu0 %v840
        %1779 = vmatpush1.msra.mxu0 %v839
        %1780 = vmatprep.subr.mxu0 %v836
        %1781 = vmatpush1.msra.mxu0 %v835
        %1782 = vmatprep.subr.mxu0 %v832
        %1783 = vmatpush1.msra.mxu0 %v831
        %1784 = vmatprep.subr.mxu0 %v828
        %1785 = vmatpush1.msra.mxu0 %v827
        %1786 = vmatprep.subr.mxu0 %v824
        %1787 = vmatpush1.msra.mxu0 %v823
        %1788 = vmatprep.subr.mxu0 %v820
        %1789 = vmatpush1.msra.mxu0 %v819
        %1790 = vmatprep.subr.mxu0 %v944
        %1791 = vmatpush2.msra.mxu0 %v943
        %1792 = vmatprep.subr.mxu0 %v940
        %1793 = vmatpush2.msra.mxu0 %v939
        %1794 = vmatprep.subr.mxu0 %v936
        %1795 = vmatpush2.msra.mxu0 %v935
        %1796 = vmatprep.subr.mxu0 %v932
        %1797 = vmatpush2.msra.mxu0 %v931
        %1798 = vmatprep.subr.mxu0 %v928
        %1799 = vmatpush2.msra.mxu0 %v927
        %1800 = vmatprep.subr.mxu0 %v924
        %1801 = vmatpush2.msra.mxu0 %v923
        %1802 = vmatprep.subr.mxu0 %v920
        %1803 = vmatpush2.msra.mxu0 %v919
        %1804 = vmatprep.subr.mxu0 %v916
        %1805 = vmatpush2.msra.mxu0 %v915
        %1806 = vmatprep.subr.mxu0 %v912
        %1807 = vmatpush2.msra.mxu0 %v911
        %1808 = vmatprep.subr.mxu0 %v908
        %1809 = vmatpush2.msra.mxu0 %v907
        %1810 = vmatprep.subr.mxu0 %v904
        %1811 = vmatpush2.msra.mxu0 %v903
        %1812 = vmatprep.subr.mxu0 %v900
        %1813 = vmatpush2.msra.mxu0 %v899
        %1814 = vmatprep.subr.mxu0 %v896
        %1815 = vmatpush2.msra.mxu0 %v895
        %1816 = vmatprep.subr.mxu0 %v892
        %1817 = vmatpush2.msra.mxu0 %v891
        %1818 = vmatprep.subr.mxu0 %v888
        %1819 = vmatpush2.msra.mxu0 %v887
        %1820 = vmatprep.subr.mxu0 %v884
        %1821 = vmatpush2.msra.mxu0 %v883
        %1822 = vmatprep.mubr.f32.mxu0 %v376
        %1823 = vmatmul.mubr.f32.gmra.mxu0 %v375
        %v1824 = vpop.f32.mrf.mxu0
        %v1825 = vadd.f32 %v1712, %v1824
        %v1826 = vpop.f32.mrf.mxu0
        %v1827 = vadd.f32 %v1714, %v1826
        %1828 = vmatprep.mubr.f32.mxu0 %v384
        %1829 = vmatmul.mubr.f32.gmra.mxu0 %v383
        %v1830 = vpop.f32.mrf.mxu0
        %v1831 = vadd.f32 %v1718, %v1830
        %v1832 = vpop.f32.mrf.mxu0
        %v1833 = vadd.f32 %v1720, %v1832
        %1834 = vmatprep.mubr.f32.mxu0 %v392
        %1835 = vmatmul.mubr.f32.gmra.mxu0 %v391
        %v1836 = vpop.f32.mrf.mxu0
        %v1837 = vadd.f32 %v1724, %v1836
        %v1838 = vpop.f32.mrf.mxu0
        %v1839 = vadd.f32 %v1726, %v1838
        %1840 = vmatprep.mubr.f32.mxu0 %v400
        %1841 = vmatmul.mubr.f32.gmra.mxu0 %v399
        %v1842 = vpop.f32.mrf.mxu0
        %v1843 = vadd.f32 %v1730, %v1842
        %v1844 = vpop.f32.mrf.mxu0
        %v1845 = vadd.f32 %v1732, %v1844
        %1846 = vmatprep.mubr.f32.mxu0 %v408
        %1847 = vmatmul.mubr.f32.gmra.mxu0 %v407
        %v1848 = vpop.f32.mrf.mxu0
        %v1849 = vadd.f32 %v1736, %v1848
        %v1850 = vpop.f32.mrf.mxu0
        %v1851 = vadd.f32 %v1738, %v1850
        %1852 = vmatprep.mubr.f32.mxu0 %v416
        %1853 = vmatmul.mubr.f32.gmra.mxu0 %v415
        %v1854 = vpop.f32.mrf.mxu0
        %v1855 = vadd.f32 %v1742, %v1854
        %v1856 = vpop.f32.mrf.mxu0
        %v1857 = vadd.f32 %v1744, %v1856
        %1858 = vmatprep.mubr.f32.mxu0 %v424
        %1859 = vmatmul.mubr.f32.gmra.mxu0 %v423
        %v1860 = vpop.f32.mrf.mxu0
        %v1861 = vadd.f32 %v1748, %v1860
        %v1862 = vpop.f32.mrf.mxu0
        %v1863 = vadd.f32 %v1750, %v1862
        %1864 = vmatprep.mubr.f32.mxu0 %v432
        %1865 = vmatmul.mubr.f32.gmra.mxu0 %v431
        %v1866 = vpop.f32.mrf.mxu0
        %v1867 = vadd.f32 %v1754, %v1866
        %v1868 = vpop.f32.mrf.mxu0
        %v1869 = vadd.f32 %v1756, %v1868
        %1870 = vdwg.mxu0
        %vm1871 = vcmp.gt.f32.partialorder %v1373, 0.0
        %vm1872 = vcmp.gt.f32.partialorder %v1375, 0.0
        %vm1873 = vcmp.gt.f32.partialorder %v1825, 0.0
        %vm1874 = vcmp.gt.f32.partialorder %v1827, 0.0
        %vm1875 = vcmp.gt.f32.partialorder %v1379, 0.0
        %vm1876 = vcmp.gt.f32.partialorder %v1381, 0.0
        %vm1877 = vcmp.gt.f32.partialorder %v1831, 0.0
        %vm1878 = vcmp.gt.f32.partialorder %v1833, 0.0
        %vm1879 = vcmp.gt.f32.partialorder %v1385, 0.0
        %vm1880 = vcmp.gt.f32.partialorder %v1387, 0.0
        %vm1881 = vcmp.gt.f32.partialorder %v1837, 0.0
        %vm1882 = vcmp.gt.f32.partialorder %v1839, 0.0
        %vm1883 = vcmp.gt.f32.partialorder %v1391, 0.0
        %vm1884 = vcmp.gt.f32.partialorder %v1393, 0.0
        %vm1885 = vcmp.gt.f32.partialorder %v1843, 0.0
        %vm1886 = vcmp.gt.f32.partialorder %v1845, 0.0
        %vm1887 = vcmp.gt.f32.partialorder %v1397, 0.0
        %vm1888 = vcmp.gt.f32.partialorder %v1399, 0.0
        %vm1889 = vcmp.gt.f32.partialorder %v1849, 0.0
        %vm1890 = vcmp.gt.f32.partialorder %v1851, 0.0
        %vm1891 = vcmp.gt.f32.partialorder %v1403, 0.0
        %vm1892 = vcmp.gt.f32.partialorder %v1405, 0.0
        %vm1893 = vcmp.gt.f32.partialorder %v1855, 0.0
        %vm1894 = vcmp.gt.f32.partialorder %v1857, 0.0
        %vm1895 = vcmp.gt.f32.partialorder %v1409, 0.0
        %vm1896 = vcmp.gt.f32.partialorder %v1411, 0.0
        %vm1897 = vcmp.gt.f32.partialorder %v1861, 0.0
        %vm1898 = vcmp.gt.f32.partialorder %v1863, 0.0
        %vm1899 = vcmp.gt.f32.partialorder %v1415, 0.0
        %vm1900 = vcmp.gt.f32.partialorder %v1417, 0.0
        %vm1901 = vcmp.gt.f32.partialorder %v1867, 0.0
        %vm1902 = vcmp.gt.f32.partialorder %v1869, 0.0
        %v1903 = vmin.f32 %v1373, 0.0
        %v1904 = vmin.f32 %v1375, 0.0
        %v1905 = vmin.f32 %v1825, 0.0
        %v1906 = vmin.f32 %v1827, 0.0
        %v1907 = vmin.f32 %v1379, 0.0
        %v1908 = vmin.f32 %v1381, 0.0
        %v1909 = vmin.f32 %v1831, 0.0
        %v1910 = vmin.f32 %v1833, 0.0
        %v1911 = vmin.f32 %v1385, 0.0
        %v1912 = vmin.f32 %v1387, 0.0
        %v1913 = vmin.f32 %v1837, 0.0
        %v1914 = vmin.f32 %v1839, 0.0
        %v1915 = vmin.f32 %v1391, 0.0
        %v1916 = vmin.f32 %v1393, 0.0
        %v1917 = vmin.f32 %v1843, 0.0
        %v1918 = vmin.f32 %v1845, 0.0
        %v1919 = vmin.f32 %v1397, 0.0
        %v1920 = vmin.f32 %v1399, 0.0
        %v1921 = vmin.f32 %v1849, 0.0
        %v1922 = vmin.f32 %v1851, 0.0
        %v1923 = vmin.f32 %v1403, 0.0
        %v1924 = vmin.f32 %v1405, 0.0
        %v1925 = vmin.f32 %v1855, 0.0
        %v1926 = vmin.f32 %v1857, 0.0
        %v1927 = vmin.f32 %v1409, 0.0
        %v1928 = vmin.f32 %v1411, 0.0
        %v1929 = vmin.f32 %v1861, 0.0
        %v1930 = vmin.f32 %v1863, 0.0
        %v1931 = vmin.f32 %v1415, 0.0
        %v1932 = vmin.f32 %v1417, 0.0
        %v1933 = vmin.f32 %v1867, 0.0
        %v1934 = vmin.f32 %v1869, 0.0
        %v1935 = vmul.f32 %v1903, 1.442695
        %v1936 = vpow.pop %v1935
        %v1937 = vmul.f32 %v1904, 1.442695
        %v1938 = vpow.pop %v1937
        %v1939 = vmul.f32 %v1905, 1.442695
        %v1940 = vpow.pop %v1939
        %v1941 = vmul.f32 %v1906, 1.442695
        %v1942 = vpow.pop %v1941
        %v1943 = vmul.f32 %v1907, 1.442695
        %v1944 = vpow.pop %v1943
        %v1945 = vmul.f32 %v1908, 1.442695
        %v1946 = vpow.pop %v1945
        %v1947 = vmul.f32 %v1909, 1.442695
        %v1948 = vpow.pop %v1947
        %v1949 = vmul.f32 %v1910, 1.442695
        %v1950 = vpow.pop %v1949
        %v1951 = vmul.f32 %v1911, 1.442695
        %v1952 = vpow.pop %v1951
        %v1953 = vmul.f32 %v1912, 1.442695
        %v1954 = vpow.pop %v1953
        %v1955 = vmul.f32 %v1913, 1.442695
        %v1956 = vpow.pop %v1955
        %v1957 = vmul.f32 %v1914, 1.442695
        %v1958 = vpow.pop %v1957
        %v1959 = vmul.f32 %v1915, 1.442695
        %v1960 = vpow.pop %v1959
        %v1961 = vmul.f32 %v1916, 1.442695
        %v1962 = vpow.pop %v1961
        %v1963 = vmul.f32 %v1917, 1.442695
        %v1964 = vpow.pop %v1963
        %v1965 = vmul.f32 %v1918, 1.442695
        %v1966 = vpow.pop %v1965
        %v1967 = vmul.f32 %v1919, 1.442695
        %v1968 = vpow.pop %v1967
        %v1969 = vmul.f32 %v1920, 1.442695
        %v1970 = vpow.pop %v1969
        %v1971 = vmul.f32 %v1921, 1.442695
        %v1972 = vpow.pop %v1971
        %v1973 = vmul.f32 %v1922, 1.442695
        %v1974 = vpow.pop %v1973
        %v1975 = vmul.f32 %v1923, 1.442695
        %v1976 = vpow.pop %v1975
        %v1977 = vmul.f32 %v1924, 1.442695
        %v1978 = vpow.pop %v1977
        %v1979 = vmul.f32 %v1925, 1.442695
        %v1980 = vpow.pop %v1979
        %v1981 = vmul.f32 %v1926, 1.442695
        %v1982 = vpow.pop %v1981
        %v1983 = vmul.f32 %v1927, 1.442695
        %v1984 = vpow.pop %v1983
        %v1985 = vmul.f32 %v1928, 1.442695
        %v1986 = vpow.pop %v1985
        %v1987 = vmul.f32 %v1929, 1.442695
        %v1988 = vpow.pop %v1987
        %v1989 = vmul.f32 %v1930, 1.442695
        %v1990 = vpow.pop %v1989
        %v1991 = vmul.f32 %v1931, 1.442695
        %v1992 = vpow.pop %v1991
        %v1993 = vmul.f32 %v1932, 1.442695
        %v1994 = vpow.pop %v1993
        %v1995 = vmul.f32 %v1933, 1.442695
        %v1996 = vpow.pop %v1995
        %v1997 = vmul.f32 %v1934, 1.442695
        %v1998 = vpow.pop %v1997
        %v1999 = vsub.f32 %v1936, 1.0
        %v2000 = vsub.f32 %v1938, 1.0
        %v2001 = vsub.f32 %v1940, 1.0
        %v2002 = vsub.f32 %v1942, 1.0
        %v2003 = vsub.f32 %v1944, 1.0
        %v2004 = vsub.f32 %v1946, 1.0
        %v2005 = vsub.f32 %v1948, 1.0
        %v2006 = vsub.f32 %v1950, 1.0
        %v2007 = vsub.f32 %v1952, 1.0
        %v2008 = vsub.f32 %v1954, 1.0
        %v2009 = vsub.f32 %v1956, 1.0
        %v2010 = vsub.f32 %v1958, 1.0
        %v2011 = vsub.f32 %v1960, 1.0
        %v2012 = vsub.f32 %v1962, 1.0
        %v2013 = vsub.f32 %v1964, 1.0
        %v2014 = vsub.f32 %v1966, 1.0
        %v2015 = vsub.f32 %v1968, 1.0
        %v2016 = vsub.f32 %v1970, 1.0
        %v2017 = vsub.f32 %v1972, 1.0
        %v2018 = vsub.f32 %v1974, 1.0
        %v2019 = vsub.f32 %v1976, 1.0
        %v2020 = vsub.f32 %v1978, 1.0
        %v2021 = vsub.f32 %v1980, 1.0
        %v2022 = vsub.f32 %v1982, 1.0
        %v2023 = vsub.f32 %v1984, 1.0
        %v2024 = vsub.f32 %v1986, 1.0
        %v2025 = vsub.f32 %v1988, 1.0
        %v2026 = vsub.f32 %v1990, 1.0
        %v2027 = vsub.f32 %v1992, 1.0
        %v2028 = vsub.f32 %v1994, 1.0
        %v2029 = vsub.f32 %v1996, 1.0
        %v2030 = vsub.f32 %v1998, 1.0
        %v2031 = vsel %vm1871, %v1373, %v1999
        %v2032 = vsel %vm1872, %v1375, %v2000
        %v2033 = vsel %vm1873, %v1825, %v2001
        %v2034 = vsel %vm1874, %v1827, %v2002
        %v2035 = vsel %vm1875, %v1379, %v2003
        %v2036 = vsel %vm1876, %v1381, %v2004
        %v2037 = vsel %vm1877, %v1831, %v2005
        %v2038 = vsel %vm1878, %v1833, %v2006
        %v2039 = vsel %vm1879, %v1385, %v2007
        %v2040 = vsel %vm1880, %v1387, %v2008
        %v2041 = vsel %vm1881, %v1837, %v2009
        %v2042 = vsel %vm1882, %v1839, %v2010
        %v2043 = vsel %vm1883, %v1391, %v2011
        %v2044 = vsel %vm1884, %v1393, %v2012
        %v2045 = vsel %vm1885, %v1843, %v2013
        %v2046 = vsel %vm1886, %v1845, %v2014
        %v2047 = vsel %vm1887, %v1397, %v2015
        %v2048 = vsel %vm1888, %v1399, %v2016
        %v2049 = vsel %vm1889, %v1849, %v2017
        %v2050 = vsel %vm1890, %v1851, %v2018
        %v2051 = vsel %vm1891, %v1403, %v2019
        %v2052 = vsel %vm1892, %v1405, %v2020
        %v2053 = vsel %vm1893, %v1855, %v2021
        %v2054 = vsel %vm1894, %v1857, %v2022
        %v2055 = vsel %vm1895, %v1409, %v2023
        %v2056 = vsel %vm1896, %v1411, %v2024
        %v2057 = vsel %vm1897, %v1861, %v2025
        %v2058 = vsel %vm1898, %v1863, %v2026
        %v2059 = vsel %vm1899, %v1415, %v2027
        %v2060 = vsel %vm1900, %v1417, %v2028
        %v2061 = vsel %vm1901, %v1867, %v2029
        %v2062 = vsel %vm1902, %v1869, %v2030
        %v2063 = vld [vmem:[%s3] sm:$0xff]
        %v2064 = vld [vmem:[%s3 + $0x8] sm:$0xff]
        %v2065 = vld [vmem:[%s3 + $0x10] sm:$0xff]
        %v2066 = vld [vmem:[%s3 + $0x18] sm:$0xff]
        %v2067 = vld [vmem:[%s3 + $0x20] sm:$0xff]
        %v2068 = vld [vmem:[%s3 + $0x28] sm:$0xff]
        %v2069 = vld [vmem:[%s3 + $0x30] sm:$0xff]
        %v2070 = vld [vmem:[%s3 + $0x38] sm:$0xff]
        %v2071 = vld [vmem:[%s3 + $0x40] sm:$0xff]
        %v2072 = vld [vmem:[%s3 + $0x48] sm:$0xff]
        %v2073 = vld [vmem:[%s3 + $0x50] sm:$0xff]
        %v2074 = vld [vmem:[%s3 + $0x58] sm:$0xff]
        %v2075 = vld [vmem:[%s3 + $0x60] sm:$0xff]
        %v2076 = vld [vmem:[%s3 + $0x68] sm:$0xff]
        %v2077 = vld [vmem:[%s3 + $0x70] sm:$0xff]
        %v2078 = vld [vmem:[%s3 + $0x78] sm:$0xff]
        %v2079 = vld [vmem:[%s3 + $0x80] sm:$0xff]
        %v2080 = vld [vmem:[%s3 + $0x88] sm:$0xff]
        %v2081 = vld [vmem:[%s3 + $0x90] sm:$0xff]
        %v2082 = vld [vmem:[%s3 + $0x98] sm:$0xff]
        %v2083 = vld [vmem:[%s3 + $0xa0] sm:$0xff]
        %v2084 = vld [vmem:[%s3 + $0xa8] sm:$0xff]
        %v2085 = vld [vmem:[%s3 + $0xb0] sm:$0xff]
        %v2086 = vld [vmem:[%s3 + $0xb8] sm:$0xff]
        %v2087 = vld [vmem:[%s3 + $0xc0] sm:$0xff]
        %v2088 = vld [vmem:[%s3 + $0xc8] sm:$0xff]
        %v2089 = vld [vmem:[%s3 + $0xd0] sm:$0xff]
        %v2090 = vld [vmem:[%s3 + $0xd8] sm:$0xff]
        %v2091 = vld [vmem:[%s3 + $0xe0] sm:$0xff]
        %v2092 = vld [vmem:[%s3 + $0xe8] sm:$0xff]
        %v2093 = vld [vmem:[%s3 + $0xf0] sm:$0xff]
        %v2094 = vld [vmem:[%s3 + $0xf8] sm:$0xff]
        %v2095 = vld [vmem:[%s3 + $0x100] sm:$0xff]
        %v2096 = vld [vmem:[%s3 + $0x108] sm:$0xff]
        %v2097 = vld [vmem:[%s3 + $0x110] sm:$0xff]
        %v2098 = vld [vmem:[%s3 + $0x118] sm:$0xff]
        %v2099 = vld [vmem:[%s3 + $0x120] sm:$0xff]
        %v2100 = vld [vmem:[%s3 + $0x128] sm:$0xff]
        %v2101 = vld [vmem:[%s3 + $0x130] sm:$0xff]
        %v2102 = vld [vmem:[%s3 + $0x138] sm:$0xff]
        %v2103 = vld [vmem:[%s3 + $0x140] sm:$0xff]
        %v2104 = vld [vmem:[%s3 + $0x148] sm:$0xff]
        %v2105 = vld [vmem:[%s3 + $0x150] sm:$0xff]
        %v2106 = vld [vmem:[%s3 + $0x158] sm:$0xff]
        %v2107 = vld [vmem:[%s3 + $0x160] sm:$0xff]
        %v2108 = vld [vmem:[%s3 + $0x168] sm:$0xff]
        %v2109 = vld [vmem:[%s3 + $0x170] sm:$0xff]
        %v2110 = vld [vmem:[%s3 + $0x178] sm:$0xff]
        %v2111 = vld [vmem:[%s3 + $0x180] sm:$0xff]
        %v2112 = vld [vmem:[%s3 + $0x188] sm:$0xff]
        %v2113 = vld [vmem:[%s3 + $0x190] sm:$0xff]
        %v2114 = vld [vmem:[%s3 + $0x198] sm:$0xff]
        %v2115 = vld [vmem:[%s3 + $0x1a0] sm:$0xff]
        %v2116 = vld [vmem:[%s3 + $0x1a8] sm:$0xff]
        %v2117 = vld [vmem:[%s3 + $0x1b0] sm:$0xff]
        %v2118 = vld [vmem:[%s3 + $0x1b8] sm:$0xff]
        %v2119 = vld [vmem:[%s3 + $0x1c0] sm:$0xff]
        %v2120 = vld [vmem:[%s3 + $0x1c8] sm:$0xff]
        %v2121 = vld [vmem:[%s3 + $0x1d0] sm:$0xff]
        %v2122 = vld [vmem:[%s3 + $0x1d8] sm:$0xff]
        %v2123 = vld [vmem:[%s3 + $0x1e0] sm:$0xff]
        %v2124 = vld [vmem:[%s3 + $0x1e8] sm:$0xff]
        %v2125 = vld [vmem:[%s3 + $0x1f0] sm:$0xff]
        %v2126 = vld [vmem:[%s3 + $0x1f8] sm:$0xff]
        %v2127 = vld [vmem:[%s4] sm:$0x1]
        %v2129 = vlaneseq
        %v2130 = vshrl.u32 %v2129, 7
        %v2131 = vsub.s32 0, %v2130
        %v2132 = vrot.slane %v2127, %v2131
        %2134 = vmatprep.subr.mxu0 0.0
        %2135 = vmatpush1.msra.mxu0 %v2078
        %2136 = vmatprep.subr.mxu0 0.0
        %2137 = vmatpush1.msra.mxu0 %v2077
        %2138 = vmatprep.subr.mxu0 0.0
        %2139 = vmatpush1.msra.mxu0 %v2076
        %2140 = vmatprep.subr.mxu0 0.0
        %2141 = vmatpush1.msra.mxu0 %v2075
        %2142 = vmatprep.subr.mxu0 0.0
        %2143 = vmatpush1.msra.mxu0 %v2074
        %2144 = vmatprep.subr.mxu0 0.0
        %2145 = vmatpush1.msra.mxu0 %v2073
        %2146 = vmatprep.subr.mxu0 0.0
        %2147 = vmatpush1.msra.mxu0 %v2072
        %2148 = vmatprep.subr.mxu0 0.0
        %2149 = vmatpush1.msra.mxu0 %v2071
        %2150 = vmatprep.subr.mxu0 0.0
        %2151 = vmatpush1.msra.mxu0 %v2070
        %2152 = vmatprep.subr.mxu0 0.0
        %2153 = vmatpush1.msra.mxu0 %v2069
        %2154 = vmatprep.subr.mxu0 0.0
        %2155 = vmatpush1.msra.mxu0 %v2068
        %2156 = vmatprep.subr.mxu0 0.0
        %2157 = vmatpush1.msra.mxu0 %v2067
        %2158 = vmatprep.subr.mxu0 0.0
        %2159 = vmatpush1.msra.mxu0 %v2066
        %2160 = vmatprep.subr.mxu0 0.0
        %2161 = vmatpush1.msra.mxu0 %v2065
        %2162 = vmatprep.subr.mxu0 0.0
        %2163 = vmatpush1.msra.mxu0 %v2064
        %2164 = vmatprep.subr.mxu0 0.0
        %2165 = vmatpush1.msra.mxu0 %v2063
        %2166 = vmatprep.subr.mxu0 0.0
        %2167 = vmatpush2.msra.mxu0 %v2094
        %2168 = vmatprep.subr.mxu0 0.0
        %2169 = vmatpush2.msra.mxu0 %v2093
        %2170 = vmatprep.subr.mxu0 0.0
        %2171 = vmatpush2.msra.mxu0 %v2092
        %2172 = vmatprep.subr.mxu0 0.0
        %2173 = vmatpush2.msra.mxu0 %v2091
        %2174 = vmatprep.subr.mxu0 0.0
        %2175 = vmatpush2.msra.mxu0 %v2090
        %2176 = vmatprep.subr.mxu0 0.0
        %2177 = vmatpush2.msra.mxu0 %v2089
        %2178 = vmatprep.subr.mxu0 0.0
        %2179 = vmatpush2.msra.mxu0 %v2088
        %2180 = vmatprep.subr.mxu0 0.0
        %2181 = vmatpush2.msra.mxu0 %v2087
        %2182 = vmatprep.subr.mxu0 0.0
        %2183 = vmatpush2.msra.mxu0 %v2086
        %2184 = vmatprep.subr.mxu0 0.0
        %2185 = vmatpush2.msra.mxu0 %v2085
        %2186 = vmatprep.subr.mxu0 0.0
        %2187 = vmatpush2.msra.mxu0 %v2084
        %2188 = vmatprep.subr.mxu0 0.0
        %2189 = vmatpush2.msra.mxu0 %v2083
        %2190 = vmatprep.subr.mxu0 0.0
        %2191 = vmatpush2.msra.mxu0 %v2082
        %2192 = vmatprep.subr.mxu0 0.0
        %2193 = vmatpush2.msra.mxu0 %v2081
        %2194 = vmatprep.subr.mxu0 0.0
        %2195 = vmatpush2.msra.mxu0 %v2080
        %2196 = vmatprep.subr.mxu0 0.0
        %2197 = vmatpush2.msra.mxu0 %v2079
        %2198 = vmatprep.mubr.f32.mxu0 %v2032
        %2199 = vmatmul.mubr.f32.gmra.mxu0 %v2031
        %v2200 = vpop.f32.mrf.mxu0
        %v2201 = vadd.f32 %v2132, %v2200
        %v2202 = vpop.f32.mrf.mxu0
        %2203 = vmatprep.mubr.f32.mxu0 %v2036
        %2204 = vmatmul.mubr.f32.gmra.mxu0 %v2035
        %v2205 = vpop.f32.mrf.mxu0
        %v2206 = vadd.f32 %v2132, %v2205
        %v2207 = vpop.f32.mrf.mxu0
        %2208 = vmatprep.mubr.f32.mxu0 %v2040
        %2209 = vmatmul.mubr.f32.gmra.mxu0 %v2039
        %v2210 = vpop.f32.mrf.mxu0
        %v2211 = vadd.f32 %v2132, %v2210
        %v2212 = vpop.f32.mrf.mxu0
        %2213 = vmatprep.mubr.f32.mxu0 %v2044
        %2214 = vmatmul.mubr.f32.gmra.mxu0 %v2043
        %v2215 = vpop.f32.mrf.mxu0
        %v2216 = vadd.f32 %v2132, %v2215
        %v2217 = vpop.f32.mrf.mxu0
        %2218 = vmatprep.mubr.f32.mxu0 %v2048
        %2219 = vmatmul.mubr.f32.gmra.mxu0 %v2047
        %v2220 = vpop.f32.mrf.mxu0
        %v2221 = vadd.f32 %v2132, %v2220
        %v2222 = vpop.f32.mrf.mxu0
        %2223 = vmatprep.mubr.f32.mxu0 %v2052
        %2224 = vmatmul.mubr.f32.gmra.mxu0 %v2051
        %v2225 = vpop.f32.mrf.mxu0
        %v2226 = vadd.f32 %v2132, %v2225
        %v2227 = vpop.f32.mrf.mxu0
        %2228 = vmatprep.mubr.f32.mxu0 %v2056
        %2229 = vmatmul.mubr.f32.gmra.mxu0 %v2055
        %v2230 = vpop.f32.mrf.mxu0
        %v2231 = vadd.f32 %v2132, %v2230
        %v2232 = vpop.f32.mrf.mxu0
        %2233 = vmatprep.mubr.f32.mxu0 %v2060
        %2234 = vmatmul.mubr.f32.gmra.mxu0 %v2059
        %v2235 = vpop.f32.mrf.mxu0
        %v2236 = vadd.f32 %v2132, %v2235
        %v2237 = vpop.f32.mrf.mxu0
        %2238 = vdwg.mxu0
        %2239 = vmatprep.subr.mxu0 0.0
        %2240 = vmatpush1.msra.mxu0 %v2110
        %2241 = vmatprep.subr.mxu0 0.0
        %2242 = vmatpush1.msra.mxu0 %v2109
        %2243 = vmatprep.subr.mxu0 0.0
        %2244 = vmatpush1.msra.mxu0 %v2108
        %2245 = vmatprep.subr.mxu0 0.0
        %2246 = vmatpush1.msra.mxu0 %v2107
        %2247 = vmatprep.subr.mxu0 0.0
        %2248 = vmatpush1.msra.mxu0 %v2106
        %2249 = vmatprep.subr.mxu0 0.0
        %2250 = vmatpush1.msra.mxu0 %v2105
        %2251 = vmatprep.subr.mxu0 0.0
        %2252 = vmatpush1.msra.mxu0 %v2104
        %2253 = vmatprep.subr.mxu0 0.0
        %2254 = vmatpush1.msra.mxu0 %v2103
        %2255 = vmatprep.subr.mxu0 0.0
        %2256 = vmatpush1.msra.mxu0 %v2102
        %2257 = vmatprep.subr.mxu0 0.0
        %2258 = vmatpush1.msra.mxu0 %v2101
        %2259 = vmatprep.subr.mxu0 0.0
        %2260 = vmatpush1.msra.mxu0 %v2100
        %2261 = vmatprep.subr.mxu0 0.0
        %2262 = vmatpush1.msra.mxu0 %v2099
        %2263 = vmatprep.subr.mxu0 0.0
        %2264 = vmatpush1.msra.mxu0 %v2098
        %2265 = vmatprep.subr.mxu0 0.0
        %2266 = vmatpush1.msra.mxu0 %v2097
        %2267 = vmatprep.subr.mxu0 0.0
        %2268 = vmatpush1.msra.mxu0 %v2096
        %2269 = vmatprep.subr.mxu0 0.0
        %2270 = vmatpush1.msra.mxu0 %v2095
        %2271 = vmatprep.subr.mxu0 0.0
        %2272 = vmatpush2.msra.mxu0 %v2126
        %2273 = vmatprep.subr.mxu0 0.0
        %2274 = vmatpush2.msra.mxu0 %v2125
        %2275 = vmatprep.subr.mxu0 0.0
        %2276 = vmatpush2.msra.mxu0 %v2124
        %2277 = vmatprep.subr.mxu0 0.0
        %2278 = vmatpush2.msra.mxu0 %v2123
        %2279 = vmatprep.subr.mxu0 0.0
        %2280 = vmatpush2.msra.mxu0 %v2122
        %2281 = vmatprep.subr.mxu0 0.0
        %2282 = vmatpush2.msra.mxu0 %v2121
        %2283 = vmatprep.subr.mxu0 0.0
        %2284 = vmatpush2.msra.mxu0 %v2120
        %2285 = vmatprep.subr.mxu0 0.0
        %2286 = vmatpush2.msra.mxu0 %v2119
        %2287 = vmatprep.subr.mxu0 0.0
        %2288 = vmatpush2.msra.mxu0 %v2118
        %2289 = vmatprep.subr.mxu0 0.0
        %2290 = vmatpush2.msra.mxu0 %v2117
        %2291 = vmatprep.subr.mxu0 0.0
        %2292 = vmatpush2.msra.mxu0 %v2116
        %2293 = vmatprep.subr.mxu0 0.0
        %2294 = vmatpush2.msra.mxu0 %v2115
        %2295 = vmatprep.subr.mxu0 0.0
        %2296 = vmatpush2.msra.mxu0 %v2114
        %2297 = vmatprep.subr.mxu0 0.0
        %2298 = vmatpush2.msra.mxu0 %v2113
        %2299 = vmatprep.subr.mxu0 0.0
        %2300 = vmatpush2.msra.mxu0 %v2112
        %2301 = vmatprep.subr.mxu0 0.0
        %2302 = vmatpush2.msra.mxu0 %v2111
        %2303 = vmatprep.mubr.f32.mxu0 %v2034
        %2304 = vmatmul.mubr.f32.gmra.mxu0 %v2033
        %v2305 = vpop.f32.mrf.mxu0
        %v2306 = vadd.f32 %v2201, %v2305
        %v2307 = vpop.f32.mrf.mxu0
        %2308 = vmatprep.mubr.f32.mxu0 %v2038
        %2309 = vmatmul.mubr.f32.gmra.mxu0 %v2037
        %v2310 = vpop.f32.mrf.mxu0
        %v2311 = vadd.f32 %v2206, %v2310
        %v2312 = vpop.f32.mrf.mxu0
        %2313 = vmatprep.mubr.f32.mxu0 %v2042
        %2314 = vmatmul.mubr.f32.gmra.mxu0 %v2041
        %v2315 = vpop.f32.mrf.mxu0
        %v2316 = vadd.f32 %v2211, %v2315
        %v2317 = vpop.f32.mrf.mxu0
        %2318 = vmatprep.mubr.f32.mxu0 %v2046
        %2319 = vmatmul.mubr.f32.gmra.mxu0 %v2045
        %v2320 = vpop.f32.mrf.mxu0
        %v2321 = vadd.f32 %v2216, %v2320
        %v2322 = vpop.f32.mrf.mxu0
        %2323 = vmatprep.mubr.f32.mxu0 %v2050
        %2324 = vmatmul.mubr.f32.gmra.mxu0 %v2049
        %v2325 = vpop.f32.mrf.mxu0
        %v2326 = vadd.f32 %v2221, %v2325
        %v2327 = vpop.f32.mrf.mxu0
        %2328 = vmatprep.mubr.f32.mxu0 %v2054
        %2329 = vmatmul.mubr.f32.gmra.mxu0 %v2053
        %v2330 = vpop.f32.mrf.mxu0
        %v2331 = vadd.f32 %v2226, %v2330
        %v2332 = vpop.f32.mrf.mxu0
        %2333 = vmatprep.mubr.f32.mxu0 %v2058
        %2334 = vmatmul.mubr.f32.gmra.mxu0 %v2057
        %v2335 = vpop.f32.mrf.mxu0
        %v2336 = vadd.f32 %v2231, %v2335
        %v2337 = vpop.f32.mrf.mxu0
        %2338 = vmatprep.mubr.f32.mxu0 %v2062
        %2339 = vmatmul.mubr.f32.gmra.mxu0 %v2061
        %v2340 = vpop.f32.mrf.mxu0
        %v2341 = vadd.f32 %v2236, %v2340
        %v2342 = vpop.f32.mrf.mxu0
        %2343 = vdwg.mxu0
        %vm2344 = vcmp.gt.f32.partialorder %v2306, 0.0
        %vm2345 = vcmp.gt.f32.partialorder %v2311, 0.0
        %vm2346 = vcmp.gt.f32.partialorder %v2316, 0.0
        %vm2347 = vcmp.gt.f32.partialorder %v2321, 0.0
        %vm2348 = vcmp.gt.f32.partialorder %v2326, 0.0
        %vm2349 = vcmp.gt.f32.partialorder %v2331, 0.0
        %vm2350 = vcmp.gt.f32.partialorder %v2336, 0.0
        %vm2351 = vcmp.gt.f32.partialorder %v2341, 0.0
        %v2352 = vmin.f32 %v2306, 0.0
        %v2353 = vmin.f32 %v2311, 0.0
        %v2354 = vmin.f32 %v2316, 0.0
        %v2355 = vmin.f32 %v2321, 0.0
        %v2356 = vmin.f32 %v2326, 0.0
        %v2357 = vmin.f32 %v2331, 0.0
        %v2358 = vmin.f32 %v2336, 0.0
        %v2359 = vmin.f32 %v2341, 0.0
        %v2360 = vmul.f32 %v2352, 1.442695
        %v2361 = vpow.pop %v2360
        %v2362 = vmul.f32 %v2353, 1.442695
        %v2363 = vpow.pop %v2362
        %v2364 = vmul.f32 %v2354, 1.442695
        %v2365 = vpow.pop %v2364
        %v2366 = vmul.f32 %v2355, 1.442695
        %v2367 = vpow.pop %v2366
        %v2368 = vmul.f32 %v2356, 1.442695
        %v2369 = vpow.pop %v2368
        %v2370 = vmul.f32 %v2357, 1.442695
        %v2371 = vpow.pop %v2370
        %v2372 = vmul.f32 %v2358, 1.442695
        %v2373 = vpow.pop %v2372
        %v2374 = vmul.f32 %v2359, 1.442695
        %v2375 = vpow.pop %v2374
        %v2376 = vsub.f32 %v2361, 1.0
        %v2377 = vsub.f32 %v2363, 1.0
        %v2378 = vsub.f32 %v2365, 1.0
        %v2379 = vsub.f32 %v2367, 1.0
        %v2380 = vsub.f32 %v2369, 1.0
        %v2381 = vsub.f32 %v2371, 1.0
        %v2382 = vsub.f32 %v2373, 1.0
        %v2383 = vsub.f32 %v2375, 1.0
        %v2384 = vsel %vm2344, %v2306, %v2376
        %v2385 = vsel %vm2345, %v2311, %v2377
        %v2386 = vsel %vm2346, %v2316, %v2378
        %v2387 = vsel %vm2347, %v2321, %v2379
        %v2388 = vsel %vm2348, %v2326, %v2380
        %v2389 = vsel %vm2349, %v2331, %v2381
        %v2390 = vsel %vm2350, %v2336, %v2382
        %v2391 = vsel %vm2351, %v2341, %v2383
        %v2392 = vld [vmem:[%s5] sm:$0xff]
        %v2393 = vld [vmem:[%s5 + $0x8] sm:$0xff]
        %vm2394 = vcmask 523264
        %v2396 = vsel %vm2394, %v2392, 0
        %v2399 = vsel %vm2394, %v2393, 0
        %2401 = vmatprep.subr.mxu0 0.0
        %2402 = vmatpush1.msra.mxu0 0.0
        %2403 = vmatprep.subr.mxu0 0.0
        %2404 = vmatpush1.msra.mxu0 0.0
        %2405 = vmatprep.subr.mxu0 0.0
        %2406 = vmatpush1.msra.mxu0 0.0
        %2407 = vmatprep.subr.mxu0 0.0
        %2408 = vmatpush1.msra.mxu0 0.0
        %2409 = vmatprep.subr.mxu0 0.0
        %2410 = vmatpush1.msra.mxu0 0.0
        %2411 = vmatprep.subr.mxu0 0.0
        %2412 = vmatpush1.msra.mxu0 0.0
        %2413 = vmatprep.subr.mxu0 0.0
        %2414 = vmatpush1.msra.mxu0 0.0
        %2415 = vmatprep.subr.mxu0 0.0
        %2416 = vmatpush1.msra.mxu0 0.0
        %2417 = vmatprep.subr.mxu0 0.0
        %2418 = vmatpush1.msra.mxu0 %v2391
        %2419 = vmatprep.subr.mxu0 0.0
        %2420 = vmatpush1.msra.mxu0 %v2390
        %2421 = vmatprep.subr.mxu0 0.0
        %2422 = vmatpush1.msra.mxu0 %v2389
        %2423 = vmatprep.subr.mxu0 0.0
        %2424 = vmatpush1.msra.mxu0 %v2388
        %2425 = vmatprep.subr.mxu0 0.0
        %2426 = vmatpush1.msra.mxu0 %v2387
        %2427 = vmatprep.subr.mxu0 0.0
        %2428 = vmatpush1.msra.mxu0 %v2386
        %2429 = vmatprep.subr.mxu0 0.0
        %2430 = vmatpush1.msra.mxu0 %v2385
        %2431 = vmatprep.subr.mxu0 0.0
        %2432 = vmatpush1.msra.mxu0 %v2384
        %2433 = vmatprep.subr.mxu0 0.0
        %2434 = vmatpush2.msra.mxu0 0.0
        %2435 = vmatprep.subr.mxu0 0.0
        %2436 = vmatpush2.msra.mxu0 0.0
        %2437 = vmatprep.subr.mxu0 0.0
        %2438 = vmatpush2.msra.mxu0 0.0
        %2439 = vmatprep.subr.mxu0 0.0
        %2440 = vmatpush2.msra.mxu0 0.0
        %2441 = vmatprep.subr.mxu0 0.0
        %2442 = vmatpush2.msra.mxu0 0.0
        %2443 = vmatprep.subr.mxu0 0.0
        %2444 = vmatpush2.msra.mxu0 0.0
        %2445 = vmatprep.subr.mxu0 0.0
        %2446 = vmatpush2.msra.mxu0 0.0
        %2447 = vmatprep.subr.mxu0 0.0
        %2448 = vmatpush2.msra.mxu0 0.0
        %2449 = vmatprep.subr.mxu0 0.0
        %2450 = vmatpush2.msra.mxu0 0.0
        %2451 = vmatprep.subr.mxu0 0.0
        %2452 = vmatpush2.msra.mxu0 0.0
        %2453 = vmatprep.subr.mxu0 0.0
        %2454 = vmatpush2.msra.mxu0 0.0
        %2455 = vmatprep.subr.mxu0 0.0
        %2456 = vmatpush2.msra.mxu0 0.0
        %2457 = vmatprep.subr.mxu0 0.0
        %2458 = vmatpush2.msra.mxu0 0.0
        %2459 = vmatprep.subr.mxu0 0.0
        %2460 = vmatpush2.msra.mxu0 0.0
        %2461 = vmatprep.subr.mxu0 0.0
        %2462 = vmatpush2.msra.mxu0 0.0
        %2463 = vmatprep.subr.mxu0 0.0
        %2464 = vmatpush2.msra.mxu0 0.0
        %2465 = vmatprep.mubr.f32.mxu0 0.0
        %2466 = vmatmul.mubr.f32.gmra.mxu0 %v2396
        %v2467 = vpop.f32.mrf.mxu0
        %v2468 = vadd.f32 0.0, %v2467
        %v2469 = vpop.f32.mrf.mxu0
        %2470 = vmatprep.mubr.f32.mxu0 0.0
        %2471 = vmatmul.mubr.f32.gmra.mxu0 %v2399
        %v2472 = vpop.f32.mrf.mxu0
        %v2473 = vadd.f32 0.0, %v2472
        %v2474 = vpop.f32.mrf.mxu0
        %2475 = vdwg.mxu0
        %2476 = vst.msk [vmem:[%s363] sm:$0xff] %vm2394, %v2468
        %2477 = vst.msk [vmem:[%s363 + $0x8] sm:$0xff] %vm2394, %v2473
        %v2478 = vld [vmem:[%s6] sm:$0xff]
        %v2479 = vld [vmem:[%s6 + $0x8] sm:$0xff]
        %v2480 = vld [vmem:[%s6 + $0x10] sm:$0xff]
        %v2481 = vld [vmem:[%s6 + $0x18] sm:$0xff]
        %v2482 = vld [vmem:[%s6 + $0x20] sm:$0xff]
        %v2483 = vld [vmem:[%s6 + $0x28] sm:$0xff]
        %v2484 = vld [vmem:[%s6 + $0x30] sm:$0xff]
        %v2485 = vld [vmem:[%s6 + $0x38] sm:$0xff]
        %s2486 = scalar_lea.vmem %s6, 64
        %v2487 = vld [vmem:[%s2486] sm:$0xff]
        %v2488 = vld [vmem:[%s2486 + $0x8] sm:$0xff]
        %v2489 = vld [vmem:[%s2486 + $0x10] sm:$0xff]
        %v2490 = vld [vmem:[%s2486 + $0x18] sm:$0xff]
        %v2491 = vld [vmem:[%s2486 + $0x20] sm:$0xff]
        %v2492 = vld [vmem:[%s2486 + $0x28] sm:$0xff]
        %v2493 = vld [vmem:[%s2486 + $0x30] sm:$0xff]
        %v2494 = vld [vmem:[%s2486 + $0x38] sm:$0xff]
        %vm2498 = vcmask 1046528
        %v2499 = vrot.slane 0.0, 1
        %v2500 = vrot.slane %v2468, 1
        %v2501 = vsel %vm2498, %v2499, %v2500
        %v2502 = vrot.slane %v2473, 1
        %v2503 = vsel %vm2498, %v2500, %v2502
        %v2504 = vsel %vm2394, %v2501, 0
        %v2506 = vsel %vm2394, %v2503, 0
        %2508 = vmatprep.subr.mxu0 0.0
        %2509 = vmatpush1.msra.mxu0 0.0
        %2510 = vmatprep.subr.mxu0 0.0
        %2511 = vmatpush1.msra.mxu0 0.0
        %2512 = vmatprep.subr.mxu0 0.0
        %2513 = vmatpush1.msra.mxu0 0.0
        %2514 = vmatprep.subr.mxu0 0.0
        %2515 = vmatpush1.msra.mxu0 0.0
        %2516 = vmatprep.subr.mxu0 0.0
        %2517 = vmatpush1.msra.mxu0 0.0
        %2518 = vmatprep.subr.mxu0 0.0
        %2519 = vmatpush1.msra.mxu0 0.0
        %2520 = vmatprep.subr.mxu0 0.0
        %2521 = vmatpush1.msra.mxu0 0.0
        %2522 = vmatprep.subr.mxu0 0.0
        %2523 = vmatpush1.msra.mxu0 0.0
        %2524 = vmatprep.subr.mxu0 0.0
        %2525 = vmatpush1.msra.mxu0 %v2494
        %2526 = vmatprep.subr.mxu0 0.0
        %2527 = vmatpush1.msra.mxu0 %v2493
        %2528 = vmatprep.subr.mxu0 0.0
        %2529 = vmatpush1.msra.mxu0 %v2492
        %2530 = vmatprep.subr.mxu0 0.0
        %2531 = vmatpush1.msra.mxu0 %v2491
        %2532 = vmatprep.subr.mxu0 0.0
        %2533 = vmatpush1.msra.mxu0 %v2490
        %2534 = vmatprep.subr.mxu0 0.0
        %2535 = vmatpush1.msra.mxu0 %v2489
        %2536 = vmatprep.subr.mxu0 0.0
        %2537 = vmatpush1.msra.mxu0 %v2488
        %2538 = vmatprep.subr.mxu0 0.0
        %2539 = vmatpush1.msra.mxu0 %v2487
        %2540 = vmatprep.subr.mxu0 0.0
        %2541 = vmatpush2.msra.mxu0 0.0
        %2542 = vmatprep.subr.mxu0 0.0
        %2543 = vmatpush2.msra.mxu0 0.0
        %2544 = vmatprep.subr.mxu0 0.0
        %2545 = vmatpush2.msra.mxu0 0.0
        %2546 = vmatprep.subr.mxu0 0.0
        %2547 = vmatpush2.msra.mxu0 0.0
        %2548 = vmatprep.subr.mxu0 0.0
        %2549 = vmatpush2.msra.mxu0 0.0
        %2550 = vmatprep.subr.mxu0 0.0
        %2551 = vmatpush2.msra.mxu0 0.0
        %2552 = vmatprep.subr.mxu0 0.0
        %2553 = vmatpush2.msra.mxu0 0.0
        %2554 = vmatprep.subr.mxu0 0.0
        %2555 = vmatpush2.msra.mxu0 0.0
        %2556 = vmatprep.subr.mxu0 0.0
        %2557 = vmatpush2.msra.mxu0 0.0
        %2558 = vmatprep.subr.mxu0 0.0
        %2559 = vmatpush2.msra.mxu0 0.0
        %2560 = vmatprep.subr.mxu0 0.0
        %2561 = vmatpush2.msra.mxu0 0.0
        %2562 = vmatprep.subr.mxu0 0.0
        %2563 = vmatpush2.msra.mxu0 0.0
        %2564 = vmatprep.subr.mxu0 0.0
        %2565 = vmatpush2.msra.mxu0 0.0
        %2566 = vmatprep.subr.mxu0 0.0
        %2567 = vmatpush2.msra.mxu0 0.0
        %2568 = vmatprep.subr.mxu0 0.0
        %2569 = vmatpush2.msra.mxu0 0.0
        %2570 = vmatprep.subr.mxu0 0.0
        %2571 = vmatpush2.msra.mxu0 0.0
        %2572 = vmatprep.mubr.f32.mxu0 0.0
        %2573 = vmatmul.mubr.f32.gmra.mxu0 %v2504
        %v2574 = vpop.f32.mrf.mxu0
        %v2575 = vadd.f32 0.0, %v2574
        %v2576 = vpop.f32.mrf.mxu0
        %2577 = vmatprep.mubr.f32.mxu0 0.0
        %2578 = vmatmul.mubr.f32.gmra.mxu0 %v2506
        %v2579 = vpop.f32.mrf.mxu0
        %v2580 = vadd.f32 0.0, %v2579
        %v2581 = vpop.f32.mrf.mxu0
        %2582 = vdwg.mxu0
        %v2583 = vsel %vm2394, 0.0, 0
        %v2585 = vsel %vm2394, %v2468, 0
        %2587 = vmatprep.subr.mxu0 0.0
        %2588 = vmatpush1.msra.mxu0 0.0
        %2589 = vmatprep.subr.mxu0 0.0
        %2590 = vmatpush1.msra.mxu0 0.0
        %2591 = vmatprep.subr.mxu0 0.0
        %2592 = vmatpush1.msra.mxu0 0.0
        %2593 = vmatprep.subr.mxu0 0.0
        %2594 = vmatpush1.msra.mxu0 0.0
        %2595 = vmatprep.subr.mxu0 0.0
        %2596 = vmatpush1.msra.mxu0 0.0
        %2597 = vmatprep.subr.mxu0 0.0
        %2598 = vmatpush1.msra.mxu0 0.0
        %2599 = vmatprep.subr.mxu0 0.0
        %2600 = vmatpush1.msra.mxu0 0.0
        %2601 = vmatprep.subr.mxu0 0.0
        %2602 = vmatpush1.msra.mxu0 0.0
        %2603 = vmatprep.subr.mxu0 0.0
        %2604 = vmatpush1.msra.mxu0 %v2485
        %2605 = vmatprep.subr.mxu0 0.0
        %2606 = vmatpush1.msra.mxu0 %v2484
        %2607 = vmatprep.subr.mxu0 0.0
        %2608 = vmatpush1.msra.mxu0 %v2483
        %2609 = vmatprep.subr.mxu0 0.0
        %2610 = vmatpush1.msra.mxu0 %v2482
        %2611 = vmatprep.subr.mxu0 0.0
        %2612 = vmatpush1.msra.mxu0 %v2481
        %2613 = vmatprep.subr.mxu0 0.0
        %2614 = vmatpush1.msra.mxu0 %v2480
        %2615 = vmatprep.subr.mxu0 0.0
        %2616 = vmatpush1.msra.mxu0 %v2479
        %2617 = vmatprep.subr.mxu0 0.0
        %2618 = vmatpush1.msra.mxu0 %v2478
        %2619 = vmatprep.subr.mxu0 0.0
        %2620 = vmatpush2.msra.mxu0 0.0
        %2621 = vmatprep.subr.mxu0 0.0
        %2622 = vmatpush2.msra.mxu0 0.0
        %2623 = vmatprep.subr.mxu0 0.0
        %2624 = vmatpush2.msra.mxu0 0.0
        %2625 = vmatprep.subr.mxu0 0.0
        %2626 = vmatpush2.msra.mxu0 0.0
        %2627 = vmatprep.subr.mxu0 0.0
        %2628 = vmatpush2.msra.mxu0 0.0
        %2629 = vmatprep.subr.mxu0 0.0
        %2630 = vmatpush2.msra.mxu0 0.0
        %2631 = vmatprep.subr.mxu0 0.0
        %2632 = vmatpush2.msra.mxu0 0.0
        %2633 = vmatprep.subr.mxu0 0.0
        %2634 = vmatpush2.msra.mxu0 0.0
        %2635 = vmatprep.subr.mxu0 0.0
        %2636 = vmatpush2.msra.mxu0 0.0
        %2637 = vmatprep.subr.mxu0 0.0
        %2638 = vmatpush2.msra.mxu0 0.0
        %2639 = vmatprep.subr.mxu0 0.0
        %2640 = vmatpush2.msra.mxu0 0.0
        %2641 = vmatprep.subr.mxu0 0.0
        %2642 = vmatpush2.msra.mxu0 0.0
        %2643 = vmatprep.subr.mxu0 0.0
        %2644 = vmatpush2.msra.mxu0 0.0
        %2645 = vmatprep.subr.mxu0 0.0
        %2646 = vmatpush2.msra.mxu0 0.0
        %2647 = vmatprep.subr.mxu0 0.0
        %2648 = vmatpush2.msra.mxu0 0.0
        %2649 = vmatprep.subr.mxu0 0.0
        %2650 = vmatpush2.msra.mxu0 0.0
        %2651 = vmatprep.mubr.f32.mxu0 0.0
        %2652 = vmatmul.mubr.f32.gmra.mxu0 %v2583
        %v2653 = vpop.f32.mrf.mxu0
        %v2654 = vadd.f32 %v2575, %v2653
        %v2655 = vpop.f32.mrf.mxu0
        %2656 = vmatprep.mubr.f32.mxu0 0.0
        %2657 = vmatmul.mubr.f32.gmra.mxu0 %v2585
        %v2658 = vpop.f32.mrf.mxu0
        %v2659 = vadd.f32 %v2580, %v2658
        %v2660 = vpop.f32.mrf.mxu0
        %2661 = vdwg.mxu0
        %s2662 = scalar_lea.vmem %s6, 128
        %v2663 = vld [vmem:[%s2662] sm:$0xff]
        %v2664 = vld [vmem:[%s2662 + $0x8] sm:$0xff]
        %v2665 = vld [vmem:[%s2662 + $0x10] sm:$0xff]
        %v2666 = vld [vmem:[%s2662 + $0x18] sm:$0xff]
        %v2667 = vld [vmem:[%s2662 + $0x20] sm:$0xff]
        %v2668 = vld [vmem:[%s2662 + $0x28] sm:$0xff]
        %v2669 = vld [vmem:[%s2662 + $0x30] sm:$0xff]
        %v2670 = vld [vmem:[%s2662 + $0x38] sm:$0xff]
        %vm2671 = vcmask 1045504
        %v2672 = vrot.slane 0.0, 2
        %v2673 = vrot.slane %v2468, 2
        %v2674 = vsel %vm2671, %v2672, %v2673
        %v2675 = vrot.slane %v2473, 2
        %v2676 = vsel %vm2671, %v2673, %v2675
        %v2677 = vsel %vm2394, %v2674, 0
        %v2679 = vsel %vm2394, %v2676, 0
        %2681 = vmatprep.subr.mxu0 0.0
        %2682 = vmatpush1.msra.mxu0 0.0
        %2683 = vmatprep.subr.mxu0 0.0
        %2684 = vmatpush1.msra.mxu0 0.0
        %2685 = vmatprep.subr.mxu0 0.0
        %2686 = vmatpush1.msra.mxu0 0.0
        %2687 = vmatprep.subr.mxu0 0.0
        %2688 = vmatpush1.msra.mxu0 0.0
        %2689 = vmatprep.subr.mxu0 0.0
        %2690 = vmatpush1.msra.mxu0 0.0
        %2691 = vmatprep.subr.mxu0 0.0
        %2692 = vmatpush1.msra.mxu0 0.0
        %2693 = vmatprep.subr.mxu0 0.0
        %2694 = vmatpush1.msra.mxu0 0.0
        %2695 = vmatprep.subr.mxu0 0.0
        %2696 = vmatpush1.msra.mxu0 0.0
        %2697 = vmatprep.subr.mxu0 0.0
        %2698 = vmatpush1.msra.mxu0 %v2670
        %2699 = vmatprep.subr.mxu0 0.0
        %2700 = vmatpush1.msra.mxu0 %v2669
        %2701 = vmatprep.subr.mxu0 0.0
        %2702 = vmatpush1.msra.mxu0 %v2668
        %2703 = vmatprep.subr.mxu0 0.0
        %2704 = vmatpush1.msra.mxu0 %v2667
        %2705 = vmatprep.subr.mxu0 0.0
        %2706 = vmatpush1.msra.mxu0 %v2666
        %2707 = vmatprep.subr.mxu0 0.0
        %2708 = vmatpush1.msra.mxu0 %v2665
        %2709 = vmatprep.subr.mxu0 0.0
        %2710 = vmatpush1.msra.mxu0 %v2664
        %2711 = vmatprep.subr.mxu0 0.0
        %2712 = vmatpush1.msra.mxu0 %v2663
        %2713 = vmatprep.subr.mxu0 0.0
        %2714 = vmatpush2.msra.mxu0 0.0
        %2715 = vmatprep.subr.mxu0 0.0
        %2716 = vmatpush2.msra.mxu0 0.0
        %2717 = vmatprep.subr.mxu0 0.0
        %2718 = vmatpush2.msra.mxu0 0.0
        %2719 = vmatprep.subr.mxu0 0.0
        %2720 = vmatpush2.msra.mxu0 0.0
        %2721 = vmatprep.subr.mxu0 0.0
        %2722 = vmatpush2.msra.mxu0 0.0
        %2723 = vmatprep.subr.mxu0 0.0
        %2724 = vmatpush2.msra.mxu0 0.0
        %2725 = vmatprep.subr.mxu0 0.0
        %2726 = vmatpush2.msra.mxu0 0.0
        %2727 = vmatprep.subr.mxu0 0.0
        %2728 = vmatpush2.msra.mxu0 0.0
        %2729 = vmatprep.subr.mxu0 0.0
        %2730 = vmatpush2.msra.mxu0 0.0
        %2731 = vmatprep.subr.mxu0 0.0
        %2732 = vmatpush2.msra.mxu0 0.0
        %2733 = vmatprep.subr.mxu0 0.0
        %2734 = vmatpush2.msra.mxu0 0.0
        %2735 = vmatprep.subr.mxu0 0.0
        %2736 = vmatpush2.msra.mxu0 0.0
        %2737 = vmatprep.subr.mxu0 0.0
        %2738 = vmatpush2.msra.mxu0 0.0
        %2739 = vmatprep.subr.mxu0 0.0
        %2740 = vmatpush2.msra.mxu0 0.0
        %2741 = vmatprep.subr.mxu0 0.0
        %2742 = vmatpush2.msra.mxu0 0.0
        %2743 = vmatprep.subr.mxu0 0.0
        %2744 = vmatpush2.msra.mxu0 0.0
        %2745 = vmatprep.mubr.f32.mxu0 0.0
        %2746 = vmatmul.mubr.f32.gmra.mxu0 %v2677
        %v2747 = vpop.f32.mrf.mxu0
        %v2748 = vadd.f32 0.0, %v2747
        %v2749 = vpop.f32.mrf.mxu0
        %2750 = vmatprep.mubr.f32.mxu0 0.0
        %2751 = vmatmul.mubr.f32.gmra.mxu0 %v2679
        %v2752 = vpop.f32.mrf.mxu0
        %v2753 = vadd.f32 0.0, %v2752
        %v2754 = vpop.f32.mrf.mxu0
        %2755 = vdwg.mxu0
        %v2756 = vadd.f32 %v2654, %v2748
        %v2757 = vadd.f32 %v2659, %v2753
        %s2758 = scalar_lea.vmem %s6, 192
        %v2759 = vld [vmem:[%s2758] sm:$0xff]
        %v2760 = vld [vmem:[%s2758 + $0x8] sm:$0xff]
        %v2761 = vld [vmem:[%s2758 + $0x10] sm:$0xff]
        %v2762 = vld [vmem:[%s2758 + $0x18] sm:$0xff]
        %v2763 = vld [vmem:[%s2758 + $0x20] sm:$0xff]
        %v2764 = vld [vmem:[%s2758 + $0x28] sm:$0xff]
        %v2765 = vld [vmem:[%s2758 + $0x30] sm:$0xff]
        %v2766 = vld [vmem:[%s2758 + $0x38] sm:$0xff]
        %vm2767 = vcmask 1044480
        %v2768 = vrot.slane 0.0, 3
        %v2769 = vrot.slane %v2468, 3
        %v2770 = vsel %vm2767, %v2768, %v2769
        %v2771 = vrot.slane %v2473, 3
        %v2772 = vsel %vm2767, %v2769, %v2771
        %v2773 = vsel %vm2394, %v2770, 0
        %v2775 = vsel %vm2394, %v2772, 0
        %2777 = vmatprep.subr.mxu0 0.0
        %2778 = vmatpush1.msra.mxu0 0.0
        %2779 = vmatprep.subr.mxu0 0.0
        %2780 = vmatpush1.msra.mxu0 0.0
        %2781 = vmatprep.subr.mxu0 0.0
        %2782 = vmatpush1.msra.mxu0 0.0
        %2783 = vmatprep.subr.mxu0 0.0
        %2784 = vmatpush1.msra.mxu0 0.0
        %2785 = vmatprep.subr.mxu0 0.0
        %2786 = vmatpush1.msra.mxu0 0.0
        %2787 = vmatprep.subr.mxu0 0.0
        %2788 = vmatpush1.msra.mxu0 0.0
        %2789 = vmatprep.subr.mxu0 0.0
        %2790 = vmatpush1.msra.mxu0 0.0
        %2791 = vmatprep.subr.mxu0 0.0
        %2792 = vmatpush1.msra.mxu0 0.0
        %2793 = vmatprep.subr.mxu0 0.0
        %2794 = vmatpush1.msra.mxu0 %v2766
        %2795 = vmatprep.subr.mxu0 0.0
        %2796 = vmatpush1.msra.mxu0 %v2765
        %2797 = vmatprep.subr.mxu0 0.0
        %2798 = vmatpush1.msra.mxu0 %v2764
        %2799 = vmatprep.subr.mxu0 0.0
        %2800 = vmatpush1.msra.mxu0 %v2763
        %2801 = vmatprep.subr.mxu0 0.0
        %2802 = vmatpush1.msra.mxu0 %v2762
        %2803 = vmatprep.subr.mxu0 0.0
        %2804 = vmatpush1.msra.mxu0 %v2761
        %2805 = vmatprep.subr.mxu0 0.0
        %2806 = vmatpush1.msra.mxu0 %v2760
        %2807 = vmatprep.subr.mxu0 0.0
        %2808 = vmatpush1.msra.mxu0 %v2759
        %2809 = vmatprep.subr.mxu0 0.0
        %2810 = vmatpush2.msra.mxu0 0.0
        %2811 = vmatprep.subr.mxu0 0.0
        %2812 = vmatpush2.msra.mxu0 0.0
        %2813 = vmatprep.subr.mxu0 0.0
        %2814 = vmatpush2.msra.mxu0 0.0
        %2815 = vmatprep.subr.mxu0 0.0
        %2816 = vmatpush2.msra.mxu0 0.0
        %2817 = vmatprep.subr.mxu0 0.0
        %2818 = vmatpush2.msra.mxu0 0.0
        %2819 = vmatprep.subr.mxu0 0.0
        %2820 = vmatpush2.msra.mxu0 0.0
        %2821 = vmatprep.subr.mxu0 0.0
        %2822 = vmatpush2.msra.mxu0 0.0
        %2823 = vmatprep.subr.mxu0 0.0
        %2824 = vmatpush2.msra.mxu0 0.0
        %2825 = vmatprep.subr.mxu0 0.0
        %2826 = vmatpush2.msra.mxu0 0.0
        %2827 = vmatprep.subr.mxu0 0.0
        %2828 = vmatpush2.msra.mxu0 0.0
        %2829 = vmatprep.subr.mxu0 0.0
        %2830 = vmatpush2.msra.mxu0 0.0
        %2831 = vmatprep.subr.mxu0 0.0
        %2832 = vmatpush2.msra.mxu0 0.0
        %2833 = vmatprep.subr.mxu0 0.0
        %2834 = vmatpush2.msra.mxu0 0.0
        %2835 = vmatprep.subr.mxu0 0.0
        %2836 = vmatpush2.msra.mxu0 0.0
        %2837 = vmatprep.subr.mxu0 0.0
        %2838 = vmatpush2.msra.mxu0 0.0
        %2839 = vmatprep.subr.mxu0 0.0
        %2840 = vmatpush2.msra.mxu0 0.0
        %2841 = vmatprep.mubr.f32.mxu0 0.0
        %2842 = vmatmul.mubr.f32.gmra.mxu0 %v2773
        %v2843 = vpop.f32.mrf.mxu0
        %v2844 = vadd.f32 0.0, %v2843
        %v2845 = vpop.f32.mrf.mxu0
        %2846 = vmatprep.mubr.f32.mxu0 0.0
        %2847 = vmatmul.mubr.f32.gmra.mxu0 %v2775
        %v2848 = vpop.f32.mrf.mxu0
        %v2849 = vadd.f32 0.0, %v2848
        %v2850 = vpop.f32.mrf.mxu0
        %2851 = vdwg.mxu0
        %v2852 = vadd.f32 %v2756, %v2844
        %v2853 = vadd.f32 %v2757, %v2849
        %s2854 = scalar_lea.vmem %s6, 256
        %v2855 = vld [vmem:[%s2854] sm:$0xff]
        %v2856 = vld [vmem:[%s2854 + $0x8] sm:$0xff]
        %v2857 = vld [vmem:[%s2854 + $0x10] sm:$0xff]
        %v2858 = vld [vmem:[%s2854 + $0x18] sm:$0xff]
        %v2859 = vld [vmem:[%s2854 + $0x20] sm:$0xff]
        %v2860 = vld [vmem:[%s2854 + $0x28] sm:$0xff]
        %v2861 = vld [vmem:[%s2854 + $0x30] sm:$0xff]
        %v2862 = vld [vmem:[%s2854 + $0x38] sm:$0xff]
        %vm2863 = vcmask 1043456
        %v2864 = vrot.slane 0.0, 4
        %v2865 = vrot.slane %v2468, 4
        %v2866 = vsel %vm2863, %v2864, %v2865
        %v2867 = vrot.slane %v2473, 4
        %v2868 = vsel %vm2863, %v2865, %v2867
        %v2869 = vsel %vm2394, %v2866, 0
        %v2871 = vsel %vm2394, %v2868, 0
        %2873 = vmatprep.subr.mxu0 0.0
        %2874 = vmatpush1.msra.mxu0 0.0
        %2875 = vmatprep.subr.mxu0 0.0
        %2876 = vmatpush1.msra.mxu0 0.0
        %2877 = vmatprep.subr.mxu0 0.0
        %2878 = vmatpush1.msra.mxu0 0.0
        %2879 = vmatprep.subr.mxu0 0.0
        %2880 = vmatpush1.msra.mxu0 0.0
        %2881 = vmatprep.subr.mxu0 0.0
        %2882 = vmatpush1.msra.mxu0 0.0
        %2883 = vmatprep.subr.mxu0 0.0
        %2884 = vmatpush1.msra.mxu0 0.0
        %2885 = vmatprep.subr.mxu0 0.0
        %2886 = vmatpush1.msra.mxu0 0.0
        %2887 = vmatprep.subr.mxu0 0.0
        %2888 = vmatpush1.msra.mxu0 0.0
        %2889 = vmatprep.subr.mxu0 0.0
        %2890 = vmatpush1.msra.mxu0 %v2862
        %2891 = vmatprep.subr.mxu0 0.0
        %2892 = vmatpush1.msra.mxu0 %v2861
        %2893 = vmatprep.subr.mxu0 0.0
        %2894 = vmatpush1.msra.mxu0 %v2860
        %2895 = vmatprep.subr.mxu0 0.0
        %2896 = vmatpush1.msra.mxu0 %v2859
        %2897 = vmatprep.subr.mxu0 0.0
        %2898 = vmatpush1.msra.mxu0 %v2858
        %2899 = vmatprep.subr.mxu0 0.0
        %2900 = vmatpush1.msra.mxu0 %v2857
        %2901 = vmatprep.subr.mxu0 0.0
        %2902 = vmatpush1.msra.mxu0 %v2856
        %2903 = vmatprep.subr.mxu0 0.0
        %2904 = vmatpush1.msra.mxu0 %v2855
        %2905 = vmatprep.subr.mxu0 0.0
        %2906 = vmatpush2.msra.mxu0 0.0
        %2907 = vmatprep.subr.mxu0 0.0
        %2908 = vmatpush2.msra.mxu0 0.0
        %2909 = vmatprep.subr.mxu0 0.0
        %2910 = vmatpush2.msra.mxu0 0.0
        %2911 = vmatprep.subr.mxu0 0.0
        %2912 = vmatpush2.msra.mxu0 0.0
        %2913 = vmatprep.subr.mxu0 0.0
        %2914 = vmatpush2.msra.mxu0 0.0
        %2915 = vmatprep.subr.mxu0 0.0
        %2916 = vmatpush2.msra.mxu0 0.0
        %2917 = vmatprep.subr.mxu0 0.0
        %2918 = vmatpush2.msra.mxu0 0.0
        %2919 = vmatprep.subr.mxu0 0.0
        %2920 = vmatpush2.msra.mxu0 0.0
        %2921 = vmatprep.subr.mxu0 0.0
        %2922 = vmatpush2.msra.mxu0 0.0
        %2923 = vmatprep.subr.mxu0 0.0
        %2924 = vmatpush2.msra.mxu0 0.0
        %2925 = vmatprep.subr.mxu0 0.0
        %2926 = vmatpush2.msra.mxu0 0.0
        %2927 = vmatprep.subr.mxu0 0.0
        %2928 = vmatpush2.msra.mxu0 0.0
        %2929 = vmatprep.subr.mxu0 0.0
        %2930 = vmatpush2.msra.mxu0 0.0
        %2931 = vmatprep.subr.mxu0 0.0
        %2932 = vmatpush2.msra.mxu0 0.0
        %2933 = vmatprep.subr.mxu0 0.0
        %2934 = vmatpush2.msra.mxu0 0.0
        %2935 = vmatprep.subr.mxu0 0.0
        %2936 = vmatpush2.msra.mxu0 0.0
        %2937 = vmatprep.mubr.f32.mxu0 0.0
        %2938 = vmatmul.mubr.f32.gmra.mxu0 %v2869
        %v2939 = vpop.f32.mrf.mxu0
        %v2940 = vadd.f32 0.0, %v2939
        %v2941 = vpop.f32.mrf.mxu0
        %2942 = vmatprep.mubr.f32.mxu0 0.0
        %2943 = vmatmul.mubr.f32.gmra.mxu0 %v2871
        %v2944 = vpop.f32.mrf.mxu0
        %v2945 = vadd.f32 0.0, %v2944
        %v2946 = vpop.f32.mrf.mxu0
        %2947 = vdwg.mxu0
        %v2948 = vadd.f32 %v2852, %v2940
        %v2949 = vadd.f32 %v2853, %v2945
        %s2950 = scalar_lea.vmem %s6, 320
        %v2951 = vld [vmem:[%s2950] sm:$0xff]
        %v2952 = vld [vmem:[%s2950 + $0x8] sm:$0xff]
        %v2953 = vld [vmem:[%s2950 + $0x10] sm:$0xff]
        %v2954 = vld [vmem:[%s2950 + $0x18] sm:$0xff]
        %v2955 = vld [vmem:[%s2950 + $0x20] sm:$0xff]
        %v2956 = vld [vmem:[%s2950 + $0x28] sm:$0xff]
        %v2957 = vld [vmem:[%s2950 + $0x30] sm:$0xff]
        %v2958 = vld [vmem:[%s2950 + $0x38] sm:$0xff]
        %vm2959 = vcmask 1042432
        %v2960 = vrot.slane 0.0, 5
        %v2961 = vrot.slane %v2468, 5
        %v2962 = vsel %vm2959, %v2960, %v2961
        %v2963 = vrot.slane %v2473, 5
        %v2964 = vsel %vm2959, %v2961, %v2963
        %v2965 = vsel %vm2394, %v2962, 0
        %v2967 = vsel %vm2394, %v2964, 0
        %2969 = vmatprep.subr.mxu0 0.0
        %2970 = vmatpush1.msra.mxu0 0.0
        %2971 = vmatprep.subr.mxu0 0.0
        %2972 = vmatpush1.msra.mxu0 0.0
        %2973 = vmatprep.subr.mxu0 0.0
        %2974 = vmatpush1.msra.mxu0 0.0
        %2975 = vmatprep.subr.mxu0 0.0
        %2976 = vmatpush1.msra.mxu0 0.0
        %2977 = vmatprep.subr.mxu0 0.0
        %2978 = vmatpush1.msra.mxu0 0.0
        %2979 = vmatprep.subr.mxu0 0.0
        %2980 = vmatpush1.msra.mxu0 0.0
        %2981 = vmatprep.subr.mxu0 0.0
        %2982 = vmatpush1.msra.mxu0 0.0
        %2983 = vmatprep.subr.mxu0 0.0
        %2984 = vmatpush1.msra.mxu0 0.0
        %2985 = vmatprep.subr.mxu0 0.0
        %2986 = vmatpush1.msra.mxu0 %v2958
        %2987 = vmatprep.subr.mxu0 0.0
        %2988 = vmatpush1.msra.mxu0 %v2957
        %2989 = vmatprep.subr.mxu0 0.0
        %2990 = vmatpush1.msra.mxu0 %v2956
        %2991 = vmatprep.subr.mxu0 0.0
        %2992 = vmatpush1.msra.mxu0 %v2955
        %2993 = vmatprep.subr.mxu0 0.0
        %2994 = vmatpush1.msra.mxu0 %v2954
        %2995 = vmatprep.subr.mxu0 0.0
        %2996 = vmatpush1.msra.mxu0 %v2953
        %2997 = vmatprep.subr.mxu0 0.0
        %2998 = vmatpush1.msra.mxu0 %v2952
        %2999 = vmatprep.subr.mxu0 0.0
        %3000 = vmatpush1.msra.mxu0 %v2951
        %3001 = vmatprep.subr.mxu0 0.0
        %3002 = vmatpush2.msra.mxu0 0.0
        %3003 = vmatprep.subr.mxu0 0.0
        %3004 = vmatpush2.msra.mxu0 0.0
        %3005 = vmatprep.subr.mxu0 0.0
        %3006 = vmatpush2.msra.mxu0 0.0
        %3007 = vmatprep.subr.mxu0 0.0
        %3008 = vmatpush2.msra.mxu0 0.0
        %3009 = vmatprep.subr.mxu0 0.0
        %3010 = vmatpush2.msra.mxu0 0.0
        %3011 = vmatprep.subr.mxu0 0.0
        %3012 = vmatpush2.msra.mxu0 0.0
        %3013 = vmatprep.subr.mxu0 0.0
        %3014 = vmatpush2.msra.mxu0 0.0
        %3015 = vmatprep.subr.mxu0 0.0
        %3016 = vmatpush2.msra.mxu0 0.0
        %3017 = vmatprep.subr.mxu0 0.0
        %3018 = vmatpush2.msra.mxu0 0.0
        %3019 = vmatprep.subr.mxu0 0.0
        %3020 = vmatpush2.msra.mxu0 0.0
        %3021 = vmatprep.subr.mxu0 0.0
        %3022 = vmatpush2.msra.mxu0 0.0
        %3023 = vmatprep.subr.mxu0 0.0
        %3024 = vmatpush2.msra.mxu0 0.0
        %3025 = vmatprep.subr.mxu0 0.0
        %3026 = vmatpush2.msra.mxu0 0.0
        %3027 = vmatprep.subr.mxu0 0.0
        %3028 = vmatpush2.msra.mxu0 0.0
        %3029 = vmatprep.subr.mxu0 0.0
        %3030 = vmatpush2.msra.mxu0 0.0
        %3031 = vmatprep.subr.mxu0 0.0
        %3032 = vmatpush2.msra.mxu0 0.0
        %3033 = vmatprep.mubr.f32.mxu0 0.0
        %3034 = vmatmul.mubr.f32.gmra.mxu0 %v2965
        %v3035 = vpop.f32.mrf.mxu0
        %v3036 = vadd.f32 0.0, %v3035
        %v3037 = vpop.f32.mrf.mxu0
        %3038 = vmatprep.mubr.f32.mxu0 0.0
        %3039 = vmatmul.mubr.f32.gmra.mxu0 %v2967
        %v3040 = vpop.f32.mrf.mxu0
        %v3041 = vadd.f32 0.0, %v3040
        %v3042 = vpop.f32.mrf.mxu0
        %3043 = vdwg.mxu0
        %v3044 = vadd.f32 %v2948, %v3036
        %v3045 = vadd.f32 %v2949, %v3041
        %s3046 = scalar_lea.vmem %s6, 384
        %v3047 = vld [vmem:[%s3046] sm:$0xff]
        %v3048 = vld [vmem:[%s3046 + $0x8] sm:$0xff]
        %v3049 = vld [vmem:[%s3046 + $0x10] sm:$0xff]
        %v3050 = vld [vmem:[%s3046 + $0x18] sm:$0xff]
        %v3051 = vld [vmem:[%s3046 + $0x20] sm:$0xff]
        %v3052 = vld [vmem:[%s3046 + $0x28] sm:$0xff]
        %v3053 = vld [vmem:[%s3046 + $0x30] sm:$0xff]
        %v3054 = vld [vmem:[%s3046 + $0x38] sm:$0xff]
        %vm3055 = vcmask 1041408
        %v3056 = vrot.slane 0.0, 6
        %v3057 = vrot.slane %v2468, 6
        %v3058 = vsel %vm3055, %v3056, %v3057
        %v3059 = vrot.slane %v2473, 6
        %v3060 = vsel %vm3055, %v3057, %v3059
        %v3061 = vsel %vm2394, %v3058, 0
        %v3063 = vsel %vm2394, %v3060, 0
        %3065 = vmatprep.subr.mxu0 0.0
        %3066 = vmatpush1.msra.mxu0 0.0
        %3067 = vmatprep.subr.mxu0 0.0
        %3068 = vmatpush1.msra.mxu0 0.0
        %3069 = vmatprep.subr.mxu0 0.0
        %3070 = vmatpush1.msra.mxu0 0.0
        %3071 = vmatprep.subr.mxu0 0.0
        %3072 = vmatpush1.msra.mxu0 0.0
        %3073 = vmatprep.subr.mxu0 0.0
        %3074 = vmatpush1.msra.mxu0 0.0
        %3075 = vmatprep.subr.mxu0 0.0
        %3076 = vmatpush1.msra.mxu0 0.0
        %3077 = vmatprep.subr.mxu0 0.0
        %3078 = vmatpush1.msra.mxu0 0.0
        %3079 = vmatprep.subr.mxu0 0.0
        %3080 = vmatpush1.msra.mxu0 0.0
        %3081 = vmatprep.subr.mxu0 0.0
        %3082 = vmatpush1.msra.mxu0 %v3054
        %3083 = vmatprep.subr.mxu0 0.0
        %3084 = vmatpush1.msra.mxu0 %v3053
        %3085 = vmatprep.subr.mxu0 0.0
        %3086 = vmatpush1.msra.mxu0 %v3052
        %3087 = vmatprep.subr.mxu0 0.0
        %3088 = vmatpush1.msra.mxu0 %v3051
        %3089 = vmatprep.subr.mxu0 0.0
        %3090 = vmatpush1.msra.mxu0 %v3050
        %3091 = vmatprep.subr.mxu0 0.0
        %3092 = vmatpush1.msra.mxu0 %v3049
        %3093 = vmatprep.subr.mxu0 0.0
        %3094 = vmatpush1.msra.mxu0 %v3048
        %3095 = vmatprep.subr.mxu0 0.0
        %3096 = vmatpush1.msra.mxu0 %v3047
        %3097 = vmatprep.subr.mxu0 0.0
        %3098 = vmatpush2.msra.mxu0 0.0
        %3099 = vmatprep.subr.mxu0 0.0
        %3100 = vmatpush2.msra.mxu0 0.0
        %3101 = vmatprep.subr.mxu0 0.0
        %3102 = vmatpush2.msra.mxu0 0.0
        %3103 = vmatprep.subr.mxu0 0.0
        %3104 = vmatpush2.msra.mxu0 0.0
        %3105 = vmatprep.subr.mxu0 0.0
        %3106 = vmatpush2.msra.mxu0 0.0
        %3107 = vmatprep.subr.mxu0 0.0
        %3108 = vmatpush2.msra.mxu0 0.0
        %3109 = vmatprep.subr.mxu0 0.0
        %3110 = vmatpush2.msra.mxu0 0.0
        %3111 = vmatprep.subr.mxu0 0.0
        %3112 = vmatpush2.msra.mxu0 0.0
        %3113 = vmatprep.subr.mxu0 0.0
        %3114 = vmatpush2.msra.mxu0 0.0
        %3115 = vmatprep.subr.mxu0 0.0
        %3116 = vmatpush2.msra.mxu0 0.0
        %3117 = vmatprep.subr.mxu0 0.0
        %3118 = vmatpush2.msra.mxu0 0.0
        %3119 = vmatprep.subr.mxu0 0.0
        %3120 = vmatpush2.msra.mxu0 0.0
        %3121 = vmatprep.subr.mxu0 0.0
        %3122 = vmatpush2.msra.mxu0 0.0
        %3123 = vmatprep.subr.mxu0 0.0
        %3124 = vmatpush2.msra.mxu0 0.0
        %3125 = vmatprep.subr.mxu0 0.0
        %3126 = vmatpush2.msra.mxu0 0.0
        %3127 = vmatprep.subr.mxu0 0.0
        %3128 = vmatpush2.msra.mxu0 0.0
        %3129 = vmatprep.mubr.f32.mxu0 0.0
        %3130 = vmatmul.mubr.f32.gmra.mxu0 %v3061
        %v3131 = vpop.f32.mrf.mxu0
        %v3132 = vadd.f32 0.0, %v3131
        %v3133 = vpop.f32.mrf.mxu0
        %3134 = vmatprep.mubr.f32.mxu0 0.0
        %3135 = vmatmul.mubr.f32.gmra.mxu0 %v3063
        %v3136 = vpop.f32.mrf.mxu0
        %v3137 = vadd.f32 0.0, %v3136
        %v3138 = vpop.f32.mrf.mxu0
        %3139 = vdwg.mxu0
        %v3140 = vadd.f32 %v3044, %v3132
        %v3141 = vadd.f32 %v3045, %v3137
        %s3142 = scalar_lea.vmem %s6, 448
        %v3143 = vld [vmem:[%s3142] sm:$0xff]
        %v3144 = vld [vmem:[%s3142 + $0x8] sm:$0xff]
        %v3145 = vld [vmem:[%s3142 + $0x10] sm:$0xff]
        %v3146 = vld [vmem:[%s3142 + $0x18] sm:$0xff]
        %v3147 = vld [vmem:[%s3142 + $0x20] sm:$0xff]
        %v3148 = vld [vmem:[%s3142 + $0x28] sm:$0xff]
        %v3149 = vld [vmem:[%s3142 + $0x30] sm:$0xff]
        %v3150 = vld [vmem:[%s3142 + $0x38] sm:$0xff]
        %vm3151 = vcmask 1040384
        %v3152 = vrot.slane 0.0, 7
        %v3153 = vrot.slane %v2468, 7
        %v3154 = vsel %vm3151, %v3152, %v3153
        %v3155 = vrot.slane %v2473, 7
        %v3156 = vsel %vm3151, %v3153, %v3155
        %v3157 = vsel %vm2394, %v3154, 0
        %v3159 = vsel %vm2394, %v3156, 0
        %3161 = vmatprep.subr.mxu0 0.0
        %3162 = vmatpush1.msra.mxu0 0.0
        %3163 = vmatprep.subr.mxu0 0.0
        %3164 = vmatpush1.msra.mxu0 0.0
        %3165 = vmatprep.subr.mxu0 0.0
        %3166 = vmatpush1.msra.mxu0 0.0
        %3167 = vmatprep.subr.mxu0 0.0
        %3168 = vmatpush1.msra.mxu0 0.0
        %3169 = vmatprep.subr.mxu0 0.0
        %3170 = vmatpush1.msra.mxu0 0.0
        %3171 = vmatprep.subr.mxu0 0.0
        %3172 = vmatpush1.msra.mxu0 0.0
        %3173 = vmatprep.subr.mxu0 0.0
        %3174 = vmatpush1.msra.mxu0 0.0
        %3175 = vmatprep.subr.mxu0 0.0
        %3176 = vmatpush1.msra.mxu0 0.0
        %3177 = vmatprep.subr.mxu0 0.0
        %3178 = vmatpush1.msra.mxu0 %v3150
        %3179 = vmatprep.subr.mxu0 0.0
        %3180 = vmatpush1.msra.mxu0 %v3149
        %3181 = vmatprep.subr.mxu0 0.0
        %3182 = vmatpush1.msra.mxu0 %v3148
        %3183 = vmatprep.subr.mxu0 0.0
        %3184 = vmatpush1.msra.mxu0 %v3147
        %3185 = vmatprep.subr.mxu0 0.0
        %3186 = vmatpush1.msra.mxu0 %v3146
        %3187 = vmatprep.subr.mxu0 0.0
        %3188 = vmatpush1.msra.mxu0 %v3145
        %3189 = vmatprep.subr.mxu0 0.0
        %3190 = vmatpush1.msra.mxu0 %v3144
        %3191 = vmatprep.subr.mxu0 0.0
        %3192 = vmatpush1.msra.mxu0 %v3143
        %3193 = vmatprep.subr.mxu0 0.0
        %3194 = vmatpush2.msra.mxu0 0.0
        %3195 = vmatprep.subr.mxu0 0.0
        %3196 = vmatpush2.msra.mxu0 0.0
        %3197 = vmatprep.subr.mxu0 0.0
        %3198 = vmatpush2.msra.mxu0 0.0
        %3199 = vmatprep.subr.mxu0 0.0
        %3200 = vmatpush2.msra.mxu0 0.0
        %3201 = vmatprep.subr.mxu0 0.0
        %3202 = vmatpush2.msra.mxu0 0.0
        %3203 = vmatprep.subr.mxu0 0.0
        %3204 = vmatpush2.msra.mxu0 0.0
        %3205 = vmatprep.subr.mxu0 0.0
        %3206 = vmatpush2.msra.mxu0 0.0
        %3207 = vmatprep.subr.mxu0 0.0
        %3208 = vmatpush2.msra.mxu0 0.0
        %3209 = vmatprep.subr.mxu0 0.0
        %3210 = vmatpush2.msra.mxu0 0.0
        %3211 = vmatprep.subr.mxu0 0.0
        %3212 = vmatpush2.msra.mxu0 0.0
        %3213 = vmatprep.subr.mxu0 0.0
        %3214 = vmatpush2.msra.mxu0 0.0
        %3215 = vmatprep.subr.mxu0 0.0
        %3216 = vmatpush2.msra.mxu0 0.0
        %3217 = vmatprep.subr.mxu0 0.0
        %3218 = vmatpush2.msra.mxu0 0.0
        %3219 = vmatprep.subr.mxu0 0.0
        %3220 = vmatpush2.msra.mxu0 0.0
        %3221 = vmatprep.subr.mxu0 0.0
        %3222 = vmatpush2.msra.mxu0 0.0
        %3223 = vmatprep.subr.mxu0 0.0
        %3224 = vmatpush2.msra.mxu0 0.0
        %3225 = vmatprep.mubr.f32.mxu0 0.0
        %3226 = vmatmul.mubr.f32.gmra.mxu0 %v3157
        %v3227 = vpop.f32.mrf.mxu0
        %v3228 = vadd.f32 0.0, %v3227
        %v3229 = vpop.f32.mrf.mxu0
        %3230 = vmatprep.mubr.f32.mxu0 0.0
        %3231 = vmatmul.mubr.f32.gmra.mxu0 %v3159
        %v3232 = vpop.f32.mrf.mxu0
        %v3233 = vadd.f32 0.0, %v3232
        %v3234 = vpop.f32.mrf.mxu0
        %3235 = vdwg.mxu0
        %v3236 = vadd.f32 %v3140, %v3228
        %v3237 = vadd.f32 %v3141, %v3233
        %s3238 = scalar_lea.vmem %s6, 512
        %v3239 = vld [vmem:[%s3238] sm:$0xff]
        %v3240 = vld [vmem:[%s3238 + $0x8] sm:$0xff]
        %v3241 = vld [vmem:[%s3238 + $0x10] sm:$0xff]
        %v3242 = vld [vmem:[%s3238 + $0x18] sm:$0xff]
        %v3243 = vld [vmem:[%s3238 + $0x20] sm:$0xff]
        %v3244 = vld [vmem:[%s3238 + $0x28] sm:$0xff]
        %v3245 = vld [vmem:[%s3238 + $0x30] sm:$0xff]
        %v3246 = vld [vmem:[%s3238 + $0x38] sm:$0xff]
        %v3247 = vsel %vm2394, %v2473, 0
        %3249 = vmatprep.subr.mxu0 0.0
        %3250 = vmatpush1.msra.mxu0 0.0
        %3251 = vmatprep.subr.mxu0 0.0
        %3252 = vmatpush1.msra.mxu0 0.0
        %3253 = vmatprep.subr.mxu0 0.0
        %3254 = vmatpush1.msra.mxu0 0.0
        %3255 = vmatprep.subr.mxu0 0.0
        %3256 = vmatpush1.msra.mxu0 0.0
        %3257 = vmatprep.subr.mxu0 0.0
        %3258 = vmatpush1.msra.mxu0 0.0
        %3259 = vmatprep.subr.mxu0 0.0
        %3260 = vmatpush1.msra.mxu0 0.0
        %3261 = vmatprep.subr.mxu0 0.0
        %3262 = vmatpush1.msra.mxu0 0.0
        %3263 = vmatprep.subr.mxu0 0.0
        %3264 = vmatpush1.msra.mxu0 0.0
        %3265 = vmatprep.subr.mxu0 0.0
        %3266 = vmatpush1.msra.mxu0 %v3246
        %3267 = vmatprep.subr.mxu0 0.0
        %3268 = vmatpush1.msra.mxu0 %v3245
        %3269 = vmatprep.subr.mxu0 0.0
        %3270 = vmatpush1.msra.mxu0 %v3244
        %3271 = vmatprep.subr.mxu0 0.0
        %3272 = vmatpush1.msra.mxu0 %v3243
        %3273 = vmatprep.subr.mxu0 0.0
        %3274 = vmatpush1.msra.mxu0 %v3242
        %3275 = vmatprep.subr.mxu0 0.0
        %3276 = vmatpush1.msra.mxu0 %v3241
        %3277 = vmatprep.subr.mxu0 0.0
        %3278 = vmatpush1.msra.mxu0 %v3240
        %3279 = vmatprep.subr.mxu0 0.0
        %3280 = vmatpush1.msra.mxu0 %v3239
        %3281 = vmatprep.subr.mxu0 0.0
        %3282 = vmatpush2.msra.mxu0 0.0
        %3283 = vmatprep.subr.mxu0 0.0
        %3284 = vmatpush2.msra.mxu0 0.0
        %3285 = vmatprep.subr.mxu0 0.0
        %3286 = vmatpush2.msra.mxu0 0.0
        %3287 = vmatprep.subr.mxu0 0.0
        %3288 = vmatpush2.msra.mxu0 0.0
        %3289 = vmatprep.subr.mxu0 0.0
        %3290 = vmatpush2.msra.mxu0 0.0
        %3291 = vmatprep.subr.mxu0 0.0
        %3292 = vmatpush2.msra.mxu0 0.0
        %3293 = vmatprep.subr.mxu0 0.0
        %3294 = vmatpush2.msra.mxu0 0.0
        %3295 = vmatprep.subr.mxu0 0.0
        %3296 = vmatpush2.msra.mxu0 0.0
        %3297 = vmatprep.subr.mxu0 0.0
        %3298 = vmatpush2.msra.mxu0 0.0
        %3299 = vmatprep.subr.mxu0 0.0
        %3300 = vmatpush2.msra.mxu0 0.0
        %3301 = vmatprep.subr.mxu0 0.0
        %3302 = vmatpush2.msra.mxu0 0.0
        %3303 = vmatprep.subr.mxu0 0.0
        %3304 = vmatpush2.msra.mxu0 0.0
        %3305 = vmatprep.subr.mxu0 0.0
        %3306 = vmatpush2.msra.mxu0 0.0
        %3307 = vmatprep.subr.mxu0 0.0
        %3308 = vmatpush2.msra.mxu0 0.0
        %3309 = vmatprep.subr.mxu0 0.0
        %3310 = vmatpush2.msra.mxu0 0.0
        %3311 = vmatprep.subr.mxu0 0.0
        %3312 = vmatpush2.msra.mxu0 0.0
        %3313 = vmatprep.mubr.f32.mxu0 0.0
        %3314 = vmatmul.mubr.f32.gmra.mxu0 %v2585
        %v3315 = vpop.f32.mrf.mxu0
        %v3316 = vadd.f32 0.0, %v3315
        %v3317 = vpop.f32.mrf.mxu0
        %3318 = vmatprep.mubr.f32.mxu0 0.0
        %3319 = vmatmul.mubr.f32.gmra.mxu0 %v3247
        %v3320 = vpop.f32.mrf.mxu0
        %v3321 = vadd.f32 0.0, %v3320
        %v3322 = vpop.f32.mrf.mxu0
        %3323 = vdwg.mxu0
        %v3324 = vadd.f32 %v3236, %v3316
        %v3325 = vadd.f32 %v3237, %v3321
        %s3326 = scalar_lea.vmem %s6, 576
        %v3327 = vld [vmem:[%s3326] sm:$0xff]
        %v3328 = vld [vmem:[%s3326 + $0x8] sm:$0xff]
        %v3329 = vld [vmem:[%s3326 + $0x10] sm:$0xff]
        %v3330 = vld [vmem:[%s3326 + $0x18] sm:$0xff]
        %v3331 = vld [vmem:[%s3326 + $0x20] sm:$0xff]
        %v3332 = vld [vmem:[%s3326 + $0x28] sm:$0xff]
        %v3333 = vld [vmem:[%s3326 + $0x30] sm:$0xff]
        %v3334 = vld [vmem:[%s3326 + $0x38] sm:$0xff]
        %v3335 = vsel %vm2498, %v2502, %v2499
        %v3336 = vsel %vm2394, %v3335, 0
        %3338 = vmatprep.subr.mxu0 0.0
        %3339 = vmatpush1.msra.mxu0 0.0
        %3340 = vmatprep.subr.mxu0 0.0
        %3341 = vmatpush1.msra.mxu0 0.0
        %3342 = vmatprep.subr.mxu0 0.0
        %3343 = vmatpush1.msra.mxu0 0.0
        %3344 = vmatprep.subr.mxu0 0.0
        %3345 = vmatpush1.msra.mxu0 0.0
        %3346 = vmatprep.subr.mxu0 0.0
        %3347 = vmatpush1.msra.mxu0 0.0
        %3348 = vmatprep.subr.mxu0 0.0
        %3349 = vmatpush1.msra.mxu0 0.0
        %3350 = vmatprep.subr.mxu0 0.0
        %3351 = vmatpush1.msra.mxu0 0.0
        %3352 = vmatprep.subr.mxu0 0.0
        %3353 = vmatpush1.msra.mxu0 0.0
        %3354 = vmatprep.subr.mxu0 0.0
        %3355 = vmatpush1.msra.mxu0 %v3334
        %3356 = vmatprep.subr.mxu0 0.0
        %3357 = vmatpush1.msra.mxu0 %v3333
        %3358 = vmatprep.subr.mxu0 0.0
        %3359 = vmatpush1.msra.mxu0 %v3332
        %3360 = vmatprep.subr.mxu0 0.0
        %3361 = vmatpush1.msra.mxu0 %v3331
        %3362 = vmatprep.subr.mxu0 0.0
        %3363 = vmatpush1.msra.mxu0 %v3330
        %3364 = vmatprep.subr.mxu0 0.0
        %3365 = vmatpush1.msra.mxu0 %v3329
        %3366 = vmatprep.subr.mxu0 0.0
        %3367 = vmatpush1.msra.mxu0 %v3328
        %3368 = vmatprep.subr.mxu0 0.0
        %3369 = vmatpush1.msra.mxu0 %v3327
        %3370 = vmatprep.subr.mxu0 0.0
        %3371 = vmatpush2.msra.mxu0 0.0
        %3372 = vmatprep.subr.mxu0 0.0
        %3373 = vmatpush2.msra.mxu0 0.0
        %3374 = vmatprep.subr.mxu0 0.0
        %3375 = vmatpush2.msra.mxu0 0.0
        %3376 = vmatprep.subr.mxu0 0.0
        %3377 = vmatpush2.msra.mxu0 0.0
        %3378 = vmatprep.subr.mxu0 0.0
        %3379 = vmatpush2.msra.mxu0 0.0
        %3380 = vmatprep.subr.mxu0 0.0
        %3381 = vmatpush2.msra.mxu0 0.0
        %3382 = vmatprep.subr.mxu0 0.0
        %3383 = vmatpush2.msra.mxu0 0.0
        %3384 = vmatprep.subr.mxu0 0.0
        %3385 = vmatpush2.msra.mxu0 0.0
        %3386 = vmatprep.subr.mxu0 0.0
        %3387 = vmatpush2.msra.mxu0 0.0
        %3388 = vmatprep.subr.mxu0 0.0
        %3389 = vmatpush2.msra.mxu0 0.0
        %3390 = vmatprep.subr.mxu0 0.0
        %3391 = vmatpush2.msra.mxu0 0.0
        %3392 = vmatprep.subr.mxu0 0.0
        %3393 = vmatpush2.msra.mxu0 0.0
        %3394 = vmatprep.subr.mxu0 0.0
        %3395 = vmatpush2.msra.mxu0 0.0
        %3396 = vmatprep.subr.mxu0 0.0
        %3397 = vmatpush2.msra.mxu0 0.0
        %3398 = vmatprep.subr.mxu0 0.0
        %3399 = vmatpush2.msra.mxu0 0.0
        %3400 = vmatprep.subr.mxu0 0.0
        %3401 = vmatpush2.msra.mxu0 0.0
        %3402 = vmatprep.mubr.f32.mxu0 0.0
        %3403 = vmatmul.mubr.f32.gmra.mxu0 %v2506
        %v3404 = vpop.f32.mrf.mxu0
        %v3405 = vadd.f32 0.0, %v3404
        %v3406 = vpop.f32.mrf.mxu0
        %3407 = vmatprep.mubr.f32.mxu0 0.0
        %3408 = vmatmul.mubr.f32.gmra.mxu0 %v3336
        %v3409 = vpop.f32.mrf.mxu0
        %v3410 = vadd.f32 0.0, %v3409
        %v3411 = vpop.f32.mrf.mxu0
        %3412 = vdwg.mxu0
        %v3413 = vadd.f32 %v3324, %v3405
        %v3414 = vadd.f32 %v3325, %v3410
        %s3415 = scalar_lea.vmem %s6, 640
        %v3416 = vld [vmem:[%s3415] sm:$0xff]
        %v3417 = vld [vmem:[%s3415 + $0x8] sm:$0xff]
        %v3418 = vld [vmem:[%s3415 + $0x10] sm:$0xff]
        %v3419 = vld [vmem:[%s3415 + $0x18] sm:$0xff]
        %v3420 = vld [vmem:[%s3415 + $0x20] sm:$0xff]
        %v3421 = vld [vmem:[%s3415 + $0x28] sm:$0xff]
        %v3422 = vld [vmem:[%s3415 + $0x30] sm:$0xff]
        %v3423 = vld [vmem:[%s3415 + $0x38] sm:$0xff]
        %v3424 = vsel %vm2671, %v2675, %v2672
        %v3425 = vsel %vm2394, %v3424, 0
        %3427 = vmatprep.subr.mxu0 0.0
        %3428 = vmatpush1.msra.mxu0 0.0
        %3429 = vmatprep.subr.mxu0 0.0
        %3430 = vmatpush1.msra.mxu0 0.0
        %3431 = vmatprep.subr.mxu0 0.0
        %3432 = vmatpush1.msra.mxu0 0.0
        %3433 = vmatprep.subr.mxu0 0.0
        %3434 = vmatpush1.msra.mxu0 0.0
        %3435 = vmatprep.subr.mxu0 0.0
        %3436 = vmatpush1.msra.mxu0 0.0
        %3437 = vmatprep.subr.mxu0 0.0
        %3438 = vmatpush1.msra.mxu0 0.0
        %3439 = vmatprep.subr.mxu0 0.0
        %3440 = vmatpush1.msra.mxu0 0.0
        %3441 = vmatprep.subr.mxu0 0.0
        %3442 = vmatpush1.msra.mxu0 0.0
        %3443 = vmatprep.subr.mxu0 0.0
        %3444 = vmatpush1.msra.mxu0 %v3423
        %3445 = vmatprep.subr.mxu0 0.0
        %3446 = vmatpush1.msra.mxu0 %v3422
        %3447 = vmatprep.subr.mxu0 0.0
        %3448 = vmatpush1.msra.mxu0 %v3421
        %3449 = vmatprep.subr.mxu0 0.0
        %3450 = vmatpush1.msra.mxu0 %v3420
        %3451 = vmatprep.subr.mxu0 0.0
        %3452 = vmatpush1.msra.mxu0 %v3419
        %3453 = vmatprep.subr.mxu0 0.0
        %3454 = vmatpush1.msra.mxu0 %v3418
        %3455 = vmatprep.subr.mxu0 0.0
        %3456 = vmatpush1.msra.mxu0 %v3417
        %3457 = vmatprep.subr.mxu0 0.0
        %3458 = vmatpush1.msra.mxu0 %v3416
        %3459 = vmatprep.subr.mxu0 0.0
        %3460 = vmatpush2.msra.mxu0 0.0
        %3461 = vmatprep.subr.mxu0 0.0
        %3462 = vmatpush2.msra.mxu0 0.0
        %3463 = vmatprep.subr.mxu0 0.0
        %3464 = vmatpush2.msra.mxu0 0.0
        %3465 = vmatprep.subr.mxu0 0.0
        %3466 = vmatpush2.msra.mxu0 0.0
        %3467 = vmatprep.subr.mxu0 0.0
        %3468 = vmatpush2.msra.mxu0 0.0
        %3469 = vmatprep.subr.mxu0 0.0
        %3470 = vmatpush2.msra.mxu0 0.0
        %3471 = vmatprep.subr.mxu0 0.0
        %3472 = vmatpush2.msra.mxu0 0.0
        %3473 = vmatprep.subr.mxu0 0.0
        %3474 = vmatpush2.msra.mxu0 0.0
        %3475 = vmatprep.subr.mxu0 0.0
        %3476 = vmatpush2.msra.mxu0 0.0
        %3477 = vmatprep.subr.mxu0 0.0
        %3478 = vmatpush2.msra.mxu0 0.0
        %3479 = vmatprep.subr.mxu0 0.0
        %3480 = vmatpush2.msra.mxu0 0.0
        %3481 = vmatprep.subr.mxu0 0.0
        %3482 = vmatpush2.msra.mxu0 0.0
        %3483 = vmatprep.subr.mxu0 0.0
        %3484 = vmatpush2.msra.mxu0 0.0
        %3485 = vmatprep.subr.mxu0 0.0
        %3486 = vmatpush2.msra.mxu0 0.0
        %3487 = vmatprep.subr.mxu0 0.0
        %3488 = vmatpush2.msra.mxu0 0.0
        %3489 = vmatprep.subr.mxu0 0.0
        %3490 = vmatpush2.msra.mxu0 0.0
        %3491 = vmatprep.mubr.f32.mxu0 0.0
        %3492 = vmatmul.mubr.f32.gmra.mxu0 %v2679
        %v3493 = vpop.f32.mrf.mxu0
        %v3494 = vadd.f32 0.0, %v3493
        %v3495 = vpop.f32.mrf.mxu0
        %3496 = vmatprep.mubr.f32.mxu0 0.0
        %3497 = vmatmul.mubr.f32.gmra.mxu0 %v3425
        %v3498 = vpop.f32.mrf.mxu0
        %v3499 = vadd.f32 0.0, %v3498
        %v3500 = vpop.f32.mrf.mxu0
        %3501 = vdwg.mxu0
        %v3502 = vadd.f32 %v3413, %v3494
        %v3503 = vadd.f32 %v3414, %v3499
        %s3504 = scalar_lea.vmem %s6, 704
        %v3505 = vld [vmem:[%s3504] sm:$0xff]
        %v3506 = vld [vmem:[%s3504 + $0x8] sm:$0xff]
        %v3507 = vld [vmem:[%s3504 + $0x10] sm:$0xff]
        %v3508 = vld [vmem:[%s3504 + $0x18] sm:$0xff]
        %v3509 = vld [vmem:[%s3504 + $0x20] sm:$0xff]
        %v3510 = vld [vmem:[%s3504 + $0x28] sm:$0xff]
        %v3511 = vld [vmem:[%s3504 + $0x30] sm:$0xff]
        %v3512 = vld [vmem:[%s3504 + $0x38] sm:$0xff]
        %v3513 = vsel %vm2767, %v2771, %v2768
        %v3514 = vsel %vm2394, %v3513, 0
        %3516 = vmatprep.subr.mxu0 0.0
        %3517 = vmatpush1.msra.mxu0 0.0
        %3518 = vmatprep.subr.mxu0 0.0
        %3519 = vmatpush1.msra.mxu0 0.0
        %3520 = vmatprep.subr.mxu0 0.0
        %3521 = vmatpush1.msra.mxu0 0.0
        %3522 = vmatprep.subr.mxu0 0.0
        %3523 = vmatpush1.msra.mxu0 0.0
        %3524 = vmatprep.subr.mxu0 0.0
        %3525 = vmatpush1.msra.mxu0 0.0
        %3526 = vmatprep.subr.mxu0 0.0
        %3527 = vmatpush1.msra.mxu0 0.0
        %3528 = vmatprep.subr.mxu0 0.0
        %3529 = vmatpush1.msra.mxu0 0.0
        %3530 = vmatprep.subr.mxu0 0.0
        %3531 = vmatpush1.msra.mxu0 0.0
        %3532 = vmatprep.subr.mxu0 0.0
        %3533 = vmatpush1.msra.mxu0 %v3512
        %3534 = vmatprep.subr.mxu0 0.0
        %3535 = vmatpush1.msra.mxu0 %v3511
        %3536 = vmatprep.subr.mxu0 0.0
        %3537 = vmatpush1.msra.mxu0 %v3510
        %3538 = vmatprep.subr.mxu0 0.0
        %3539 = vmatpush1.msra.mxu0 %v3509
        %3540 = vmatprep.subr.mxu0 0.0
        %3541 = vmatpush1.msra.mxu0 %v3508
        %3542 = vmatprep.subr.mxu0 0.0
        %3543 = vmatpush1.msra.mxu0 %v3507
        %3544 = vmatprep.subr.mxu0 0.0
        %3545 = vmatpush1.msra.mxu0 %v3506
        %3546 = vmatprep.subr.mxu0 0.0
        %3547 = vmatpush1.msra.mxu0 %v3505
        %3548 = vmatprep.subr.mxu0 0.0
        %3549 = vmatpush2.msra.mxu0 0.0
        %3550 = vmatprep.subr.mxu0 0.0
        %3551 = vmatpush2.msra.mxu0 0.0
        %3552 = vmatprep.subr.mxu0 0.0
        %3553 = vmatpush2.msra.mxu0 0.0
        %3554 = vmatprep.subr.mxu0 0.0
        %3555 = vmatpush2.msra.mxu0 0.0
        %3556 = vmatprep.subr.mxu0 0.0
        %3557 = vmatpush2.msra.mxu0 0.0
        %3558 = vmatprep.subr.mxu0 0.0
        %3559 = vmatpush2.msra.mxu0 0.0
        %3560 = vmatprep.subr.mxu0 0.0
        %3561 = vmatpush2.msra.mxu0 0.0
        %3562 = vmatprep.subr.mxu0 0.0
        %3563 = vmatpush2.msra.mxu0 0.0
        %3564 = vmatprep.subr.mxu0 0.0
        %3565 = vmatpush2.msra.mxu0 0.0
        %3566 = vmatprep.subr.mxu0 0.0
        %3567 = vmatpush2.msra.mxu0 0.0
        %3568 = vmatprep.subr.mxu0 0.0
        %3569 = vmatpush2.msra.mxu0 0.0
        %3570 = vmatprep.subr.mxu0 0.0
        %3571 = vmatpush2.msra.mxu0 0.0
        %3572 = vmatprep.subr.mxu0 0.0
        %3573 = vmatpush2.msra.mxu0 0.0
        %3574 = vmatprep.subr.mxu0 0.0
        %3575 = vmatpush2.msra.mxu0 0.0
        %3576 = vmatprep.subr.mxu0 0.0
        %3577 = vmatpush2.msra.mxu0 0.0
        %3578 = vmatprep.subr.mxu0 0.0
        %3579 = vmatpush2.msra.mxu0 0.0
        %3580 = vmatprep.mubr.f32.mxu0 0.0
        %3581 = vmatmul.mubr.f32.gmra.mxu0 %v2775
        %v3582 = vpop.f32.mrf.mxu0
        %v3583 = vadd.f32 0.0, %v3582
        %v3584 = vpop.f32.mrf.mxu0
        %3585 = vmatprep.mubr.f32.mxu0 0.0
        %3586 = vmatmul.mubr.f32.gmra.mxu0 %v3514
        %v3587 = vpop.f32.mrf.mxu0
        %v3588 = vadd.f32 0.0, %v3587
        %v3589 = vpop.f32.mrf.mxu0
        %3590 = vdwg.mxu0
        %v3591 = vadd.f32 %v3502, %v3583
        %v3592 = vadd.f32 %v3503, %v3588
        %s3593 = scalar_lea.vmem %s6, 768
        %v3594 = vld [vmem:[%s3593] sm:$0xff]
        %v3595 = vld [vmem:[%s3593 + $0x8] sm:$0xff]
        %v3596 = vld [vmem:[%s3593 + $0x10] sm:$0xff]
        %v3597 = vld [vmem:[%s3593 + $0x18] sm:$0xff]
        %v3598 = vld [vmem:[%s3593 + $0x20] sm:$0xff]
        %v3599 = vld [vmem:[%s3593 + $0x28] sm:$0xff]
        %v3600 = vld [vmem:[%s3593 + $0x30] sm:$0xff]
        %v3601 = vld [vmem:[%s3593 + $0x38] sm:$0xff]
        %v3602 = vsel %vm2863, %v2867, %v2864
        %v3603 = vsel %vm2394, %v3602, 0
        %3605 = vmatprep.subr.mxu0 0.0
        %3606 = vmatpush1.msra.mxu0 0.0
        %3607 = vmatprep.subr.mxu0 0.0
        %3608 = vmatpush1.msra.mxu0 0.0
        %3609 = vmatprep.subr.mxu0 0.0
        %3610 = vmatpush1.msra.mxu0 0.0
        %3611 = vmatprep.subr.mxu0 0.0
        %3612 = vmatpush1.msra.mxu0 0.0
        %3613 = vmatprep.subr.mxu0 0.0
        %3614 = vmatpush1.msra.mxu0 0.0
        %3615 = vmatprep.subr.mxu0 0.0
        %3616 = vmatpush1.msra.mxu0 0.0
        %3617 = vmatprep.subr.mxu0 0.0
        %3618 = vmatpush1.msra.mxu0 0.0
        %3619 = vmatprep.subr.mxu0 0.0
        %3620 = vmatpush1.msra.mxu0 0.0
        %3621 = vmatprep.subr.mxu0 0.0
        %3622 = vmatpush1.msra.mxu0 %v3601
        %3623 = vmatprep.subr.mxu0 0.0
        %3624 = vmatpush1.msra.mxu0 %v3600
        %3625 = vmatprep.subr.mxu0 0.0
        %3626 = vmatpush1.msra.mxu0 %v3599
        %3627 = vmatprep.subr.mxu0 0.0
        %3628 = vmatpush1.msra.mxu0 %v3598
        %3629 = vmatprep.subr.mxu0 0.0
        %3630 = vmatpush1.msra.mxu0 %v3597
        %3631 = vmatprep.subr.mxu0 0.0
        %3632 = vmatpush1.msra.mxu0 %v3596
        %3633 = vmatprep.subr.mxu0 0.0
        %3634 = vmatpush1.msra.mxu0 %v3595
        %3635 = vmatprep.subr.mxu0 0.0
        %3636 = vmatpush1.msra.mxu0 %v3594
        %3637 = vmatprep.subr.mxu0 0.0
        %3638 = vmatpush2.msra.mxu0 0.0
        %3639 = vmatprep.subr.mxu0 0.0
        %3640 = vmatpush2.msra.mxu0 0.0
        %3641 = vmatprep.subr.mxu0 0.0
        %3642 = vmatpush2.msra.mxu0 0.0
        %3643 = vmatprep.subr.mxu0 0.0
        %3644 = vmatpush2.msra.mxu0 0.0
        %3645 = vmatprep.subr.mxu0 0.0
        %3646 = vmatpush2.msra.mxu0 0.0
        %3647 = vmatprep.subr.mxu0 0.0
        %3648 = vmatpush2.msra.mxu0 0.0
        %3649 = vmatprep.subr.mxu0 0.0
        %3650 = vmatpush2.msra.mxu0 0.0
        %3651 = vmatprep.subr.mxu0 0.0
        %3652 = vmatpush2.msra.mxu0 0.0
        %3653 = vmatprep.subr.mxu0 0.0
        %3654 = vmatpush2.msra.mxu0 0.0
        %3655 = vmatprep.subr.mxu0 0.0
        %3656 = vmatpush2.msra.mxu0 0.0
        %3657 = vmatprep.subr.mxu0 0.0
        %3658 = vmatpush2.msra.mxu0 0.0
        %3659 = vmatprep.subr.mxu0 0.0
        %3660 = vmatpush2.msra.mxu0 0.0
        %3661 = vmatprep.subr.mxu0 0.0
        %3662 = vmatpush2.msra.mxu0 0.0
        %3663 = vmatprep.subr.mxu0 0.0
        %3664 = vmatpush2.msra.mxu0 0.0
        %3665 = vmatprep.subr.mxu0 0.0
        %3666 = vmatpush2.msra.mxu0 0.0
        %3667 = vmatprep.subr.mxu0 0.0
        %3668 = vmatpush2.msra.mxu0 0.0
        %3669 = vmatprep.mubr.f32.mxu0 0.0
        %3670 = vmatmul.mubr.f32.gmra.mxu0 %v2871
        %v3671 = vpop.f32.mrf.mxu0
        %v3672 = vadd.f32 0.0, %v3671
        %v3673 = vpop.f32.mrf.mxu0
        %3674 = vmatprep.mubr.f32.mxu0 0.0
        %3675 = vmatmul.mubr.f32.gmra.mxu0 %v3603
        %v3676 = vpop.f32.mrf.mxu0
        %v3677 = vadd.f32 0.0, %v3676
        %v3678 = vpop.f32.mrf.mxu0
        %3679 = vdwg.mxu0
        %v3680 = vadd.f32 %v3591, %v3672
        %v3681 = vadd.f32 %v3592, %v3677
        %s3682 = scalar_lea.vmem %s6, 832
        %v3683 = vld [vmem:[%s3682] sm:$0xff]
        %v3684 = vld [vmem:[%s3682 + $0x8] sm:$0xff]
        %v3685 = vld [vmem:[%s3682 + $0x10] sm:$0xff]
        %v3686 = vld [vmem:[%s3682 + $0x18] sm:$0xff]
        %v3687 = vld [vmem:[%s3682 + $0x20] sm:$0xff]
        %v3688 = vld [vmem:[%s3682 + $0x28] sm:$0xff]
        %v3689 = vld [vmem:[%s3682 + $0x30] sm:$0xff]
        %v3690 = vld [vmem:[%s3682 + $0x38] sm:$0xff]
        %v3691 = vsel %vm2959, %v2963, %v2960
        %v3692 = vsel %vm2394, %v3691, 0
        %3694 = vmatprep.subr.mxu0 0.0
        %3695 = vmatpush1.msra.mxu0 0.0
        %3696 = vmatprep.subr.mxu0 0.0
        %3697 = vmatpush1.msra.mxu0 0.0
        %3698 = vmatprep.subr.mxu0 0.0
        %3699 = vmatpush1.msra.mxu0 0.0
        %3700 = vmatprep.subr.mxu0 0.0
        %3701 = vmatpush1.msra.mxu0 0.0
        %3702 = vmatprep.subr.mxu0 0.0
        %3703 = vmatpush1.msra.mxu0 0.0
        %3704 = vmatprep.subr.mxu0 0.0
        %3705 = vmatpush1.msra.mxu0 0.0
        %3706 = vmatprep.subr.mxu0 0.0
        %3707 = vmatpush1.msra.mxu0 0.0
        %3708 = vmatprep.subr.mxu0 0.0
        %3709 = vmatpush1.msra.mxu0 0.0
        %3710 = vmatprep.subr.mxu0 0.0
        %3711 = vmatpush1.msra.mxu0 %v3690
        %3712 = vmatprep.subr.mxu0 0.0
        %3713 = vmatpush1.msra.mxu0 %v3689
        %3714 = vmatprep.subr.mxu0 0.0
        %3715 = vmatpush1.msra.mxu0 %v3688
        %3716 = vmatprep.subr.mxu0 0.0
        %3717 = vmatpush1.msra.mxu0 %v3687
        %3718 = vmatprep.subr.mxu0 0.0
        %3719 = vmatpush1.msra.mxu0 %v3686
        %3720 = vmatprep.subr.mxu0 0.0
        %3721 = vmatpush1.msra.mxu0 %v3685
        %3722 = vmatprep.subr.mxu0 0.0
        %3723 = vmatpush1.msra.mxu0 %v3684
        %3724 = vmatprep.subr.mxu0 0.0
        %3725 = vmatpush1.msra.mxu0 %v3683
        %3726 = vmatprep.subr.mxu0 0.0
        %3727 = vmatpush2.msra.mxu0 0.0
        %3728 = vmatprep.subr.mxu0 0.0
        %3729 = vmatpush2.msra.mxu0 0.0
        %3730 = vmatprep.subr.mxu0 0.0
        %3731 = vmatpush2.msra.mxu0 0.0
        %3732 = vmatprep.subr.mxu0 0.0
        %3733 = vmatpush2.msra.mxu0 0.0
        %3734 = vmatprep.subr.mxu0 0.0
        %3735 = vmatpush2.msra.mxu0 0.0
        %3736 = vmatprep.subr.mxu0 0.0
        %3737 = vmatpush2.msra.mxu0 0.0
        %3738 = vmatprep.subr.mxu0 0.0
        %3739 = vmatpush2.msra.mxu0 0.0
        %3740 = vmatprep.subr.mxu0 0.0
        %3741 = vmatpush2.msra.mxu0 0.0
        %3742 = vmatprep.subr.mxu0 0.0
        %3743 = vmatpush2.msra.mxu0 0.0
        %3744 = vmatprep.subr.mxu0 0.0
        %3745 = vmatpush2.msra.mxu0 0.0
        %3746 = vmatprep.subr.mxu0 0.0
        %3747 = vmatpush2.msra.mxu0 0.0
        %3748 = vmatprep.subr.mxu0 0.0
        %3749 = vmatpush2.msra.mxu0 0.0
        %3750 = vmatprep.subr.mxu0 0.0
        %3751 = vmatpush2.msra.mxu0 0.0
        %3752 = vmatprep.subr.mxu0 0.0
        %3753 = vmatpush2.msra.mxu0 0.0
        %3754 = vmatprep.subr.mxu0 0.0
        %3755 = vmatpush2.msra.mxu0 0.0
        %3756 = vmatprep.subr.mxu0 0.0
        %3757 = vmatpush2.msra.mxu0 0.0
        %3758 = vmatprep.mubr.f32.mxu0 0.0
        %3759 = vmatmul.mubr.f32.gmra.mxu0 %v2967
        %v3760 = vpop.f32.mrf.mxu0
        %v3761 = vadd.f32 0.0, %v3760
        %v3762 = vpop.f32.mrf.mxu0
        %3763 = vmatprep.mubr.f32.mxu0 0.0
        %3764 = vmatmul.mubr.f32.gmra.mxu0 %v3692
        %v3765 = vpop.f32.mrf.mxu0
        %v3766 = vadd.f32 0.0, %v3765
        %v3767 = vpop.f32.mrf.mxu0
        %3768 = vdwg.mxu0
        %v3769 = vadd.f32 %v3680, %v3761
        %v3770 = vadd.f32 %v3681, %v3766
        %s3771 = scalar_lea.vmem %s6, 896
        %v3772 = vld [vmem:[%s3771] sm:$0xff]
        %v3773 = vld [vmem:[%s3771 + $0x8] sm:$0xff]
        %v3774 = vld [vmem:[%s3771 + $0x10] sm:$0xff]
        %v3775 = vld [vmem:[%s3771 + $0x18] sm:$0xff]
        %v3776 = vld [vmem:[%s3771 + $0x20] sm:$0xff]
        %v3777 = vld [vmem:[%s3771 + $0x28] sm:$0xff]
        %v3778 = vld [vmem:[%s3771 + $0x30] sm:$0xff]
        %v3779 = vld [vmem:[%s3771 + $0x38] sm:$0xff]
        %v3780 = vsel %vm3055, %v3059, %v3056
        %v3781 = vsel %vm2394, %v3780, 0
        %3783 = vmatprep.subr.mxu0 0.0
        %3784 = vmatpush1.msra.mxu0 0.0
        %3785 = vmatprep.subr.mxu0 0.0
        %3786 = vmatpush1.msra.mxu0 0.0
        %3787 = vmatprep.subr.mxu0 0.0
        %3788 = vmatpush1.msra.mxu0 0.0
        %3789 = vmatprep.subr.mxu0 0.0
        %3790 = vmatpush1.msra.mxu0 0.0
        %3791 = vmatprep.subr.mxu0 0.0
        %3792 = vmatpush1.msra.mxu0 0.0
        %3793 = vmatprep.subr.mxu0 0.0
        %3794 = vmatpush1.msra.mxu0 0.0
        %3795 = vmatprep.subr.mxu0 0.0
        %3796 = vmatpush1.msra.mxu0 0.0
        %3797 = vmatprep.subr.mxu0 0.0
        %3798 = vmatpush1.msra.mxu0 0.0
        %3799 = vmatprep.subr.mxu0 0.0
        %3800 = vmatpush1.msra.mxu0 %v3779
        %3801 = vmatprep.subr.mxu0 0.0
        %3802 = vmatpush1.msra.mxu0 %v3778
        %3803 = vmatprep.subr.mxu0 0.0
        %3804 = vmatpush1.msra.mxu0 %v3777
        %3805 = vmatprep.subr.mxu0 0.0
        %3806 = vmatpush1.msra.mxu0 %v3776
        %3807 = vmatprep.subr.mxu0 0.0
        %3808 = vmatpush1.msra.mxu0 %v3775
        %3809 = vmatprep.subr.mxu0 0.0
        %3810 = vmatpush1.msra.mxu0 %v3774
        %3811 = vmatprep.subr.mxu0 0.0
        %3812 = vmatpush1.msra.mxu0 %v3773
        %3813 = vmatprep.subr.mxu0 0.0
        %3814 = vmatpush1.msra.mxu0 %v3772
        %3815 = vmatprep.subr.mxu0 0.0
        %3816 = vmatpush2.msra.mxu0 0.0
        %3817 = vmatprep.subr.mxu0 0.0
        %3818 = vmatpush2.msra.mxu0 0.0
        %3819 = vmatprep.subr.mxu0 0.0
        %3820 = vmatpush2.msra.mxu0 0.0
        %3821 = vmatprep.subr.mxu0 0.0
        %3822 = vmatpush2.msra.mxu0 0.0
        %3823 = vmatprep.subr.mxu0 0.0
        %3824 = vmatpush2.msra.mxu0 0.0
        %3825 = vmatprep.subr.mxu0 0.0
        %3826 = vmatpush2.msra.mxu0 0.0
        %3827 = vmatprep.subr.mxu0 0.0
        %3828 = vmatpush2.msra.mxu0 0.0
        %3829 = vmatprep.subr.mxu0 0.0
        %3830 = vmatpush2.msra.mxu0 0.0
        %3831 = vmatprep.subr.mxu0 0.0
        %3832 = vmatpush2.msra.mxu0 0.0
        %3833 = vmatprep.subr.mxu0 0.0
        %3834 = vmatpush2.msra.mxu0 0.0
        %3835 = vmatprep.subr.mxu0 0.0
        %3836 = vmatpush2.msra.mxu0 0.0
        %3837 = vmatprep.subr.mxu0 0.0
        %3838 = vmatpush2.msra.mxu0 0.0
        %3839 = vmatprep.subr.mxu0 0.0
        %3840 = vmatpush2.msra.mxu0 0.0
        %3841 = vmatprep.subr.mxu0 0.0
        %3842 = vmatpush2.msra.mxu0 0.0
        %3843 = vmatprep.subr.mxu0 0.0
        %3844 = vmatpush2.msra.mxu0 0.0
        %3845 = vmatprep.subr.mxu0 0.0
        %3846 = vmatpush2.msra.mxu0 0.0
        %3847 = vmatprep.mubr.f32.mxu0 0.0
        %3848 = vmatmul.mubr.f32.gmra.mxu0 %v3063
        %v3849 = vpop.f32.mrf.mxu0
        %v3850 = vadd.f32 0.0, %v3849
        %v3851 = vpop.f32.mrf.mxu0
        %3852 = vmatprep.mubr.f32.mxu0 0.0
        %3853 = vmatmul.mubr.f32.gmra.mxu0 %v3781
        %v3854 = vpop.f32.mrf.mxu0
        %v3855 = vadd.f32 0.0, %v3854
        %v3856 = vpop.f32.mrf.mxu0
        %3857 = vdwg.mxu0
        %v3858 = vadd.f32 %v3769, %v3850
        %v3859 = vadd.f32 %v3770, %v3855
        %s3860 = scalar_lea.vmem %s6, 960
        %v3861 = vld [vmem:[%s3860] sm:$0xff]
        %v3862 = vld [vmem:[%s3860 + $0x8] sm:$0xff]
        %v3863 = vld [vmem:[%s3860 + $0x10] sm:$0xff]
        %v3864 = vld [vmem:[%s3860 + $0x18] sm:$0xff]
        %v3865 = vld [vmem:[%s3860 + $0x20] sm:$0xff]
        %v3866 = vld [vmem:[%s3860 + $0x28] sm:$0xff]
        %v3867 = vld [vmem:[%s3860 + $0x30] sm:$0xff]
        %v3868 = vld [vmem:[%s3860 + $0x38] sm:$0xff]
        %v3869 = vsel %vm3151, %v3155, %v3152
        %v3870 = vsel %vm2394, %v3869, 0
        %3872 = vmatprep.subr.mxu0 0.0
        %3873 = vmatpush1.msra.mxu0 0.0
        %3874 = vmatprep.subr.mxu0 0.0
        %3875 = vmatpush1.msra.mxu0 0.0
        %3876 = vmatprep.subr.mxu0 0.0
        %3877 = vmatpush1.msra.mxu0 0.0
        %3878 = vmatprep.subr.mxu0 0.0
        %3879 = vmatpush1.msra.mxu0 0.0
        %3880 = vmatprep.subr.mxu0 0.0
        %3881 = vmatpush1.msra.mxu0 0.0
        %3882 = vmatprep.subr.mxu0 0.0
        %3883 = vmatpush1.msra.mxu0 0.0
        %3884 = vmatprep.subr.mxu0 0.0
        %3885 = vmatpush1.msra.mxu0 0.0
        %3886 = vmatprep.subr.mxu0 0.0
        %3887 = vmatpush1.msra.mxu0 0.0
        %3888 = vmatprep.subr.mxu0 0.0
        %3889 = vmatpush1.msra.mxu0 %v3868
        %3890 = vmatprep.subr.mxu0 0.0
        %3891 = vmatpush1.msra.mxu0 %v3867
        %3892 = vmatprep.subr.mxu0 0.0
        %3893 = vmatpush1.msra.mxu0 %v3866
        %3894 = vmatprep.subr.mxu0 0.0
        %3895 = vmatpush1.msra.mxu0 %v3865
        %3896 = vmatprep.subr.mxu0 0.0
        %3897 = vmatpush1.msra.mxu0 %v3864
        %3898 = vmatprep.subr.mxu0 0.0
        %3899 = vmatpush1.msra.mxu0 %v3863
        %3900 = vmatprep.subr.mxu0 0.0
        %3901 = vmatpush1.msra.mxu0 %v3862
        %3902 = vmatprep.subr.mxu0 0.0
        %3903 = vmatpush1.msra.mxu0 %v3861
        %3904 = vmatprep.subr.mxu0 0.0
        %3905 = vmatpush2.msra.mxu0 0.0
        %3906 = vmatprep.subr.mxu0 0.0
        %3907 = vmatpush2.msra.mxu0 0.0
        %3908 = vmatprep.subr.mxu0 0.0
        %3909 = vmatpush2.msra.mxu0 0.0
        %3910 = vmatprep.subr.mxu0 0.0
        %3911 = vmatpush2.msra.mxu0 0.0
        %3912 = vmatprep.subr.mxu0 0.0
        %3913 = vmatpush2.msra.mxu0 0.0
        %3914 = vmatprep.subr.mxu0 0.0
        %3915 = vmatpush2.msra.mxu0 0.0
        %3916 = vmatprep.subr.mxu0 0.0
        %3917 = vmatpush2.msra.mxu0 0.0
        %3918 = vmatprep.subr.mxu0 0.0
        %3919 = vmatpush2.msra.mxu0 0.0
        %3920 = vmatprep.subr.mxu0 0.0
        %3921 = vmatpush2.msra.mxu0 0.0
        %3922 = vmatprep.subr.mxu0 0.0
        %3923 = vmatpush2.msra.mxu0 0.0
        %3924 = vmatprep.subr.mxu0 0.0
        %3925 = vmatpush2.msra.mxu0 0.0
        %3926 = vmatprep.subr.mxu0 0.0
        %3927 = vmatpush2.msra.mxu0 0.0
        %3928 = vmatprep.subr.mxu0 0.0
        %3929 = vmatpush2.msra.mxu0 0.0
        %3930 = vmatprep.subr.mxu0 0.0
        %3931 = vmatpush2.msra.mxu0 0.0
        %3932 = vmatprep.subr.mxu0 0.0
        %3933 = vmatpush2.msra.mxu0 0.0
        %3934 = vmatprep.subr.mxu0 0.0
        %3935 = vmatpush2.msra.mxu0 0.0
        %3936 = vmatprep.mubr.f32.mxu0 0.0
        %3937 = vmatmul.mubr.f32.gmra.mxu0 %v3159
        %v3938 = vpop.f32.mrf.mxu0
        %v3939 = vadd.f32 0.0, %v3938
        %v3940 = vpop.f32.mrf.mxu0
        %3941 = vmatprep.mubr.f32.mxu0 0.0
        %3942 = vmatmul.mubr.f32.gmra.mxu0 %v3870
        %v3943 = vpop.f32.mrf.mxu0
        %v3944 = vadd.f32 0.0, %v3943
        %v3945 = vpop.f32.mrf.mxu0
        %3946 = vdwg.mxu0
        %v3947 = vadd.f32 %v3858, %v3939
        %v3948 = vadd.f32 %v3859, %v3944
        %v3949 = vld [vmem:[%s7] sm:$0x1]
        %v3951 = vlaneseq
        %v3952 = vshrl.u32 %v3951, 7
        %v3953 = vsub.s32 0, %v3952
        %v3954 = vrot.slane %v3949, %v3953
        %v3956 = vadd.f32 %v3947, %v3954
        %v3957 = vadd.f32 %v3948, %v3954
        %vm3958 = vcmp.gt.f32.partialorder %v3956, 0.0
        %vm3959 = vcmp.gt.f32.partialorder %v3957, 0.0
        %v3960 = vmin.f32 %v3956, 0.0
        %v3961 = vmin.f32 %v3957, 0.0
        %v3962 = vmul.f32 %v3960, 1.442695
        %v3963 = vpow.pop %v3962
        %v3964 = vmul.f32 %v3961, 1.442695
        %v3965 = vpow.pop %v3964
        %v3966 = vsub.f32 %v3963, 1.0
        %v3967 = vsub.f32 %v3965, 1.0
        %v3968 = vsel %vm3958, %v3956, %v3966
        %v3969 = vsel %vm3959, %v3957, %v3967
        %v3970 = vld [vmem:[%s8] sm:$0xff]
        %vm3971 = vcmask 130048
        %v3973 = vsel %vm3971, %v3970, 0
        %3975 = vmatprep.subr.mxu0 0.0
        %3976 = vmatpush1.msra.mxu0 0.0
        %3977 = vmatprep.subr.mxu0 0.0
        %3978 = vmatpush1.msra.mxu0 0.0
        %3979 = vmatprep.subr.mxu0 0.0
        %3980 = vmatpush1.msra.mxu0 0.0
        %3981 = vmatprep.subr.mxu0 0.0
        %3982 = vmatpush1.msra.mxu0 0.0
        %3983 = vmatprep.subr.mxu0 0.0
        %3984 = vmatpush1.msra.mxu0 0.0
        %3985 = vmatprep.subr.mxu0 0.0
        %3986 = vmatpush1.msra.mxu0 0.0
        %3987 = vmatprep.subr.mxu0 0.0
        %3988 = vmatpush1.msra.mxu0 0.0
        %3989 = vmatprep.subr.mxu0 0.0
        %3990 = vmatpush1.msra.mxu0 0.0
        %3991 = vmatprep.subr.mxu0 0.0
        %3992 = vmatpush1.msra.mxu0 0.0
        %3993 = vmatprep.subr.mxu0 0.0
        %3994 = vmatpush1.msra.mxu0 0.0
        %3995 = vmatprep.subr.mxu0 0.0
        %3996 = vmatpush1.msra.mxu0 0.0
        %3997 = vmatprep.subr.mxu0 0.0
        %3998 = vmatpush1.msra.mxu0 0.0
        %3999 = vmatprep.subr.mxu0 0.0
        %4000 = vmatpush1.msra.mxu0 0.0
        %4001 = vmatprep.subr.mxu0 0.0
        %4002 = vmatpush1.msra.mxu0 0.0
        %4003 = vmatprep.subr.mxu0 0.0
        %4004 = vmatpush1.msra.mxu0 %v3969
        %4005 = vmatprep.subr.mxu0 0.0
        %4006 = vmatpush1.msra.mxu0 %v3968
        %4007 = vmatprep.subr.mxu0 0.0
        %4008 = vmatpush2.msra.mxu0 0.0
        %4009 = vmatprep.subr.mxu0 0.0
        %4010 = vmatpush2.msra.mxu0 0.0
        %4011 = vmatprep.subr.mxu0 0.0
        %4012 = vmatpush2.msra.mxu0 0.0
        %4013 = vmatprep.subr.mxu0 0.0
        %4014 = vmatpush2.msra.mxu0 0.0
        %4015 = vmatprep.subr.mxu0 0.0
        %4016 = vmatpush2.msra.mxu0 0.0
        %4017 = vmatprep.subr.mxu0 0.0
        %4018 = vmatpush2.msra.mxu0 0.0
        %4019 = vmatprep.subr.mxu0 0.0
        %4020 = vmatpush2.msra.mxu0 0.0
        %4021 = vmatprep.subr.mxu0 0.0
        %4022 = vmatpush2.msra.mxu0 0.0
        %4023 = vmatprep.subr.mxu0 0.0
        %4024 = vmatpush2.msra.mxu0 0.0
        %4025 = vmatprep.subr.mxu0 0.0
        %4026 = vmatpush2.msra.mxu0 0.0
        %4027 = vmatprep.subr.mxu0 0.0
        %4028 = vmatpush2.msra.mxu0 0.0
        %4029 = vmatprep.subr.mxu0 0.0
        %4030 = vmatpush2.msra.mxu0 0.0
        %4031 = vmatprep.subr.mxu0 0.0
        %4032 = vmatpush2.msra.mxu0 0.0
        %4033 = vmatprep.subr.mxu0 0.0
        %4034 = vmatpush2.msra.mxu0 0.0
        %4035 = vmatprep.subr.mxu0 0.0
        %4036 = vmatpush2.msra.mxu0 0.0
        %4037 = vmatprep.subr.mxu0 0.0
        %4038 = vmatpush2.msra.mxu0 0.0
        %4039 = vmatprep.mubr.f32.mxu0 0.0
        %4040 = vmatmul.mubr.f32.gmra.mxu0 %v3973
        %v4041 = vpop.f32.mrf.mxu0
        %v4042 = vadd.f32 0.0, %v4041
        %v4043 = vpop.f32.mrf.mxu0
        %4044 = vdwg.mxu0
        %vm4045 = vcmask 261120
        %4046 = vst.msk [vmem:[%s356] sm:$0xff] %vm4045, %v4042
        %s4047 = sand.u32 %s230, 1
        %s4048 = scalar_lea.sflag [#allocation3], %s4047
        %s4049 = sand.u32 %s230, 1
        %s4050 = smul.addr %s4049, 8
        %s4051 = scalar_lea.vmem [#allocation2], %s4050
        %s4052 = sand.u32 %s256, 1
        %s4053 = scalar_lea.sflag [#allocation5], %s4052
        %s4054 = sand.u32 %s256, 1
        %s4055 = smul.addr %s4054, 16
        %s4056 = scalar_lea.vmem [#allocation4], %s4055
        // Predicated region
        $region57: #{eeg_feature_forward.1} parent=55 // pred_check
          %p4057 = pneg %p240
        $region58: #{eeg_feature_forward.1} parent=55 // pred_check_branch
          %4059 = sbr.rel (%p4057) target = $region60
        $region59: #{eeg_feature_forward.1} parent=55 // pred_region
          %s4061 = ssub.s32 128, 128
          %4062 = vsyncadd %s4048, %s4061
          %s4063 = smul.addr %s28, 128
          %s4064 = scalar_lea.hbm %s9, %s4063
          %s4066 = sshll.u32 %s4051, 4
          %s4067 = int_to_ptr.vmem [resolvable:$true] %s4066
          %4069 = dma.vmem_to_hbm [thread:$0]  %s4067, 128, %s4064, %s4048
        $region60: #{eeg_feature_forward.1} parent=55 // pred_fallthru
          _
        // Predicated region
        $region61: #{eeg_feature_forward.1} parent=55 // pred_check
          %p4070 = pneg %p266
        $region62: #{eeg_feature_forward.1} parent=55 // pred_check_branch
          %4072 = sbr.rel (%p4070) target = $region64
        $region63: #{eeg_feature_forward.1} parent=55 // pred_region
          %s4074 = ssub.s32 256, 256
          %4075 = vsyncadd %s4053, %s4074
          %s4076 = smul.addr %s28, 2
          %s4077 = smul.addr %s4076, 128
          %s4078 = scalar_lea.hbm %s10, %s4077
          %s4079 = sshll.u32 %s4056, 4
          %s4080 = int_to_ptr.vmem [resolvable:$true] %s4079
          %4085 = dma.vmem_to_hbm [thread:$0]  %s4080, 256, %s4078, %s4053, 128, 128, 8
        $region64: #{eeg_feature_forward.1} parent=55 // pred_fallthru
          _
      $region56: #{eeg_feature_forward.1} parent=5 // pred_fallthru
        _
      %p4086 = scmp.le.s32.totalorder 2, %s23
      // Predicated region
      $region65: #{eeg_feature_forward.1} parent=5 // pred_check
        %p4087 = pneg %p4086
      $region66: #{eeg_feature_forward.1} parent=5 // pred_check_branch
        %4089 = sbr.rel (%p4087) target = $region68
      $region67: #{eeg_feature_forward.1} parent=5 // pred_region
        %s4090 = ssub.s32 %s23, 2
        // Predicated region
        $region69: #{eeg_feature_forward.1} parent=67 // pred_check
          %p4091 = pneg %p246
        $region70: #{eeg_feature_forward.1} parent=67 // pred_check_branch
          %4093 = sbr.rel (%p4091) target = $region72
        $region71: #{eeg_feature_forward.1} parent=67 // pred_region
          %s4094 = sand.u32 %s231, 1
          %s4095 = scalar_lea.sflag [#allocation3], %s4094
          %s4096 = sand.u32 %s231, 1
          %s4097 = smul.addr %s4096, 8
          %s4098 = scalar_lea.vmem [#allocation2], %s4097
          %4099 = dma.done %s4095, 128
        $region72: #{eeg_feature_forward.1} parent=67 // pred_fallthru
          _
        // Predicated region
        $region73: #{eeg_feature_forward.1} parent=67 // pred_check
          %p4100 = pneg %p272
        $region74: #{eeg_feature_forward.1} parent=67 // pred_check_branch
          %4102 = sbr.rel (%p4100) target = $region76
        $region75: #{eeg_feature_forward.1} parent=67 // pred_region
          %s4103 = sand.u32 %s257, 1
          %s4104 = scalar_lea.sflag [#allocation5], %s4103
          %s4105 = sand.u32 %s257, 1
          %s4106 = smul.addr %s4105, 16
          %s4107 = scalar_lea.vmem [#allocation4], %s4106
          %4108 = dma.done %s4104, 256
        $region76: #{eeg_feature_forward.1} parent=67 // pred_fallthru
          _
      $region68: #{eeg_feature_forward.1} parent=5 // pred_fallthru
        _
    $region6: #{eeg_feature_forward.1} parent=1 // loop_footer
      %s27 = sadd.s32 1, %s23
    $region7: #{eeg_feature_forward.1} parent=1 // loop_footer_branch
      %22 = sbr.rel target = $region3
    $region8: #{eeg_feature_forward.1} parent=1 // loop_exit
      _
    %4109 = vsyncpa [#allocation3], 1
    %s4110 = scalar_lea.sflag [#allocation3], 1
    %4111 = vsyncpa %s4110, 1
    %4112 = vsyncpa [#allocation5], 1
    %s4113 = scalar_lea.sflag [#allocation5], 1
    %4114 = vsyncpa %s4113, 1

</llo_original>
